<compile_context>
chip_gen: v7x
topology: tpu7x:2x2x1
jax: 0.10.0
libtpu: 0.0.40
codegen_flags: <defaults>
</compile_context>

<pallas_src>
import functools
import math

import jax
import jax.numpy as jnp
from jax import lax
from jax.experimental import pallas as pl
from jax.experimental.pallas import tpu as pltpu


def _round_up(x, m):
    return (x + m - 1) // m * m


def _padded_vmem_bytes(block_shape, dtype):
    """VMEM bytes of one block including (8, 128) sublane/lane padding."""
    *lead, sub, lane = block_shape
    elems = math.prod(lead) * _round_up(sub, 8) * _round_up(lane, 128)
    return elems * jnp.dtype(dtype).itemsize


def _bn_kernel(x_ref, params_ref, o_ref, *, eps):
    # x_ref: (N, Ct, HW) block — full batch/spatial extent, one channel tile.
    x = x_ref[...].astype(jnp.float32)
    n, ct, hw = x.shape
    inv_r = 1.0 / (n * hw)

    # Single-pass per-channel batch statistics (biased variance), reduced over
    # batch (axis 0) and spatial/lane (axis 2) axes.  No `diff` temporary.
    sum_x = jnp.sum(x, axis=(0, 2), keepdims=True)              # (1, Ct, 1)
    sum_xx = jnp.sum(x * x, axis=(0, 2), keepdims=True)         # (1, Ct, 1)
    mean = sum_x * inv_r
    var = jnp.maximum(sum_xx * inv_r - mean * mean, 0.0)        # clamp cancellation
    inv_std = lax.rsqrt(var + eps)                              # (1, Ct, 1)

    # Affine folded into one per-channel scale/shift (2 VALU ops per element).
    p = params_ref[...]                                         # (1, Ct, 2)
    gamma = p[:, :, 0:1]                                        # (1, Ct, 1)
    beta = p[:, :, 1:2]                                         # (1, Ct, 1)
    scale = inv_std * gamma
    shift = beta - mean * scale

    o_ref[...] = (x * scale + shift).astype(o_ref.dtype)


def _default_num_channel_tiles():
    # v7x: 2 TensorCores per chip -> use 4 parallel steps so each core gets 2
    # steps and its DMA/compute pipeline can double-buffer.  v5e/v6e: single
    # core, keep 2 steps (more steps only add per-step overhead for ~0.9 MB
    # of total HBM traffic).
    try:
        kind = jax.devices()[0].device_kind.lower()
    except Exception:
        return 2
    return 4 if "v7" in kind else 2


def batchnorm2d_pallas(x_nchw, gamma, beta, *, eps=1e-3, num_channel_tiles=None):
    """BatchNorm2d forward (training-mode batch stats) on TPU via Pallas.

    Works directly on a zero-copy (N, C, H*W) view of the NCHW buffer; no
    wrapper transposes.
    """
    N, C, H, W = x_nchw.shape
    HW = H * W
    if num_channel_tiles is None:
        num_channel_tiles = _default_num_channel_tiles()
    assert C % num_channel_tiles == 0, "C must divide evenly into channel tiles"
    c_tile = C // num_channel_tiles
    assert c_tile % 8 == 0, "channel tile must be a multiple of 8 (sublane)"

    # Zero-copy channel-major view.
    x3d = x_nchw.reshape(N, C, HW)
    # gamma/beta stacked into one operand: one DMA and one lane-padded VMEM
    # buffer per step instead of two.
    params = jnp.stack(
        [gamma.astype(jnp.float32), beta.astype(jnp.float32)], axis=-1
    ).reshape(1, C, 2)

    # VMEM guard with (8,128) padding (HW=49 pads to 128 lanes, ~2.6x raw):
    # double-buffered x-in + x-out + params must fit the smallest default
    # scoped-VMEM budget across generations (16 MiB on v5e).
    x_blk = _padded_vmem_bytes((N, c_tile, HW), x3d.dtype)
    p_blk = _padded_vmem_bytes((1, c_tile, 2), params.dtype)
    total_vmem = 2 * (2 * x_blk) + 2 * p_blk
    assert total_vmem < 16 * 1024 * 1024, (
        "padded double-buffered blocks too large for scoped VMEM; "
        "needs a row-tiled variant")
    # TODO(synk): for large N*H*W add a row-tiled two-pass variant (stats
    # accumulator with pl.when init/finalize over an "arbitrary" row axis).

    R = N * HW
    cost = pl.CostEstimate(
        flops=5 * R * C,                 # x*x, two reduce-adds, scale, shift
        transcendentals=C,               # rsqrt per channel
        bytes_accessed=2 * R * C * 4 + 2 * C * 4,
    )

    out3d = pl.pallas_call(
        functools.partial(_bn_kernel, eps=eps),
        out_shape=jax.ShapeDtypeStruct((N, C, HW), x3d.dtype),
        grid_spec=pltpu.PrefetchScalarGridSpec(
            num_scalar_prefetch=0,
            grid=(num_channel_tiles,),
            in_specs=[
                pl.BlockSpec((N, c_tile, HW), lambda j: (0, j, 0)),  # x slab
                pl.BlockSpec((1, c_tile, 2), lambda j: (0, j, 0)),   # gamma|beta
            ],
            out_specs=pl.BlockSpec((N, c_tile, HW), lambda j: (0, j, 0)),
        ),
        compiler_params=pltpu.CompilerParams(
            dimension_semantics=("parallel",),
        ),
        cost_estimate=cost,
    )(x3d, params)

    return out3d.reshape(N, C, H, W)


def batchnorm2d_ref(x_nchw, gamma, beta, *, eps=1e-3):
    xf = x_nchw.astype(jnp.float32)
    mean = jnp.mean(xf, axis=(0, 2, 3), keepdims=True)
    var = jnp.mean((xf - mean) ** 2, axis=(0, 2, 3), keepdims=True)  # biased
    g = gamma.reshape(1, -1, 1, 1)
    b = beta.reshape(1, -1, 1, 1)
    return ((xf - mean) * lax.rsqrt(var + eps) * g + b).astype(x_nchw.dtype)


if __name__ == "__main__":
    # Shapes implied by the module: x672 = randn([1, 2304, 7, 7]); BN over 2304 channels.
    N, C, H, W = 1, 2304, 7, 7
    eps = 1e-3

    key = jax.random.PRNGKey(0)
    kx, kg, kb = jax.random.split(key, 3)
    x = jax.random.normal(kx, (N, C, H, W), dtype=jnp.float32)
    gamma = 1.0 + 0.1 * jax.random.normal(kg, (C,), dtype=jnp.float32)
    beta = 0.1 * jax.random.normal(kb, (C,), dtype=jnp.float32)

    # TODO(synk): running_mean/running_var momentum update (training-time
    # side effect) is not modeled; it does not affect the forward output.

    out = jax.block_until_ready(batchnorm2d_pallas(x, gamma, beta, eps=eps))
    ref = jax.block_until_ready(batchnorm2d_ref(x, gamma, beta, eps=eps))
    err = float(jnp.max(jnp.abs(out - ref)))
    assert out.shape == (N, C, H, W)
    assert err < 1e-4, f"max abs error {err}"

    # Large-offset data (|mean| >> std): exercises the single-pass
    # E[x^2]-mean^2 path where cancellation is worst; f32 accumulation keeps
    # it well within tolerance.
    x_off = 0.5 * x + 10.0
    out2 = jax.block_until_ready(batchnorm2d_pallas(x_off, gamma, beta, eps=eps))
    ref2 = jax.block_until_ready(batchnorm2d_ref(x_off, gamma, beta, eps=eps))
    err2 = float(jnp.max(jnp.abs(out2 - ref2)))
    assert err2 < 5e-3, f"max abs error (offset case) {err2}"

    print("KERNEL_OK")
</pallas_src>

<mosaic_0001>
module attributes {stable_mosaic.version = 11 : i64} {
  func.func @_bn_kernel(%arg0: i32, %arg1: memref<1x1152x49xf32, #tpu.memory_space<vmem>>, %arg2: memref<1x1152x2xf32, #tpu.memory_space<vmem>>, %arg3: memref<1x1152x49xf32, #tpu.memory_space<vmem>>) attributes {dimension_semantics = [#tpu.dimension_semantics<parallel>], iteration_bounds = array<i64: 2>, scalar_prefetch = 0 : i64, scratch_operands = 0 : i64, tpu.core_type = #tpu.core_type<tc>, window_params = [{transform_indices = @transform_0, window_bounds = array<i64: 1, 1152, 49>}, {transform_indices = @transform_1, window_bounds = array<i64: 1, 1152, 2>}, {transform_indices = @transform_2, window_bounds = array<i64: 1, 1152, 49>}]} {
    %c0 = arith.constant 0 : index
    %c0_0 = arith.constant 0 : index
    %c0_1 = arith.constant 0 : index
    %0 = vector.load %arg1[%c0, %c0_0, %c0_1] : memref<1x1152x49xf32, #tpu.memory_space<vmem>>, vector<1x1152x49xf32>
    %cst = arith.constant dense<0.000000e+00> : vector<1152xf32>
    %1 = vector.multi_reduction <add>, %0, %cst [0, 2] : vector<1x1152x49xf32> to vector<1152xf32>
    %2 = vector.shape_cast %1 : vector<1152xf32> to vector<1x1152x1xf32>
    %3 = arith.mulf %0, %0 : vector<1x1152x49xf32>
    %cst_2 = arith.constant dense<0.000000e+00> : vector<1152xf32>
    %4 = vector.multi_reduction <add>, %3, %cst_2 [0, 2] : vector<1x1152x49xf32> to vector<1152xf32>
    %5 = vector.shape_cast %4 : vector<1152xf32> to vector<1x1152x1xf32>
    %cst_3 = arith.constant 0.0204081628 : f32
    %6 = vector.broadcast %cst_3 : f32 to vector<1x1152x1xf32>
    %7 = arith.mulf %2, %6 : vector<1x1152x1xf32>
    %cst_4 = arith.constant 0.0204081628 : f32
    %8 = vector.broadcast %cst_4 : f32 to vector<1x1152x1xf32>
    %9 = arith.mulf %5, %8 : vector<1x1152x1xf32>
    %10 = arith.mulf %7, %7 : vector<1x1152x1xf32>
    %11 = arith.subf %9, %10 : vector<1x1152x1xf32>
    %cst_5 = arith.constant 0.000000e+00 : f32
    %12 = vector.broadcast %cst_5 : f32 to vector<1x1152x1xf32>
    %13 = arith.maximumf %11, %12 : vector<1x1152x1xf32>
    %cst_6 = arith.constant 1.000000e-03 : f32
    %14 = vector.broadcast %cst_6 : f32 to vector<1x1152x1xf32>
    %15 = arith.addf %13, %14 : vector<1x1152x1xf32>
    %16 = math.rsqrt %15 : vector<1x1152x1xf32>
    %c0_7 = arith.constant 0 : index
    %c0_8 = arith.constant 0 : index
    %c0_9 = arith.constant 0 : index
    %17 = vector.load %arg2[%c0_7, %c0_8, %c0_9] : memref<1x1152x2xf32, #tpu.memory_space<vmem>>, vector<1x1152x2xf32>
    %18 = vector.extract_strided_slice %17 {offsets = [0, 0, 0], sizes = [1, 1152, 1], strides = [1, 1, 1]} : vector<1x1152x2xf32> to vector<1x1152x1xf32>
    %19 = vector.extract_strided_slice %17 {offsets = [0, 0, 1], sizes = [1, 1152, 1], strides = [1, 1, 1]} : vector<1x1152x2xf32> to vector<1x1152x1xf32>
    %20 = arith.mulf %16, %18 : vector<1x1152x1xf32>
    %21 = arith.mulf %7, %20 : vector<1x1152x1xf32>
    %22 = arith.subf %19, %21 : vector<1x1152x1xf32>
    %23 = vector.broadcast %20 : vector<1x1152x1xf32> to vector<1x1152x49xf32>
    %24 = arith.mulf %0, %23 : vector<1x1152x49xf32>
    %25 = vector.broadcast %22 : vector<1x1152x1xf32> to vector<1x1152x49xf32>
    %26 = arith.addf %24, %25 : vector<1x1152x49xf32>
    %c0_10 = arith.constant 0 : index
    %c0_11 = arith.constant 0 : index
    %c0_12 = arith.constant 0 : index
    %27 = vector.load %arg3[%c0_10, %c0_11, %c0_12] : memref<1x1152x49xf32, #tpu.memory_space<vmem>>, vector<1x1152x49xf32>
    tpu.vector_store %arg3[%c0_10, %c0_11, %c0_12], %26 {strides = array<i32>} : memref<1x1152x49xf32, #tpu.memory_space<vmem>>, vector<1x1152x49xf32>,
    return
  }
  func.func @transform_0(%arg0: i32) -> (i32, i32, i32) {
    %c0_i32 = arith.constant 0 : i32
    %c0_i32_0 = arith.constant 0 : i32
    %c0_i32_1 = arith.constant 0 : i32
    return %c0_i32, %arg0, %c0_i32_0 : i32, i32, i32
  }
  func.func @transform_1(%arg0: i32) -> (i32, i32, i32) {
    %c0_i32 = arith.constant 0 : i32
    %c0_i32_0 = arith.constant 0 : i32
    %c0_i32_1 = arith.constant 0 : i32
    return %c0_i32, %arg0, %c0_i32_0 : i32, i32, i32
  }
  func.func @transform_2(%arg0: i32) -> (i32, i32, i32) {
    %c0_i32 = arith.constant 0 : i32
    %c0_i32_0 = arith.constant 0 : i32
    %c0_i32_1 = arith.constant 0 : i32
    return %c0_i32, %arg0, %c0_i32_0 : i32, i32, i32
  }
}

</mosaic_0001>

<llo_original>
// kernel: tpu_custom_call.1
$region0: #{tpu_custom_call.1}
  #allocation0 [shape = 'u32[]', space=smem, size = 0x4, offset = 0x4, fixed_abs, tag = 'smem constant byte address 0x4 - core index']
  #allocation1 [shape = 'u32[144,128]{1,0:T(1,128)}', space=vmem, size = 0x12000, scoped, tag = 'internal scratch']
  %s0 = inlined_call_operand.vmem [shape: f32[1,2304,49], index: 0, kind: input, shape index: {}]
  %s1 = inlined_call_operand.vmem [shape: f32[1,2304,2], index: 1, kind: input, shape index: {}]
  %s2 = inlined_call_operand.vmem [shape: f32[1,2304,49], index: 2, kind: output, shape index: {}]
  %s3 = sld [smem:[#allocation0]]
  $region41: #{tpu_custom_call.1} parent=0
    _
  %s5 = ssub.s32 1, %s3
  %s6 = scalar_select 0, %s5, %s3
  loop: start=0, step=1, limit=4
  $region2: #{tpu_custom_call.1} parent=0 // loop_pre_header
    _
  $region3: #{tpu_custom_call.1} parent=0 // loop_header
    %s8 = sphi 0, %s12
    %p9 = scmp.ge.s32.totalorder %s8, 4
    %s18 = sphi 0, %s20
    %s21 = sphi 0, %s18
    %s22 = sphi 0, %s21
    %s38 = sphi 0, %s22
    %s44 = sphi 0, %s46
    %s47 = sphi 0, %s44
    %s48 = sphi 0, %s47
    %s64 = sphi 0, %s48
    %s70 = sphi 0, %s72
    %s73 = sphi 0, %s70
    %s74 = sphi 0, %s73
    %s90 = sphi 0, %s74
  $region4: #{tpu_custom_call.1} parent=0 // loop_header_branch
    %11 = sbr.rel (%p9) target = $region8
  $region5: #{tpu_custom_call.1} parent=0 // loop_body
    %s13 = ssub.s32 %s8, 1
    %s14 = ssub.s32 %s8, 2
    %s15 = sadd.s32 %s8, 1
    %s16 = ssub.s32 %s8, %s15
    %p17 = scmp.eq.s32.totalorder %s16, 0
    %s19 = sadd.s32 %s18, 1
    %s20 = scalar_select %p17, %s18, %s19
    %p23 = pneg %p17
    %p24 = scmp.eq.s32.totalorder %s8, 1
    %p25 = por %p23, %p24
    %p26 = scmp.ne.s32.totalorder %s18, %s21
    %p27 = scmp.eq.s32.totalorder %s8, 0
    %p28 = por %p26, %p27
    %p29 = scmp.ne.s32.totalorder %s18, %s21
    %p30 = scmp.eq.s32.totalorder %s13, 1
    %p31 = por %p29, %p30
    %p32 = scmp.ne.s32.totalorder %s21, %s22
    %p33 = scmp.eq.s32.totalorder %s13, 0
    %p34 = por %p32, %p33
    %p35 = scmp.ne.s32.totalorder %s21, %s22
    %p36 = scmp.eq.s32.totalorder %s14, 1
    %p37 = por %p35, %p36
    %p39 = scmp.ne.s32.totalorder %s22, %s38
    %p40 = scmp.eq.s32.totalorder %s14, 0
    %p41 = por %p39, %p40
    %s42 = ssub.s32 %s8, %s15
    %p43 = scmp.eq.s32.totalorder %s42, 0
    %s45 = sadd.s32 %s44, 1
    %s46 = scalar_select %p43, %s44, %s45
    %p49 = pneg %p43
    %p50 = scmp.eq.s32.totalorder %s8, 1
    %p51 = por %p49, %p50
    %p52 = scmp.ne.s32.totalorder %s44, %s47
    %p53 = scmp.eq.s32.totalorder %s8, 0
    %p54 = por %p52, %p53
    %p55 = scmp.ne.s32.totalorder %s44, %s47
    %p56 = scmp.eq.s32.totalorder %s13, 1
    %p57 = por %p55, %p56
    %p58 = scmp.ne.s32.totalorder %s47, %s48
    %p59 = scmp.eq.s32.totalorder %s13, 0
    %p60 = por %p58, %p59
    %p61 = scmp.ne.s32.totalorder %s47, %s48
    %p62 = scmp.eq.s32.totalorder %s14, 1
    %p63 = por %p61, %p62
    %p65 = scmp.ne.s32.totalorder %s48, %s64
    %p66 = scmp.eq.s32.totalorder %s14, 0
    %p67 = por %p65, %p66
    %s68 = ssub.s32 %s8, %s15
    %p69 = scmp.eq.s32.totalorder %s68, 0
    %s71 = sadd.s32 %s70, 1
    %s72 = scalar_select %p69, %s70, %s71
    %p75 = pneg %p69
    %p76 = scmp.eq.s32.totalorder %s8, 1
    %p77 = por %p75, %p76
    %p78 = scmp.ne.s32.totalorder %s70, %s73
    %p79 = scmp.eq.s32.totalorder %s8, 0
    %p80 = por %p78, %p79
    %p81 = scmp.ne.s32.totalorder %s70, %s73
    %p82 = scmp.eq.s32.totalorder %s13, 1
    %p83 = por %p81, %p82
    %p84 = scmp.ne.s32.totalorder %s73, %s74
    %p85 = scmp.eq.s32.totalorder %s13, 0
    %p86 = por %p84, %p85
    %p87 = scmp.ne.s32.totalorder %s73, %s74
    %p88 = scmp.eq.s32.totalorder %s14, 1
    %p89 = por %p87, %p88
    %p91 = scmp.ne.s32.totalorder %s74, %s90
    %p92 = scmp.eq.s32.totalorder %s14, 0
    %p93 = por %p91, %p92
    %p94 = scmp.le.s32.totalorder 1, %s8
    %p95 = scmp.lt.s32.totalorder %s8, 3
    %p96 = pnand %p94, %p95
    %p97 = pneg %p96
    // Predicated region
    $region9: #{tpu_custom_call.1} parent=5 // pred_check
      _
    $region10: #{tpu_custom_call.1} parent=5 // pred_check_branch
      %99 = sbr.rel (%p96) target = $region12
    $region11: #{tpu_custom_call.1} parent=5 // pred_region
      %s100 = ssub.s32 %s8, 1
    $region12: #{tpu_custom_call.1} parent=5 // pred_fallthru
      _
    %p101 = scmp.lt.s32.totalorder %s8, 2
    // Predicated region
    $region13: #{tpu_custom_call.1} parent=5 // pred_check
      %p102 = pneg %p101
    $region14: #{tpu_custom_call.1} parent=5 // pred_check_branch
      %104 = sbr.rel (%p102) target = $region16
    $region15: #{tpu_custom_call.1} parent=5 // pred_region
      // Predicated region
      $region17: #{tpu_custom_call.1} parent=15 // pred_check
        %p105 = pneg %p28
      $region18: #{tpu_custom_call.1} parent=15 // pred_check_branch
        %107 = sbr.rel (%p105) target = $region20
      $region19: #{tpu_custom_call.1} parent=15 // pred_region
        %s108 = smul.u32 144, %s8
        %p109 = scmp.lt.s32.totalorder %s108, 287
        %s110 = scalar_select %p109, %s108, 287
        %s111 = smul.addr %s110, 8
        %s112 = scalar_lea.vmem %s0, %s111
        %s113 = smul.u32 144, %s8
      $region20: #{tpu_custom_call.1} parent=15 // pred_fallthru
        _
      // Predicated region
      $region21: #{tpu_custom_call.1} parent=15 // pred_check
        %p114 = pneg %p54
      $region22: #{tpu_custom_call.1} parent=15 // pred_check_branch
        %116 = sbr.rel (%p114) target = $region24
      $region23: #{tpu_custom_call.1} parent=15 // pred_region
        %s117 = smul.u32 144, %s8
        %p118 = scmp.lt.s32.totalorder %s117, 287
        %s119 = scalar_select %p118, %s117, 287
        %s120 = smul.addr %s119, 8
        %s121 = scalar_lea.vmem %s1, %s120
        %s122 = smul.u32 144, %s8
      $region24: #{tpu_custom_call.1} parent=15 // pred_fallthru
        _
    $region16: #{tpu_custom_call.1} parent=5 // pred_fallthru
      _
    %p123 = scmp.le.s32.totalorder 1, %s8
    %p124 = scmp.lt.s32.totalorder %s8, 3
    %p125 = pnand %p123, %p124
    %p126 = pneg %p125
    // Predicated region
    $region25: #{tpu_custom_call.1} parent=5 // pred_check
      _
    $region26: #{tpu_custom_call.1} parent=5 // pred_check_branch
      %128 = sbr.rel (%p125) target = $region28
    $region27: #{tpu_custom_call.1} parent=5 // pred_region
      %s129 = ssub.s32 %s8, 1
      %s130 = smul.u32 144, %s13
      %p131 = scmp.lt.s32.totalorder %s130, 287
      %s132 = scalar_select %p131, %s130, 287
      %s133 = smul.addr %s132, 8
      %s134 = scalar_lea.vmem %s0, %s133
      %p135 = pneg %p34
      %p136 = pneg %p31
      %s137 = smul.u32 144, %s13
      %p138 = scmp.lt.s32.totalorder %s137, 287
      %s139 = scalar_select %p138, %s137, 287
      %s140 = smul.addr %s139, 8
      %s141 = scalar_lea.vmem %s1, %s140
      %p142 = pneg %p60
      %p143 = pneg %p57
      %p144 = pneg %p86
      %p145 = pneg %p83
      %s146 = smul.u32 144, %s13
      %p147 = scmp.lt.s32.totalorder %s146, 287
      %s148 = scalar_select %p147, %s146, 287
      %s149 = smul.addr %s148, 8
      %s150 = scalar_lea.vmem %s2, %s149
      %s151 = smul.u32 144, %s13
      %p152 = scmp.lt.s32.totalorder %s151, 287
      %s153 = scalar_select %p152, %s151, 287
      %s154 = smul.addr %s153, 8
      %s155 = scalar_lea.vmem %s0, %s154
      %s156 = smul.u32 144, %s13
      %s157 = smul.u32 144, %s13
      %p158 = scmp.lt.s32.totalorder %s157, 287
      %s159 = scalar_select %p158, %s157, 287
      %s160 = smul.addr %s159, 8
      %s161 = scalar_lea.vmem %s1, %s160
      %s162 = smul.u32 144, %s13
      %s163 = smul.u32 144, %s13
      %p164 = scmp.lt.s32.totalorder %s163, 287
      %s165 = scalar_select %p164, %s163, 287
      %s166 = smul.addr %s165, 8
      %s167 = scalar_lea.vmem %s2, %s166
      %s168 = smul.u32 144, %s13
      %v169 = vld [vmem:[%s155] sm:$0xff]
      %v170 = vld [vmem:[%s155 + $0x8] sm:$0xff]
      %v171 = vld [vmem:[%s155 + $0x10] sm:$0xff]
      %v172 = vld [vmem:[%s155 + $0x18] sm:$0xff]
      %v173 = vld [vmem:[%s155 + $0x20] sm:$0xff]
      %v174 = vld [vmem:[%s155 + $0x28] sm:$0xff]
      %v175 = vld [vmem:[%s155 + $0x30] sm:$0xff]
      %v176 = vld [vmem:[%s155 + $0x38] sm:$0xff]
      %v177 = vld [vmem:[%s155 + $0x40] sm:$0xff]
      %v178 = vld [vmem:[%s155 + $0x48] sm:$0xff]
      %v179 = vld [vmem:[%s155 + $0x50] sm:$0xff]
      %v180 = vld [vmem:[%s155 + $0x58] sm:$0xff]
      %v181 = vld [vmem:[%s155 + $0x60] sm:$0xff]
      %v182 = vld [vmem:[%s155 + $0x68] sm:$0xff]
      %v183 = vld [vmem:[%s155 + $0x70] sm:$0xff]
      %v184 = vld [vmem:[%s155 + $0x78] sm:$0xff]
      %v185 = vld [vmem:[%s155 + $0x80] sm:$0xff]
      %v186 = vld [vmem:[%s155 + $0x88] sm:$0xff]
      %v187 = vld [vmem:[%s155 + $0x90] sm:$0xff]
      %v188 = vld [vmem:[%s155 + $0x98] sm:$0xff]
      %v189 = vld [vmem:[%s155 + $0xa0] sm:$0xff]
      %v190 = vld [vmem:[%s155 + $0xa8] sm:$0xff]
      %v191 = vld [vmem:[%s155 + $0xb0] sm:$0xff]
      %v192 = vld [vmem:[%s155 + $0xb8] sm:$0xff]
      %v193 = vld [vmem:[%s155 + $0xc0] sm:$0xff]
      %v194 = vld [vmem:[%s155 + $0xc8] sm:$0xff]
      %v195 = vld [vmem:[%s155 + $0xd0] sm:$0xff]
      %v196 = vld [vmem:[%s155 + $0xd8] sm:$0xff]
      %v197 = vld [vmem:[%s155 + $0xe0] sm:$0xff]
      %v198 = vld [vmem:[%s155 + $0xe8] sm:$0xff]
      %v199 = vld [vmem:[%s155 + $0xf0] sm:$0xff]
      %v200 = vld [vmem:[%s155 + $0xf8] sm:$0xff]
      %v201 = vld [vmem:[%s155 + $0x100] sm:$0xff]
      %v202 = vld [vmem:[%s155 + $0x108] sm:$0xff]
      %v203 = vld [vmem:[%s155 + $0x110] sm:$0xff]
      %v204 = vld [vmem:[%s155 + $0x118] sm:$0xff]
      %v205 = vld [vmem:[%s155 + $0x120] sm:$0xff]
      %v206 = vld [vmem:[%s155 + $0x128] sm:$0xff]
      %v207 = vld [vmem:[%s155 + $0x130] sm:$0xff]
      %v208 = vld [vmem:[%s155 + $0x138] sm:$0xff]
      %v209 = vld [vmem:[%s155 + $0x140] sm:$0xff]
      %v210 = vld [vmem:[%s155 + $0x148] sm:$0xff]
      %v211 = vld [vmem:[%s155 + $0x150] sm:$0xff]
      %v212 = vld [vmem:[%s155 + $0x158] sm:$0xff]
      %v213 = vld [vmem:[%s155 + $0x160] sm:$0xff]
      %v214 = vld [vmem:[%s155 + $0x168] sm:$0xff]
      %v215 = vld [vmem:[%s155 + $0x170] sm:$0xff]
      %v216 = vld [vmem:[%s155 + $0x178] sm:$0xff]
      %v217 = vld [vmem:[%s155 + $0x180] sm:$0xff]
      %v218 = vld [vmem:[%s155 + $0x188] sm:$0xff]
      %v219 = vld [vmem:[%s155 + $0x190] sm:$0xff]
      %v220 = vld [vmem:[%s155 + $0x198] sm:$0xff]
      %v221 = vld [vmem:[%s155 + $0x1a0] sm:$0xff]
      %v222 = vld [vmem:[%s155 + $0x1a8] sm:$0xff]
      %v223 = vld [vmem:[%s155 + $0x1b0] sm:$0xff]
      %v224 = vld [vmem:[%s155 + $0x1b8] sm:$0xff]
      %v225 = vld [vmem:[%s155 + $0x1c0] sm:$0xff]
      %v226 = vld [vmem:[%s155 + $0x1c8] sm:$0xff]
      %v227 = vld [vmem:[%s155 + $0x1d0] sm:$0xff]
      %v228 = vld [vmem:[%s155 + $0x1d8] sm:$0xff]
      %v229 = vld [vmem:[%s155 + $0x1e0] sm:$0xff]
      %v230 = vld [vmem:[%s155 + $0x1e8] sm:$0xff]
      %v231 = vld [vmem:[%s155 + $0x1f0] sm:$0xff]
      %v232 = vld [vmem:[%s155 + $0x1f8] sm:$0xff]
      %v233 = vld [vmem:[%s155 + $0x200] sm:$0xff]
      %v234 = vld [vmem:[%s155 + $0x208] sm:$0xff]
      %v235 = vld [vmem:[%s155 + $0x210] sm:$0xff]
      %v236 = vld [vmem:[%s155 + $0x218] sm:$0xff]
      %v237 = vld [vmem:[%s155 + $0x220] sm:$0xff]
      %v238 = vld [vmem:[%s155 + $0x228] sm:$0xff]
      %v239 = vld [vmem:[%s155 + $0x230] sm:$0xff]
      %v240 = vld [vmem:[%s155 + $0x238] sm:$0xff]
      %v241 = vld [vmem:[%s155 + $0x240] sm:$0xff]
      %v242 = vld [vmem:[%s155 + $0x248] sm:$0xff]
      %v243 = vld [vmem:[%s155 + $0x250] sm:$0xff]
      %v244 = vld [vmem:[%s155 + $0x258] sm:$0xff]
      %v245 = vld [vmem:[%s155 + $0x260] sm:$0xff]
      %v246 = vld [vmem:[%s155 + $0x268] sm:$0xff]
      %v247 = vld [vmem:[%s155 + $0x270] sm:$0xff]
      %v248 = vld [vmem:[%s155 + $0x278] sm:$0xff]
      %v249 = vld [vmem:[%s155 + $0x280] sm:$0xff]
      %v250 = vld [vmem:[%s155 + $0x288] sm:$0xff]
      %v251 = vld [vmem:[%s155 + $0x290] sm:$0xff]
      %v252 = vld [vmem:[%s155 + $0x298] sm:$0xff]
      %v253 = vld [vmem:[%s155 + $0x2a0] sm:$0xff]
      %v254 = vld [vmem:[%s155 + $0x2a8] sm:$0xff]
      %v255 = vld [vmem:[%s155 + $0x2b0] sm:$0xff]
      %v256 = vld [vmem:[%s155 + $0x2b8] sm:$0xff]
      %v257 = vld [vmem:[%s155 + $0x2c0] sm:$0xff]
      %v258 = vld [vmem:[%s155 + $0x2c8] sm:$0xff]
      %v259 = vld [vmem:[%s155 + $0x2d0] sm:$0xff]
      %v260 = vld [vmem:[%s155 + $0x2d8] sm:$0xff]
      %v261 = vld [vmem:[%s155 + $0x2e0] sm:$0xff]
      %v262 = vld [vmem:[%s155 + $0x2e8] sm:$0xff]
      %v263 = vld [vmem:[%s155 + $0x2f0] sm:$0xff]
      %v264 = vld [vmem:[%s155 + $0x2f8] sm:$0xff]
      %v265 = vld [vmem:[%s155 + $0x300] sm:$0xff]
      %v266 = vld [vmem:[%s155 + $0x308] sm:$0xff]
      %v267 = vld [vmem:[%s155 + $0x310] sm:$0xff]
      %v268 = vld [vmem:[%s155 + $0x318] sm:$0xff]
      %v269 = vld [vmem:[%s155 + $0x320] sm:$0xff]
      %v270 = vld [vmem:[%s155 + $0x328] sm:$0xff]
      %v271 = vld [vmem:[%s155 + $0x330] sm:$0xff]
      %v272 = vld [vmem:[%s155 + $0x338] sm:$0xff]
      %v273 = vld [vmem:[%s155 + $0x340] sm:$0xff]
      %v274 = vld [vmem:[%s155 + $0x348] sm:$0xff]
      %v275 = vld [vmem:[%s155 + $0x350] sm:$0xff]
      %v276 = vld [vmem:[%s155 + $0x358] sm:$0xff]
      %v277 = vld [vmem:[%s155 + $0x360] sm:$0xff]
      %v278 = vld [vmem:[%s155 + $0x368] sm:$0xff]
      %v279 = vld [vmem:[%s155 + $0x370] sm:$0xff]
      %v280 = vld [vmem:[%s155 + $0x378] sm:$0xff]
      %v281 = vld [vmem:[%s155 + $0x380] sm:$0xff]
      %v282 = vld [vmem:[%s155 + $0x388] sm:$0xff]
      %v283 = vld [vmem:[%s155 + $0x390] sm:$0xff]
      %v284 = vld [vmem:[%s155 + $0x398] sm:$0xff]
      %v285 = vld [vmem:[%s155 + $0x3a0] sm:$0xff]
      %v286 = vld [vmem:[%s155 + $0x3a8] sm:$0xff]
      %v287 = vld [vmem:[%s155 + $0x3b0] sm:$0xff]
      %v288 = vld [vmem:[%s155 + $0x3b8] sm:$0xff]
      %v289 = vld [vmem:[%s155 + $0x3c0] sm:$0xff]
      %v290 = vld [vmem:[%s155 + $0x3c8] sm:$0xff]
      %v291 = vld [vmem:[%s155 + $0x3d0] sm:$0xff]
      %v292 = vld [vmem:[%s155 + $0x3d8] sm:$0xff]
      %v293 = vld [vmem:[%s155 + $0x3e0] sm:$0xff]
      %v294 = vld [vmem:[%s155 + $0x3e8] sm:$0xff]
      %v295 = vld [vmem:[%s155 + $0x3f0] sm:$0xff]
      %v296 = vld [vmem:[%s155 + $0x3f8] sm:$0xff]
      %v297 = vld [vmem:[%s155 + $0x400] sm:$0xff]
      %v298 = vld [vmem:[%s155 + $0x408] sm:$0xff]
      %v299 = vld [vmem:[%s155 + $0x410] sm:$0xff]
      %v300 = vld [vmem:[%s155 + $0x418] sm:$0xff]
      %v301 = vld [vmem:[%s155 + $0x420] sm:$0xff]
      %v302 = vld [vmem:[%s155 + $0x428] sm:$0xff]
      %v303 = vld [vmem:[%s155 + $0x430] sm:$0xff]
      %v304 = vld [vmem:[%s155 + $0x438] sm:$0xff]
      %v305 = vld [vmem:[%s155 + $0x440] sm:$0xff]
      %v306 = vld [vmem:[%s155 + $0x448] sm:$0xff]
      %v307 = vld [vmem:[%s155 + $0x450] sm:$0xff]
      %v308 = vld [vmem:[%s155 + $0x458] sm:$0xff]
      %v309 = vld [vmem:[%s155 + $0x460] sm:$0xff]
      %v310 = vld [vmem:[%s155 + $0x468] sm:$0xff]
      %v311 = vld [vmem:[%s155 + $0x470] sm:$0xff]
      %v312 = vld [vmem:[%s155 + $0x478] sm:$0xff]
      %vm313 = vcmask 400384
      %v314 = vsel %vm313, %v169, 0.0
      %315 = vadd.xlane.f32.xlu0 %v314
      %v316 = vpop.xlane.xlu0 %315
      %v317 = vsel %vm313, %v170, 0.0
      %318 = vadd.xlane.f32.xlu0 %v317
      %v319 = vpop.xlane.xlu0 %318
      %v320 = vsel %vm313, %v171, 0.0
      %321 = vadd.xlane.f32.xlu0 %v320
      %v322 = vpop.xlane.xlu0 %321
      %v323 = vsel %vm313, %v172, 0.0
      %324 = vadd.xlane.f32.xlu0 %v323
      %v325 = vpop.xlane.xlu0 %324
      %v326 = vsel %vm313, %v173, 0.0
      %327 = vadd.xlane.f32.xlu0 %v326
      %v328 = vpop.xlane.xlu0 %327
      %v329 = vsel %vm313, %v174, 0.0
      %330 = vadd.xlane.f32.xlu0 %v329
      %v331 = vpop.xlane.xlu0 %330
      %v332 = vsel %vm313, %v175, 0.0
      %333 = vadd.xlane.f32.xlu0 %v332
      %v334 = vpop.xlane.xlu0 %333
      %v335 = vsel %vm313, %v176, 0.0
      %336 = vadd.xlane.f32.xlu0 %v335
      %v337 = vpop.xlane.xlu0 %336
      %v338 = vsel %vm313, %v177, 0.0
      %339 = vadd.xlane.f32.xlu0 %v338
      %v340 = vpop.xlane.xlu0 %339
      %v341 = vsel %vm313, %v178, 0.0
      %342 = vadd.xlane.f32.xlu0 %v341
      %v343 = vpop.xlane.xlu0 %342
      %v344 = vsel %vm313, %v179, 0.0
      %345 = vadd.xlane.f32.xlu0 %v344
      %v346 = vpop.xlane.xlu0 %345
      %v347 = vsel %vm313, %v180, 0.0
      %348 = vadd.xlane.f32.xlu0 %v347
      %v349 = vpop.xlane.xlu0 %348
      %v350 = vsel %vm313, %v181, 0.0
      %351 = vadd.xlane.f32.xlu0 %v350
      %v352 = vpop.xlane.xlu0 %351
      %v353 = vsel %vm313, %v182, 0.0
      %354 = vadd.xlane.f32.xlu0 %v353
      %v355 = vpop.xlane.xlu0 %354
      %v356 = vsel %vm313, %v183, 0.0
      %357 = vadd.xlane.f32.xlu0 %v356
      %v358 = vpop.xlane.xlu0 %357
      %v359 = vsel %vm313, %v184, 0.0
      %360 = vadd.xlane.f32.xlu0 %v359
      %v361 = vpop.xlane.xlu0 %360
      %v362 = vsel %vm313, %v185, 0.0
      %363 = vadd.xlane.f32.xlu0 %v362
      %v364 = vpop.xlane.xlu0 %363
      %v365 = vsel %vm313, %v186, 0.0
      %366 = vadd.xlane.f32.xlu0 %v365
      %v367 = vpop.xlane.xlu0 %366
      %v368 = vsel %vm313, %v187, 0.0
      %369 = vadd.xlane.f32.xlu0 %v368
      %v370 = vpop.xlane.xlu0 %369
      %v371 = vsel %vm313, %v188, 0.0
      %372 = vadd.xlane.f32.xlu0 %v371
      %v373 = vpop.xlane.xlu0 %372
      %v374 = vsel %vm313, %v189, 0.0
      %375 = vadd.xlane.f32.xlu0 %v374
      %v376 = vpop.xlane.xlu0 %375
      %v377 = vsel %vm313, %v190, 0.0
      %378 = vadd.xlane.f32.xlu0 %v377
      %v379 = vpop.xlane.xlu0 %378
      %v380 = vsel %vm313, %v191, 0.0
      %381 = vadd.xlane.f32.xlu0 %v380
      %v382 = vpop.xlane.xlu0 %381
      %v383 = vsel %vm313, %v192, 0.0
      %384 = vadd.xlane.f32.xlu0 %v383
      %v385 = vpop.xlane.xlu0 %384
      %v386 = vsel %vm313, %v193, 0.0
      %387 = vadd.xlane.f32.xlu0 %v386
      %v388 = vpop.xlane.xlu0 %387
      %v389 = vsel %vm313, %v194, 0.0
      %390 = vadd.xlane.f32.xlu0 %v389
      %v391 = vpop.xlane.xlu0 %390
      %v392 = vsel %vm313, %v195, 0.0
      %393 = vadd.xlane.f32.xlu0 %v392
      %v394 = vpop.xlane.xlu0 %393
      %v395 = vsel %vm313, %v196, 0.0
      %396 = vadd.xlane.f32.xlu0 %v395
      %v397 = vpop.xlane.xlu0 %396
      %v398 = vsel %vm313, %v197, 0.0
      %399 = vadd.xlane.f32.xlu0 %v398
      %v400 = vpop.xlane.xlu0 %399
      %v401 = vsel %vm313, %v198, 0.0
      %402 = vadd.xlane.f32.xlu0 %v401
      %v403 = vpop.xlane.xlu0 %402
      %v404 = vsel %vm313, %v199, 0.0
      %405 = vadd.xlane.f32.xlu0 %v404
      %v406 = vpop.xlane.xlu0 %405
      %v407 = vsel %vm313, %v200, 0.0
      %408 = vadd.xlane.f32.xlu0 %v407
      %v409 = vpop.xlane.xlu0 %408
      %v410 = vsel %vm313, %v201, 0.0
      %411 = vadd.xlane.f32.xlu0 %v410
      %v412 = vpop.xlane.xlu0 %411
      %v413 = vsel %vm313, %v202, 0.0
      %414 = vadd.xlane.f32.xlu0 %v413
      %v415 = vpop.xlane.xlu0 %414
      %v416 = vsel %vm313, %v203, 0.0
      %417 = vadd.xlane.f32.xlu0 %v416
      %v418 = vpop.xlane.xlu0 %417
      %v419 = vsel %vm313, %v204, 0.0
      %420 = vadd.xlane.f32.xlu0 %v419
      %v421 = vpop.xlane.xlu0 %420
      %v422 = vsel %vm313, %v205, 0.0
      %423 = vadd.xlane.f32.xlu0 %v422
      %v424 = vpop.xlane.xlu0 %423
      %v425 = vsel %vm313, %v206, 0.0
      %426 = vadd.xlane.f32.xlu0 %v425
      %v427 = vpop.xlane.xlu0 %426
      %v428 = vsel %vm313, %v207, 0.0
      %429 = vadd.xlane.f32.xlu0 %v428
      %v430 = vpop.xlane.xlu0 %429
      %v431 = vsel %vm313, %v208, 0.0
      %432 = vadd.xlane.f32.xlu0 %v431
      %v433 = vpop.xlane.xlu0 %432
      %v434 = vsel %vm313, %v209, 0.0
      %435 = vadd.xlane.f32.xlu0 %v434
      %v436 = vpop.xlane.xlu0 %435
      %v437 = vsel %vm313, %v210, 0.0
      %438 = vadd.xlane.f32.xlu0 %v437
      %v439 = vpop.xlane.xlu0 %438
      %v440 = vsel %vm313, %v211, 0.0
      %441 = vadd.xlane.f32.xlu0 %v440
      %v442 = vpop.xlane.xlu0 %441
      %v443 = vsel %vm313, %v212, 0.0
      %444 = vadd.xlane.f32.xlu0 %v443
      %v445 = vpop.xlane.xlu0 %444
      %v446 = vsel %vm313, %v213, 0.0
      %447 = vadd.xlane.f32.xlu0 %v446
      %v448 = vpop.xlane.xlu0 %447
      %v449 = vsel %vm313, %v214, 0.0
      %450 = vadd.xlane.f32.xlu0 %v449
      %v451 = vpop.xlane.xlu0 %450
      %v452 = vsel %vm313, %v215, 0.0
      %453 = vadd.xlane.f32.xlu0 %v452
      %v454 = vpop.xlane.xlu0 %453
      %v455 = vsel %vm313, %v216, 0.0
      %456 = vadd.xlane.f32.xlu0 %v455
      %v457 = vpop.xlane.xlu0 %456
      %v458 = vsel %vm313, %v217, 0.0
      %459 = vadd.xlane.f32.xlu0 %v458
      %v460 = vpop.xlane.xlu0 %459
      %v461 = vsel %vm313, %v218, 0.0
      %462 = vadd.xlane.f32.xlu0 %v461
      %v463 = vpop.xlane.xlu0 %462
      %v464 = vsel %vm313, %v219, 0.0
      %465 = vadd.xlane.f32.xlu0 %v464
      %v466 = vpop.xlane.xlu0 %465
      %v467 = vsel %vm313, %v220, 0.0
      %468 = vadd.xlane.f32.xlu0 %v467
      %v469 = vpop.xlane.xlu0 %468
      %v470 = vsel %vm313, %v221, 0.0
      %471 = vadd.xlane.f32.xlu0 %v470
      %v472 = vpop.xlane.xlu0 %471
      %v473 = vsel %vm313, %v222, 0.0
      %474 = vadd.xlane.f32.xlu0 %v473
      %v475 = vpop.xlane.xlu0 %474
      %v476 = vsel %vm313, %v223, 0.0
      %477 = vadd.xlane.f32.xlu0 %v476
      %v478 = vpop.xlane.xlu0 %477
      %v479 = vsel %vm313, %v224, 0.0
      %480 = vadd.xlane.f32.xlu0 %v479
      %v481 = vpop.xlane.xlu0 %480
      %v482 = vsel %vm313, %v225, 0.0
      %483 = vadd.xlane.f32.xlu0 %v482
      %v484 = vpop.xlane.xlu0 %483
      %v485 = vsel %vm313, %v226, 0.0
      %486 = vadd.xlane.f32.xlu0 %v485
      %v487 = vpop.xlane.xlu0 %486
      %v488 = vsel %vm313, %v227, 0.0
      %489 = vadd.xlane.f32.xlu0 %v488
      %v490 = vpop.xlane.xlu0 %489
      %v491 = vsel %vm313, %v228, 0.0
      %492 = vadd.xlane.f32.xlu0 %v491
      %v493 = vpop.xlane.xlu0 %492
      %v494 = vsel %vm313, %v229, 0.0
      %495 = vadd.xlane.f32.xlu0 %v494
      %v496 = vpop.xlane.xlu0 %495
      %v497 = vsel %vm313, %v230, 0.0
      %498 = vadd.xlane.f32.xlu0 %v497
      %v499 = vpop.xlane.xlu0 %498
      %v500 = vsel %vm313, %v231, 0.0
      %501 = vadd.xlane.f32.xlu0 %v500
      %v502 = vpop.xlane.xlu0 %501
      %v503 = vsel %vm313, %v232, 0.0
      %504 = vadd.xlane.f32.xlu0 %v503
      %v505 = vpop.xlane.xlu0 %504
      %v506 = vsel %vm313, %v233, 0.0
      %507 = vadd.xlane.f32.xlu0 %v506
      %v508 = vpop.xlane.xlu0 %507
      %v509 = vsel %vm313, %v234, 0.0
      %510 = vadd.xlane.f32.xlu0 %v509
      %v511 = vpop.xlane.xlu0 %510
      %v512 = vsel %vm313, %v235, 0.0
      %513 = vadd.xlane.f32.xlu0 %v512
      %v514 = vpop.xlane.xlu0 %513
      %v515 = vsel %vm313, %v236, 0.0
      %516 = vadd.xlane.f32.xlu0 %v515
      %v517 = vpop.xlane.xlu0 %516
      %v518 = vsel %vm313, %v237, 0.0
      %519 = vadd.xlane.f32.xlu0 %v518
      %v520 = vpop.xlane.xlu0 %519
      %v521 = vsel %vm313, %v238, 0.0
      %522 = vadd.xlane.f32.xlu0 %v521
      %v523 = vpop.xlane.xlu0 %522
      %v524 = vsel %vm313, %v239, 0.0
      %525 = vadd.xlane.f32.xlu0 %v524
      %v526 = vpop.xlane.xlu0 %525
      %v527 = vsel %vm313, %v240, 0.0
      %528 = vadd.xlane.f32.xlu0 %v527
      %v529 = vpop.xlane.xlu0 %528
      %v530 = vsel %vm313, %v241, 0.0
      %531 = vadd.xlane.f32.xlu0 %v530
      %v532 = vpop.xlane.xlu0 %531
      %v533 = vsel %vm313, %v242, 0.0
      %534 = vadd.xlane.f32.xlu0 %v533
      %v535 = vpop.xlane.xlu0 %534
      %v536 = vsel %vm313, %v243, 0.0
      %537 = vadd.xlane.f32.xlu0 %v536
      %v538 = vpop.xlane.xlu0 %537
      %v539 = vsel %vm313, %v244, 0.0
      %540 = vadd.xlane.f32.xlu0 %v539
      %v541 = vpop.xlane.xlu0 %540
      %v542 = vsel %vm313, %v245, 0.0
      %543 = vadd.xlane.f32.xlu0 %v542
      %v544 = vpop.xlane.xlu0 %543
      %v545 = vsel %vm313, %v246, 0.0
      %546 = vadd.xlane.f32.xlu0 %v545
      %v547 = vpop.xlane.xlu0 %546
      %v548 = vsel %vm313, %v247, 0.0
      %549 = vadd.xlane.f32.xlu0 %v548
      %v550 = vpop.xlane.xlu0 %549
      %v551 = vsel %vm313, %v248, 0.0
      %552 = vadd.xlane.f32.xlu0 %v551
      %v553 = vpop.xlane.xlu0 %552
      %v554 = vsel %vm313, %v249, 0.0
      %555 = vadd.xlane.f32.xlu0 %v554
      %v556 = vpop.xlane.xlu0 %555
      %v557 = vsel %vm313, %v250, 0.0
      %558 = vadd.xlane.f32.xlu0 %v557
      %v559 = vpop.xlane.xlu0 %558
      %v560 = vsel %vm313, %v251, 0.0
      %561 = vadd.xlane.f32.xlu0 %v560
      %v562 = vpop.xlane.xlu0 %561
      %v563 = vsel %vm313, %v252, 0.0
      %564 = vadd.xlane.f32.xlu0 %v563
      %v565 = vpop.xlane.xlu0 %564
      %v566 = vsel %vm313, %v253, 0.0
      %567 = vadd.xlane.f32.xlu0 %v566
      %v568 = vpop.xlane.xlu0 %567
      %v569 = vsel %vm313, %v254, 0.0
      %570 = vadd.xlane.f32.xlu0 %v569
      %v571 = vpop.xlane.xlu0 %570
      %v572 = vsel %vm313, %v255, 0.0
      %573 = vadd.xlane.f32.xlu0 %v572
      %v574 = vpop.xlane.xlu0 %573
      %v575 = vsel %vm313, %v256, 0.0
      %576 = vadd.xlane.f32.xlu0 %v575
      %v577 = vpop.xlane.xlu0 %576
      %v578 = vsel %vm313, %v257, 0.0
      %579 = vadd.xlane.f32.xlu0 %v578
      %v580 = vpop.xlane.xlu0 %579
      %v581 = vsel %vm313, %v258, 0.0
      %582 = vadd.xlane.f32.xlu0 %v581
      %v583 = vpop.xlane.xlu0 %582
      %v584 = vsel %vm313, %v259, 0.0
      %585 = vadd.xlane.f32.xlu0 %v584
      %v586 = vpop.xlane.xlu0 %585
      %v587 = vsel %vm313, %v260, 0.0
      %588 = vadd.xlane.f32.xlu0 %v587
      %v589 = vpop.xlane.xlu0 %588
      %v590 = vsel %vm313, %v261, 0.0
      %591 = vadd.xlane.f32.xlu0 %v590
      %v592 = vpop.xlane.xlu0 %591
      %v593 = vsel %vm313, %v262, 0.0
      %594 = vadd.xlane.f32.xlu0 %v593
      %v595 = vpop.xlane.xlu0 %594
      %v596 = vsel %vm313, %v263, 0.0
      %597 = vadd.xlane.f32.xlu0 %v596
      %v598 = vpop.xlane.xlu0 %597
      %v599 = vsel %vm313, %v264, 0.0
      %600 = vadd.xlane.f32.xlu0 %v599
      %v601 = vpop.xlane.xlu0 %600
      %v602 = vsel %vm313, %v265, 0.0
      %603 = vadd.xlane.f32.xlu0 %v602
      %v604 = vpop.xlane.xlu0 %603
      %v605 = vsel %vm313, %v266, 0.0
      %606 = vadd.xlane.f32.xlu0 %v605
      %v607 = vpop.xlane.xlu0 %606
      %v608 = vsel %vm313, %v267, 0.0
      %609 = vadd.xlane.f32.xlu0 %v608
      %v610 = vpop.xlane.xlu0 %609
      %v611 = vsel %vm313, %v268, 0.0
      %612 = vadd.xlane.f32.xlu0 %v611
      %v613 = vpop.xlane.xlu0 %612
      %v614 = vsel %vm313, %v269, 0.0
      %615 = vadd.xlane.f32.xlu0 %v614
      %v616 = vpop.xlane.xlu0 %615
      %v617 = vsel %vm313, %v270, 0.0
      %618 = vadd.xlane.f32.xlu0 %v617
      %v619 = vpop.xlane.xlu0 %618
      %v620 = vsel %vm313, %v271, 0.0
      %621 = vadd.xlane.f32.xlu0 %v620
      %v622 = vpop.xlane.xlu0 %621
      %v623 = vsel %vm313, %v272, 0.0
      %624 = vadd.xlane.f32.xlu0 %v623
      %v625 = vpop.xlane.xlu0 %624
      %v626 = vsel %vm313, %v273, 0.0
      %627 = vadd.xlane.f32.xlu0 %v626
      %v628 = vpop.xlane.xlu0 %627
      %v629 = vsel %vm313, %v274, 0.0
      %630 = vadd.xlane.f32.xlu0 %v629
      %v631 = vpop.xlane.xlu0 %630
      %v632 = vsel %vm313, %v275, 0.0
      %633 = vadd.xlane.f32.xlu0 %v632
      %v634 = vpop.xlane.xlu0 %633
      %v635 = vsel %vm313, %v276, 0.0
      %636 = vadd.xlane.f32.xlu0 %v635
      %v637 = vpop.xlane.xlu0 %636
      %v638 = vsel %vm313, %v277, 0.0
      %639 = vadd.xlane.f32.xlu0 %v638
      %v640 = vpop.xlane.xlu0 %639
      %v641 = vsel %vm313, %v278, 0.0
      %642 = vadd.xlane.f32.xlu0 %v641
      %v643 = vpop.xlane.xlu0 %642
      %v644 = vsel %vm313, %v279, 0.0
      %645 = vadd.xlane.f32.xlu0 %v644
      %v646 = vpop.xlane.xlu0 %645
      %v647 = vsel %vm313, %v280, 0.0
      %648 = vadd.xlane.f32.xlu0 %v647
      %v649 = vpop.xlane.xlu0 %648
      %v650 = vsel %vm313, %v281, 0.0
      %651 = vadd.xlane.f32.xlu0 %v650
      %v652 = vpop.xlane.xlu0 %651
      %v653 = vsel %vm313, %v282, 0.0
      %654 = vadd.xlane.f32.xlu0 %v653
      %v655 = vpop.xlane.xlu0 %654
      %v656 = vsel %vm313, %v283, 0.0
      %657 = vadd.xlane.f32.xlu0 %v656
      %v658 = vpop.xlane.xlu0 %657
      %v659 = vsel %vm313, %v284, 0.0
      %660 = vadd.xlane.f32.xlu0 %v659
      %v661 = vpop.xlane.xlu0 %660
      %v662 = vsel %vm313, %v285, 0.0
      %663 = vadd.xlane.f32.xlu0 %v662
      %v664 = vpop.xlane.xlu0 %663
      %v665 = vsel %vm313, %v286, 0.0
      %666 = vadd.xlane.f32.xlu0 %v665
      %v667 = vpop.xlane.xlu0 %666
      %v668 = vsel %vm313, %v287, 0.0
      %669 = vadd.xlane.f32.xlu0 %v668
      %v670 = vpop.xlane.xlu0 %669
      %v671 = vsel %vm313, %v288, 0.0
      %672 = vadd.xlane.f32.xlu0 %v671
      %v673 = vpop.xlane.xlu0 %672
      %v674 = vsel %vm313, %v289, 0.0
      %675 = vadd.xlane.f32.xlu0 %v674
      %v676 = vpop.xlane.xlu0 %675
      %v677 = vsel %vm313, %v290, 0.0
      %678 = vadd.xlane.f32.xlu0 %v677
      %v679 = vpop.xlane.xlu0 %678
      %v680 = vsel %vm313, %v291, 0.0
      %681 = vadd.xlane.f32.xlu0 %v680
      %v682 = vpop.xlane.xlu0 %681
      %v683 = vsel %vm313, %v292, 0.0
      %684 = vadd.xlane.f32.xlu0 %v683
      %v685 = vpop.xlane.xlu0 %684
      %v686 = vsel %vm313, %v293, 0.0
      %687 = vadd.xlane.f32.xlu0 %v686
      %v688 = vpop.xlane.xlu0 %687
      %v689 = vsel %vm313, %v294, 0.0
      %690 = vadd.xlane.f32.xlu0 %v689
      %v691 = vpop.xlane.xlu0 %690
      %v692 = vsel %vm313, %v295, 0.0
      %693 = vadd.xlane.f32.xlu0 %v692
      %v694 = vpop.xlane.xlu0 %693
      %v695 = vsel %vm313, %v296, 0.0
      %696 = vadd.xlane.f32.xlu0 %v695
      %v697 = vpop.xlane.xlu0 %696
      %v698 = vsel %vm313, %v297, 0.0
      %699 = vadd.xlane.f32.xlu0 %v698
      %v700 = vpop.xlane.xlu0 %699
      %v701 = vsel %vm313, %v298, 0.0
      %702 = vadd.xlane.f32.xlu0 %v701
      %v703 = vpop.xlane.xlu0 %702
      %v704 = vsel %vm313, %v299, 0.0
      %705 = vadd.xlane.f32.xlu0 %v704
      %v706 = vpop.xlane.xlu0 %705
      %v707 = vsel %vm313, %v300, 0.0
      %708 = vadd.xlane.f32.xlu0 %v707
      %v709 = vpop.xlane.xlu0 %708
      %v710 = vsel %vm313, %v301, 0.0
      %711 = vadd.xlane.f32.xlu0 %v710
      %v712 = vpop.xlane.xlu0 %711
      %v713 = vsel %vm313, %v302, 0.0
      %714 = vadd.xlane.f32.xlu0 %v713
      %v715 = vpop.xlane.xlu0 %714
      %v716 = vsel %vm313, %v303, 0.0
      %717 = vadd.xlane.f32.xlu0 %v716
      %v718 = vpop.xlane.xlu0 %717
      %v719 = vsel %vm313, %v304, 0.0
      %720 = vadd.xlane.f32.xlu0 %v719
      %v721 = vpop.xlane.xlu0 %720
      %v722 = vsel %vm313, %v305, 0.0
      %723 = vadd.xlane.f32.xlu0 %v722
      %v724 = vpop.xlane.xlu0 %723
      %v725 = vsel %vm313, %v306, 0.0
      %726 = vadd.xlane.f32.xlu0 %v725
      %v727 = vpop.xlane.xlu0 %726
      %v728 = vsel %vm313, %v307, 0.0
      %729 = vadd.xlane.f32.xlu0 %v728
      %v730 = vpop.xlane.xlu0 %729
      %v731 = vsel %vm313, %v308, 0.0
      %732 = vadd.xlane.f32.xlu0 %v731
      %v733 = vpop.xlane.xlu0 %732
      %v734 = vsel %vm313, %v309, 0.0
      %735 = vadd.xlane.f32.xlu0 %v734
      %v736 = vpop.xlane.xlu0 %735
      %v737 = vsel %vm313, %v310, 0.0
      %738 = vadd.xlane.f32.xlu0 %v737
      %v739 = vpop.xlane.xlu0 %738
      %v740 = vsel %vm313, %v311, 0.0
      %741 = vadd.xlane.f32.xlu0 %v740
      %v742 = vpop.xlane.xlu0 %741
      %v743 = vsel %vm313, %v312, 0.0
      %744 = vadd.xlane.f32.xlu0 %v743
      %v745 = vpop.xlane.xlu0 %744
      %v746 = vmul.f32 %v169, %v169
      %v747 = vmul.f32 %v170, %v170
      %v748 = vmul.f32 %v171, %v171
      %v749 = vmul.f32 %v172, %v172
      %v750 = vmul.f32 %v173, %v173
      %v751 = vmul.f32 %v174, %v174
      %v752 = vmul.f32 %v175, %v175
      %v753 = vmul.f32 %v176, %v176
      %v754 = vmul.f32 %v177, %v177
      %v755 = vmul.f32 %v178, %v178
      %v756 = vmul.f32 %v179, %v179
      %v757 = vmul.f32 %v180, %v180
      %v758 = vmul.f32 %v181, %v181
      %v759 = vmul.f32 %v182, %v182
      %v760 = vmul.f32 %v183, %v183
      %v761 = vmul.f32 %v184, %v184
      %v762 = vmul.f32 %v185, %v185
      %v763 = vmul.f32 %v186, %v186
      %v764 = vmul.f32 %v187, %v187
      %v765 = vmul.f32 %v188, %v188
      %v766 = vmul.f32 %v189, %v189
      %v767 = vmul.f32 %v190, %v190
      %v768 = vmul.f32 %v191, %v191
      %v769 = vmul.f32 %v192, %v192
      %v770 = vmul.f32 %v193, %v193
      %v771 = vmul.f32 %v194, %v194
      %v772 = vmul.f32 %v195, %v195
      %v773 = vmul.f32 %v196, %v196
      %v774 = vmul.f32 %v197, %v197
      %v775 = vmul.f32 %v198, %v198
      %v776 = vmul.f32 %v199, %v199
      %v777 = vmul.f32 %v200, %v200
      %v778 = vmul.f32 %v201, %v201
      %v779 = vmul.f32 %v202, %v202
      %v780 = vmul.f32 %v203, %v203
      %v781 = vmul.f32 %v204, %v204
      %v782 = vmul.f32 %v205, %v205
      %v783 = vmul.f32 %v206, %v206
      %v784 = vmul.f32 %v207, %v207
      %v785 = vmul.f32 %v208, %v208
      %v786 = vmul.f32 %v209, %v209
      %v787 = vmul.f32 %v210, %v210
      %v788 = vmul.f32 %v211, %v211
      %v789 = vmul.f32 %v212, %v212
      %v790 = vmul.f32 %v213, %v213
      %v791 = vmul.f32 %v214, %v214
      %v792 = vmul.f32 %v215, %v215
      %v793 = vmul.f32 %v216, %v216
      %v794 = vmul.f32 %v217, %v217
      %v795 = vmul.f32 %v218, %v218
      %v796 = vmul.f32 %v219, %v219
      %v797 = vmul.f32 %v220, %v220
      %v798 = vmul.f32 %v221, %v221
      %v799 = vmul.f32 %v222, %v222
      %v800 = vmul.f32 %v223, %v223
      %v801 = vmul.f32 %v224, %v224
      %v802 = vmul.f32 %v225, %v225
      %v803 = vmul.f32 %v226, %v226
      %v804 = vmul.f32 %v227, %v227
      %v805 = vmul.f32 %v228, %v228
      %v806 = vmul.f32 %v229, %v229
      %v807 = vmul.f32 %v230, %v230
      %v808 = vmul.f32 %v231, %v231
      %v809 = vmul.f32 %v232, %v232
      %v810 = vmul.f32 %v233, %v233
      %v811 = vmul.f32 %v234, %v234
      %v812 = vmul.f32 %v235, %v235
      %v813 = vmul.f32 %v236, %v236
      %v814 = vmul.f32 %v237, %v237
      %v815 = vmul.f32 %v238, %v238
      %v816 = vmul.f32 %v239, %v239
      %v817 = vmul.f32 %v240, %v240
      %v818 = vmul.f32 %v241, %v241
      %v819 = vmul.f32 %v242, %v242
      %v820 = vmul.f32 %v243, %v243
      %v821 = vmul.f32 %v244, %v244
      %v822 = vmul.f32 %v245, %v245
      %v823 = vmul.f32 %v246, %v246
      %v824 = vmul.f32 %v247, %v247
      %v825 = vmul.f32 %v248, %v248
      %v826 = vmul.f32 %v249, %v249
      %v827 = vmul.f32 %v250, %v250
      %v828 = vmul.f32 %v251, %v251
      %v829 = vmul.f32 %v252, %v252
      %v830 = vmul.f32 %v253, %v253
      %v831 = vmul.f32 %v254, %v254
      %v832 = vmul.f32 %v255, %v255
      %v833 = vmul.f32 %v256, %v256
      %v834 = vmul.f32 %v257, %v257
      %v835 = vmul.f32 %v258, %v258
      %v836 = vmul.f32 %v259, %v259
      %v837 = vmul.f32 %v260, %v260
      %v838 = vmul.f32 %v261, %v261
      %v839 = vmul.f32 %v262, %v262
      %v840 = vmul.f32 %v263, %v263
      %v841 = vmul.f32 %v264, %v264
      %v842 = vmul.f32 %v265, %v265
      %v843 = vmul.f32 %v266, %v266
      %v844 = vmul.f32 %v267, %v267
      %v845 = vmul.f32 %v268, %v268
      %v846 = vmul.f32 %v269, %v269
      %v847 = vmul.f32 %v270, %v270
      %v848 = vmul.f32 %v271, %v271
      %v849 = vmul.f32 %v272, %v272
      %v850 = vmul.f32 %v273, %v273
      %v851 = vmul.f32 %v274, %v274
      %v852 = vmul.f32 %v275, %v275
      %v853 = vmul.f32 %v276, %v276
      %v854 = vmul.f32 %v277, %v277
      %v855 = vmul.f32 %v278, %v278
      %v856 = vmul.f32 %v279, %v279
      %v857 = vmul.f32 %v280, %v280
      %v858 = vmul.f32 %v281, %v281
      %v859 = vmul.f32 %v282, %v282
      %v860 = vmul.f32 %v283, %v283
      %v861 = vmul.f32 %v284, %v284
      %v862 = vmul.f32 %v285, %v285
      %v863 = vmul.f32 %v286, %v286
      %v864 = vmul.f32 %v287, %v287
      %v865 = vmul.f32 %v288, %v288
      %v866 = vmul.f32 %v289, %v289
      %v867 = vmul.f32 %v290, %v290
      %v868 = vmul.f32 %v291, %v291
      %v869 = vmul.f32 %v292, %v292
      %v870 = vmul.f32 %v293, %v293
      %v871 = vmul.f32 %v294, %v294
      %v872 = vmul.f32 %v295, %v295
      %v873 = vmul.f32 %v296, %v296
      %v874 = vmul.f32 %v297, %v297
      %v875 = vmul.f32 %v298, %v298
      %v876 = vmul.f32 %v299, %v299
      %v877 = vmul.f32 %v300, %v300
      %v878 = vmul.f32 %v301, %v301
      %v879 = vmul.f32 %v302, %v302
      %v880 = vmul.f32 %v303, %v303
      %v881 = vmul.f32 %v304, %v304
      %v882 = vmul.f32 %v305, %v305
      %v883 = vmul.f32 %v306, %v306
      %v884 = vmul.f32 %v307, %v307
      %v885 = vmul.f32 %v308, %v308
      %v886 = vmul.f32 %v309, %v309
      %v887 = vmul.f32 %v310, %v310
      %v888 = vmul.f32 %v311, %v311
      %v889 = vmul.f32 %v312, %v312
      %v890 = vsel %vm313, %v746, 0.0
      %891 = vadd.xlane.f32.xlu0 %v890
      %v892 = vpop.xlane.xlu0 %891
      %v893 = vsel %vm313, %v747, 0.0
      %894 = vadd.xlane.f32.xlu0 %v893
      %v895 = vpop.xlane.xlu0 %894
      %v896 = vsel %vm313, %v748, 0.0
      %897 = vadd.xlane.f32.xlu0 %v896
      %v898 = vpop.xlane.xlu0 %897
      %v899 = vsel %vm313, %v749, 0.0
      %900 = vadd.xlane.f32.xlu0 %v899
      %v901 = vpop.xlane.xlu0 %900
      %v902 = vsel %vm313, %v750, 0.0
      %903 = vadd.xlane.f32.xlu0 %v902
      %v904 = vpop.xlane.xlu0 %903
      %v905 = vsel %vm313, %v751, 0.0
      %906 = vadd.xlane.f32.xlu0 %v905
      %v907 = vpop.xlane.xlu0 %906
      %v908 = vsel %vm313, %v752, 0.0
      %909 = vadd.xlane.f32.xlu0 %v908
      %v910 = vpop.xlane.xlu0 %909
      %v911 = vsel %vm313, %v753, 0.0
      %912 = vadd.xlane.f32.xlu0 %v911
      %v913 = vpop.xlane.xlu0 %912
      %v914 = vsel %vm313, %v754, 0.0
      %915 = vadd.xlane.f32.xlu0 %v914
      %v916 = vpop.xlane.xlu0 %915
      %v917 = vsel %vm313, %v755, 0.0
      %918 = vadd.xlane.f32.xlu0 %v917
      %v919 = vpop.xlane.xlu0 %918
      %v920 = vsel %vm313, %v756, 0.0
      %921 = vadd.xlane.f32.xlu0 %v920
      %v922 = vpop.xlane.xlu0 %921
      %v923 = vsel %vm313, %v757, 0.0
      %924 = vadd.xlane.f32.xlu0 %v923
      %v925 = vpop.xlane.xlu0 %924
      %v926 = vsel %vm313, %v758, 0.0
      %927 = vadd.xlane.f32.xlu0 %v926
      %v928 = vpop.xlane.xlu0 %927
      %v929 = vsel %vm313, %v759, 0.0
      %930 = vadd.xlane.f32.xlu0 %v929
      %v931 = vpop.xlane.xlu0 %930
      %v932 = vsel %vm313, %v760, 0.0
      %933 = vadd.xlane.f32.xlu0 %v932
      %v934 = vpop.xlane.xlu0 %933
      %v935 = vsel %vm313, %v761, 0.0
      %936 = vadd.xlane.f32.xlu0 %v935
      %v937 = vpop.xlane.xlu0 %936
      %v938 = vsel %vm313, %v762, 0.0
      %939 = vadd.xlane.f32.xlu0 %v938
      %v940 = vpop.xlane.xlu0 %939
      %v941 = vsel %vm313, %v763, 0.0
      %942 = vadd.xlane.f32.xlu0 %v941
      %v943 = vpop.xlane.xlu0 %942
      %v944 = vsel %vm313, %v764, 0.0
      %945 = vadd.xlane.f32.xlu0 %v944
      %v946 = vpop.xlane.xlu0 %945
      %v947 = vsel %vm313, %v765, 0.0
      %948 = vadd.xlane.f32.xlu0 %v947
      %v949 = vpop.xlane.xlu0 %948
      %v950 = vsel %vm313, %v766, 0.0
      %951 = vadd.xlane.f32.xlu0 %v950
      %v952 = vpop.xlane.xlu0 %951
      %v953 = vsel %vm313, %v767, 0.0
      %954 = vadd.xlane.f32.xlu0 %v953
      %v955 = vpop.xlane.xlu0 %954
      %v956 = vsel %vm313, %v768, 0.0
      %957 = vadd.xlane.f32.xlu0 %v956
      %v958 = vpop.xlane.xlu0 %957
      %v959 = vsel %vm313, %v769, 0.0
      %960 = vadd.xlane.f32.xlu0 %v959
      %v961 = vpop.xlane.xlu0 %960
      %v962 = vsel %vm313, %v770, 0.0
      %963 = vadd.xlane.f32.xlu0 %v962
      %v964 = vpop.xlane.xlu0 %963
      %v965 = vsel %vm313, %v771, 0.0
      %966 = vadd.xlane.f32.xlu0 %v965
      %v967 = vpop.xlane.xlu0 %966
      %v968 = vsel %vm313, %v772, 0.0
      %969 = vadd.xlane.f32.xlu0 %v968
      %v970 = vpop.xlane.xlu0 %969
      %v971 = vsel %vm313, %v773, 0.0
      %972 = vadd.xlane.f32.xlu0 %v971
      %v973 = vpop.xlane.xlu0 %972
      %v974 = vsel %vm313, %v774, 0.0
      %975 = vadd.xlane.f32.xlu0 %v974
      %v976 = vpop.xlane.xlu0 %975
      %v977 = vsel %vm313, %v775, 0.0
      %978 = vadd.xlane.f32.xlu0 %v977
      %v979 = vpop.xlane.xlu0 %978
      %v980 = vsel %vm313, %v776, 0.0
      %981 = vadd.xlane.f32.xlu0 %v980
      %v982 = vpop.xlane.xlu0 %981
      %v983 = vsel %vm313, %v777, 0.0
      %984 = vadd.xlane.f32.xlu0 %v983
      %v985 = vpop.xlane.xlu0 %984
      %v986 = vsel %vm313, %v778, 0.0
      %987 = vadd.xlane.f32.xlu0 %v986
      %v988 = vpop.xlane.xlu0 %987
      %v989 = vsel %vm313, %v779, 0.0
      %990 = vadd.xlane.f32.xlu0 %v989
      %v991 = vpop.xlane.xlu0 %990
      %v992 = vsel %vm313, %v780, 0.0
      %993 = vadd.xlane.f32.xlu0 %v992
      %v994 = vpop.xlane.xlu0 %993
      %v995 = vsel %vm313, %v781, 0.0
      %996 = vadd.xlane.f32.xlu0 %v995
      %v997 = vpop.xlane.xlu0 %996
      %v998 = vsel %vm313, %v782, 0.0
      %999 = vadd.xlane.f32.xlu0 %v998
      %v1000 = vpop.xlane.xlu0 %999
      %v1001 = vsel %vm313, %v783, 0.0
      %1002 = vadd.xlane.f32.xlu0 %v1001
      %v1003 = vpop.xlane.xlu0 %1002
      %v1004 = vsel %vm313, %v784, 0.0
      %1005 = vadd.xlane.f32.xlu0 %v1004
      %v1006 = vpop.xlane.xlu0 %1005
      %v1007 = vsel %vm313, %v785, 0.0
      %1008 = vadd.xlane.f32.xlu0 %v1007
      %v1009 = vpop.xlane.xlu0 %1008
      %v1010 = vsel %vm313, %v786, 0.0
      %1011 = vadd.xlane.f32.xlu0 %v1010
      %v1012 = vpop.xlane.xlu0 %1011
      %v1013 = vsel %vm313, %v787, 0.0
      %1014 = vadd.xlane.f32.xlu0 %v1013
      %v1015 = vpop.xlane.xlu0 %1014
      %v1016 = vsel %vm313, %v788, 0.0
      %1017 = vadd.xlane.f32.xlu0 %v1016
      %v1018 = vpop.xlane.xlu0 %1017
      %v1019 = vsel %vm313, %v789, 0.0
      %1020 = vadd.xlane.f32.xlu0 %v1019
      %v1021 = vpop.xlane.xlu0 %1020
      %v1022 = vsel %vm313, %v790, 0.0
      %1023 = vadd.xlane.f32.xlu0 %v1022
      %v1024 = vpop.xlane.xlu0 %1023
      %v1025 = vsel %vm313, %v791, 0.0
      %1026 = vadd.xlane.f32.xlu0 %v1025
      %v1027 = vpop.xlane.xlu0 %1026
      %v1028 = vsel %vm313, %v792, 0.0
      %1029 = vadd.xlane.f32.xlu0 %v1028
      %v1030 = vpop.xlane.xlu0 %1029
      %v1031 = vsel %vm313, %v793, 0.0
      %1032 = vadd.xlane.f32.xlu0 %v1031
      %v1033 = vpop.xlane.xlu0 %1032
      %v1034 = vsel %vm313, %v794, 0.0
      %1035 = vadd.xlane.f32.xlu0 %v1034
      %v1036 = vpop.xlane.xlu0 %1035
      %v1037 = vsel %vm313, %v795, 0.0
      %1038 = vadd.xlane.f32.xlu0 %v1037
      %v1039 = vpop.xlane.xlu0 %1038
      %v1040 = vsel %vm313, %v796, 0.0
      %1041 = vadd.xlane.f32.xlu0 %v1040
      %v1042 = vpop.xlane.xlu0 %1041
      %v1043 = vsel %vm313, %v797, 0.0
      %1044 = vadd.xlane.f32.xlu0 %v1043
      %v1045 = vpop.xlane.xlu0 %1044
      %v1046 = vsel %vm313, %v798, 0.0
      %1047 = vadd.xlane.f32.xlu0 %v1046
      %v1048 = vpop.xlane.xlu0 %1047
      %v1049 = vsel %vm313, %v799, 0.0
      %1050 = vadd.xlane.f32.xlu0 %v1049
      %v1051 = vpop.xlane.xlu0 %1050
      %v1052 = vsel %vm313, %v800, 0.0
      %1053 = vadd.xlane.f32.xlu0 %v1052
      %v1054 = vpop.xlane.xlu0 %1053
      %v1055 = vsel %vm313, %v801, 0.0
      %1056 = vadd.xlane.f32.xlu0 %v1055
      %v1057 = vpop.xlane.xlu0 %1056
      %v1058 = vsel %vm313, %v802, 0.0
      %1059 = vadd.xlane.f32.xlu0 %v1058
      %v1060 = vpop.xlane.xlu0 %1059
      %v1061 = vsel %vm313, %v803, 0.0
      %1062 = vadd.xlane.f32.xlu0 %v1061
      %v1063 = vpop.xlane.xlu0 %1062
      %v1064 = vsel %vm313, %v804, 0.0
      %1065 = vadd.xlane.f32.xlu0 %v1064
      %v1066 = vpop.xlane.xlu0 %1065
      %v1067 = vsel %vm313, %v805, 0.0
      %1068 = vadd.xlane.f32.xlu0 %v1067
      %v1069 = vpop.xlane.xlu0 %1068
      %v1070 = vsel %vm313, %v806, 0.0
      %1071 = vadd.xlane.f32.xlu0 %v1070
      %v1072 = vpop.xlane.xlu0 %1071
      %v1073 = vsel %vm313, %v807, 0.0
      %1074 = vadd.xlane.f32.xlu0 %v1073
      %v1075 = vpop.xlane.xlu0 %1074
      %v1076 = vsel %vm313, %v808, 0.0
      %1077 = vadd.xlane.f32.xlu0 %v1076
      %v1078 = vpop.xlane.xlu0 %1077
      %v1079 = vsel %vm313, %v809, 0.0
      %1080 = vadd.xlane.f32.xlu0 %v1079
      %v1081 = vpop.xlane.xlu0 %1080
      %v1082 = vsel %vm313, %v810, 0.0
      %1083 = vadd.xlane.f32.xlu0 %v1082
      %v1084 = vpop.xlane.xlu0 %1083
      %v1085 = vsel %vm313, %v811, 0.0
      %1086 = vadd.xlane.f32.xlu0 %v1085
      %v1087 = vpop.xlane.xlu0 %1086
      %v1088 = vsel %vm313, %v812, 0.0
      %1089 = vadd.xlane.f32.xlu0 %v1088
      %v1090 = vpop.xlane.xlu0 %1089
      %v1091 = vsel %vm313, %v813, 0.0
      %1092 = vadd.xlane.f32.xlu0 %v1091
      %v1093 = vpop.xlane.xlu0 %1092
      %v1094 = vsel %vm313, %v814, 0.0
      %1095 = vadd.xlane.f32.xlu0 %v1094
      %v1096 = vpop.xlane.xlu0 %1095
      %v1097 = vsel %vm313, %v815, 0.0
      %1098 = vadd.xlane.f32.xlu0 %v1097
      %v1099 = vpop.xlane.xlu0 %1098
      %v1100 = vsel %vm313, %v816, 0.0
      %1101 = vadd.xlane.f32.xlu0 %v1100
      %v1102 = vpop.xlane.xlu0 %1101
      %v1103 = vsel %vm313, %v817, 0.0
      %1104 = vadd.xlane.f32.xlu0 %v1103
      %v1105 = vpop.xlane.xlu0 %1104
      %v1106 = vsel %vm313, %v818, 0.0
      %1107 = vadd.xlane.f32.xlu0 %v1106
      %v1108 = vpop.xlane.xlu0 %1107
      %v1109 = vsel %vm313, %v819, 0.0
      %1110 = vadd.xlane.f32.xlu0 %v1109
      %v1111 = vpop.xlane.xlu0 %1110
      %v1112 = vsel %vm313, %v820, 0.0
      %1113 = vadd.xlane.f32.xlu0 %v1112
      %v1114 = vpop.xlane.xlu0 %1113
      %v1115 = vsel %vm313, %v821, 0.0
      %1116 = vadd.xlane.f32.xlu0 %v1115
      %v1117 = vpop.xlane.xlu0 %1116
      %v1118 = vsel %vm313, %v822, 0.0
      %1119 = vadd.xlane.f32.xlu0 %v1118
      %v1120 = vpop.xlane.xlu0 %1119
      %v1121 = vsel %vm313, %v823, 0.0
      %1122 = vadd.xlane.f32.xlu0 %v1121
      %v1123 = vpop.xlane.xlu0 %1122
      %v1124 = vsel %vm313, %v824, 0.0
      %1125 = vadd.xlane.f32.xlu0 %v1124
      %v1126 = vpop.xlane.xlu0 %1125
      %v1127 = vsel %vm313, %v825, 0.0
      %1128 = vadd.xlane.f32.xlu0 %v1127
      %v1129 = vpop.xlane.xlu0 %1128
      %v1130 = vsel %vm313, %v826, 0.0
      %1131 = vadd.xlane.f32.xlu0 %v1130
      %v1132 = vpop.xlane.xlu0 %1131
      %v1133 = vsel %vm313, %v827, 0.0
      %1134 = vadd.xlane.f32.xlu0 %v1133
      %v1135 = vpop.xlane.xlu0 %1134
      %v1136 = vsel %vm313, %v828, 0.0
      %1137 = vadd.xlane.f32.xlu0 %v1136
      %v1138 = vpop.xlane.xlu0 %1137
      %v1139 = vsel %vm313, %v829, 0.0
      %1140 = vadd.xlane.f32.xlu0 %v1139
      %v1141 = vpop.xlane.xlu0 %1140
      %v1142 = vsel %vm313, %v830, 0.0
      %1143 = vadd.xlane.f32.xlu0 %v1142
      %v1144 = vpop.xlane.xlu0 %1143
      %v1145 = vsel %vm313, %v831, 0.0
      %1146 = vadd.xlane.f32.xlu0 %v1145
      %v1147 = vpop.xlane.xlu0 %1146
      %v1148 = vsel %vm313, %v832, 0.0
      %1149 = vadd.xlane.f32.xlu0 %v1148
      %v1150 = vpop.xlane.xlu0 %1149
      %v1151 = vsel %vm313, %v833, 0.0
      %1152 = vadd.xlane.f32.xlu0 %v1151
      %v1153 = vpop.xlane.xlu0 %1152
      %v1154 = vsel %vm313, %v834, 0.0
      %1155 = vadd.xlane.f32.xlu0 %v1154
      %v1156 = vpop.xlane.xlu0 %1155
      %v1157 = vsel %vm313, %v835, 0.0
      %1158 = vadd.xlane.f32.xlu0 %v1157
      %v1159 = vpop.xlane.xlu0 %1158
      %v1160 = vsel %vm313, %v836, 0.0
      %1161 = vadd.xlane.f32.xlu0 %v1160
      %v1162 = vpop.xlane.xlu0 %1161
      %v1163 = vsel %vm313, %v837, 0.0
      %1164 = vadd.xlane.f32.xlu0 %v1163
      %v1165 = vpop.xlane.xlu0 %1164
      %v1166 = vsel %vm313, %v838, 0.0
      %1167 = vadd.xlane.f32.xlu0 %v1166
      %v1168 = vpop.xlane.xlu0 %1167
      %v1169 = vsel %vm313, %v839, 0.0
      %1170 = vadd.xlane.f32.xlu0 %v1169
      %v1171 = vpop.xlane.xlu0 %1170
      %v1172 = vsel %vm313, %v840, 0.0
      %1173 = vadd.xlane.f32.xlu0 %v1172
      %v1174 = vpop.xlane.xlu0 %1173
      %v1175 = vsel %vm313, %v841, 0.0
      %1176 = vadd.xlane.f32.xlu0 %v1175
      %v1177 = vpop.xlane.xlu0 %1176
      %v1178 = vsel %vm313, %v842, 0.0
      %1179 = vadd.xlane.f32.xlu0 %v1178
      %v1180 = vpop.xlane.xlu0 %1179
      %v1181 = vsel %vm313, %v843, 0.0
      %1182 = vadd.xlane.f32.xlu0 %v1181
      %v1183 = vpop.xlane.xlu0 %1182
      %v1184 = vsel %vm313, %v844, 0.0
      %1185 = vadd.xlane.f32.xlu0 %v1184
      %v1186 = vpop.xlane.xlu0 %1185
      %v1187 = vsel %vm313, %v845, 0.0
      %1188 = vadd.xlane.f32.xlu0 %v1187
      %v1189 = vpop.xlane.xlu0 %1188
      %v1190 = vsel %vm313, %v846, 0.0
      %1191 = vadd.xlane.f32.xlu0 %v1190
      %v1192 = vpop.xlane.xlu0 %1191
      %v1193 = vsel %vm313, %v847, 0.0
      %1194 = vadd.xlane.f32.xlu0 %v1193
      %v1195 = vpop.xlane.xlu0 %1194
      %v1196 = vsel %vm313, %v848, 0.0
      %1197 = vadd.xlane.f32.xlu0 %v1196
      %v1198 = vpop.xlane.xlu0 %1197
      %v1199 = vsel %vm313, %v849, 0.0
      %1200 = vadd.xlane.f32.xlu0 %v1199
      %v1201 = vpop.xlane.xlu0 %1200
      %v1202 = vsel %vm313, %v850, 0.0
      %1203 = vadd.xlane.f32.xlu0 %v1202
      %v1204 = vpop.xlane.xlu0 %1203
      %v1205 = vsel %vm313, %v851, 0.0
      %1206 = vadd.xlane.f32.xlu0 %v1205
      %v1207 = vpop.xlane.xlu0 %1206
      %v1208 = vsel %vm313, %v852, 0.0
      %1209 = vadd.xlane.f32.xlu0 %v1208
      %v1210 = vpop.xlane.xlu0 %1209
      %v1211 = vsel %vm313, %v853, 0.0
      %1212 = vadd.xlane.f32.xlu0 %v1211
      %v1213 = vpop.xlane.xlu0 %1212
      %v1214 = vsel %vm313, %v854, 0.0
      %1215 = vadd.xlane.f32.xlu0 %v1214
      %v1216 = vpop.xlane.xlu0 %1215
      %v1217 = vsel %vm313, %v855, 0.0
      %1218 = vadd.xlane.f32.xlu0 %v1217
      %v1219 = vpop.xlane.xlu0 %1218
      %v1220 = vsel %vm313, %v856, 0.0
      %1221 = vadd.xlane.f32.xlu0 %v1220
      %v1222 = vpop.xlane.xlu0 %1221
      %v1223 = vsel %vm313, %v857, 0.0
      %1224 = vadd.xlane.f32.xlu0 %v1223
      %v1225 = vpop.xlane.xlu0 %1224
      %v1226 = vsel %vm313, %v858, 0.0
      %1227 = vadd.xlane.f32.xlu0 %v1226
      %v1228 = vpop.xlane.xlu0 %1227
      %v1229 = vsel %vm313, %v859, 0.0
      %1230 = vadd.xlane.f32.xlu0 %v1229
      %v1231 = vpop.xlane.xlu0 %1230
      %v1232 = vsel %vm313, %v860, 0.0
      %1233 = vadd.xlane.f32.xlu0 %v1232
      %v1234 = vpop.xlane.xlu0 %1233
      %v1235 = vsel %vm313, %v861, 0.0
      %1236 = vadd.xlane.f32.xlu0 %v1235
      %v1237 = vpop.xlane.xlu0 %1236
      %v1238 = vsel %vm313, %v862, 0.0
      %1239 = vadd.xlane.f32.xlu0 %v1238
      %v1240 = vpop.xlane.xlu0 %1239
      %v1241 = vsel %vm313, %v863, 0.0
      %1242 = vadd.xlane.f32.xlu0 %v1241
      %v1243 = vpop.xlane.xlu0 %1242
      %v1244 = vsel %vm313, %v864, 0.0
      %1245 = vadd.xlane.f32.xlu0 %v1244
      %v1246 = vpop.xlane.xlu0 %1245
      %v1247 = vsel %vm313, %v865, 0.0
      %1248 = vadd.xlane.f32.xlu0 %v1247
      %v1249 = vpop.xlane.xlu0 %1248
      %v1250 = vsel %vm313, %v866, 0.0
      %1251 = vadd.xlane.f32.xlu0 %v1250
      %v1252 = vpop.xlane.xlu0 %1251
      %v1253 = vsel %vm313, %v867, 0.0
      %1254 = vadd.xlane.f32.xlu0 %v1253
      %v1255 = vpop.xlane.xlu0 %1254
      %v1256 = vsel %vm313, %v868, 0.0
      %1257 = vadd.xlane.f32.xlu0 %v1256
      %v1258 = vpop.xlane.xlu0 %1257
      %v1259 = vsel %vm313, %v869, 0.0
      %1260 = vadd.xlane.f32.xlu0 %v1259
      %v1261 = vpop.xlane.xlu0 %1260
      %v1262 = vsel %vm313, %v870, 0.0
      %1263 = vadd.xlane.f32.xlu0 %v1262
      %v1264 = vpop.xlane.xlu0 %1263
      %v1265 = vsel %vm313, %v871, 0.0
      %1266 = vadd.xlane.f32.xlu0 %v1265
      %v1267 = vpop.xlane.xlu0 %1266
      %v1268 = vsel %vm313, %v872, 0.0
      %1269 = vadd.xlane.f32.xlu0 %v1268
      %v1270 = vpop.xlane.xlu0 %1269
      %v1271 = vsel %vm313, %v873, 0.0
      %1272 = vadd.xlane.f32.xlu0 %v1271
      %v1273 = vpop.xlane.xlu0 %1272
      %v1274 = vsel %vm313, %v874, 0.0
      %1275 = vadd.xlane.f32.xlu0 %v1274
      %v1276 = vpop.xlane.xlu0 %1275
      %v1277 = vsel %vm313, %v875, 0.0
      %1278 = vadd.xlane.f32.xlu0 %v1277
      %v1279 = vpop.xlane.xlu0 %1278
      %v1280 = vsel %vm313, %v876, 0.0
      %1281 = vadd.xlane.f32.xlu0 %v1280
      %v1282 = vpop.xlane.xlu0 %1281
      %v1283 = vsel %vm313, %v877, 0.0
      %1284 = vadd.xlane.f32.xlu0 %v1283
      %v1285 = vpop.xlane.xlu0 %1284
      %v1286 = vsel %vm313, %v878, 0.0
      %1287 = vadd.xlane.f32.xlu0 %v1286
      %v1288 = vpop.xlane.xlu0 %1287
      %v1289 = vsel %vm313, %v879, 0.0
      %1290 = vadd.xlane.f32.xlu0 %v1289
      %v1291 = vpop.xlane.xlu0 %1290
      %v1292 = vsel %vm313, %v880, 0.0
      %1293 = vadd.xlane.f32.xlu0 %v1292
      %v1294 = vpop.xlane.xlu0 %1293
      %v1295 = vsel %vm313, %v881, 0.0
      %1296 = vadd.xlane.f32.xlu0 %v1295
      %v1297 = vpop.xlane.xlu0 %1296
      %v1298 = vsel %vm313, %v882, 0.0
      %1299 = vadd.xlane.f32.xlu0 %v1298
      %v1300 = vpop.xlane.xlu0 %1299
      %v1301 = vsel %vm313, %v883, 0.0
      %1302 = vadd.xlane.f32.xlu0 %v1301
      %v1303 = vpop.xlane.xlu0 %1302
      %v1304 = vsel %vm313, %v884, 0.0
      %1305 = vadd.xlane.f32.xlu0 %v1304
      %v1306 = vpop.xlane.xlu0 %1305
      %v1307 = vsel %vm313, %v885, 0.0
      %1308 = vadd.xlane.f32.xlu0 %v1307
      %v1309 = vpop.xlane.xlu0 %1308
      %v1310 = vsel %vm313, %v886, 0.0
      %1311 = vadd.xlane.f32.xlu0 %v1310
      %v1312 = vpop.xlane.xlu0 %1311
      %v1313 = vsel %vm313, %v887, 0.0
      %1314 = vadd.xlane.f32.xlu0 %v1313
      %v1315 = vpop.xlane.xlu0 %1314
      %v1316 = vsel %vm313, %v888, 0.0
      %1317 = vadd.xlane.f32.xlu0 %v1316
      %v1318 = vpop.xlane.xlu0 %1317
      %v1319 = vsel %vm313, %v889, 0.0
      %1320 = vadd.xlane.f32.xlu0 %v1319
      %v1321 = vpop.xlane.xlu0 %1320
      %v1322 = vmul.f32 %v316, 0.020408163
      %v1323 = vmul.f32 %v319, 0.020408163
      %v1324 = vmul.f32 %v322, 0.020408163
      %v1325 = vmul.f32 %v325, 0.020408163
      %v1326 = vmul.f32 %v328, 0.020408163
      %v1327 = vmul.f32 %v331, 0.020408163
      %v1328 = vmul.f32 %v334, 0.020408163
      %v1329 = vmul.f32 %v337, 0.020408163
      %v1330 = vmul.f32 %v340, 0.020408163
      %v1331 = vmul.f32 %v343, 0.020408163
      %v1332 = vmul.f32 %v346, 0.020408163
      %v1333 = vmul.f32 %v349, 0.020408163
      %v1334 = vmul.f32 %v352, 0.020408163
      %v1335 = vmul.f32 %v355, 0.020408163
      %v1336 = vmul.f32 %v358, 0.020408163
      %v1337 = vmul.f32 %v361, 0.020408163
      %v1338 = vmul.f32 %v364, 0.020408163
      %v1339 = vmul.f32 %v367, 0.020408163
      %v1340 = vmul.f32 %v370, 0.020408163
      %v1341 = vmul.f32 %v373, 0.020408163
      %v1342 = vmul.f32 %v376, 0.020408163
      %v1343 = vmul.f32 %v379, 0.020408163
      %v1344 = vmul.f32 %v382, 0.020408163
      %v1345 = vmul.f32 %v385, 0.020408163
      %v1346 = vmul.f32 %v388, 0.020408163
      %v1347 = vmul.f32 %v391, 0.020408163
      %v1348 = vmul.f32 %v394, 0.020408163
      %v1349 = vmul.f32 %v397, 0.020408163
      %v1350 = vmul.f32 %v400, 0.020408163
      %v1351 = vmul.f32 %v403, 0.020408163
      %v1352 = vmul.f32 %v406, 0.020408163
      %v1353 = vmul.f32 %v409, 0.020408163
      %v1354 = vmul.f32 %v412, 0.020408163
      %v1355 = vmul.f32 %v415, 0.020408163
      %v1356 = vmul.f32 %v418, 0.020408163
      %v1357 = vmul.f32 %v421, 0.020408163
      %v1358 = vmul.f32 %v424, 0.020408163
      %v1359 = vmul.f32 %v427, 0.020408163
      %v1360 = vmul.f32 %v430, 0.020408163
      %v1361 = vmul.f32 %v433, 0.020408163
      %v1362 = vmul.f32 %v436, 0.020408163
      %v1363 = vmul.f32 %v439, 0.020408163
      %v1364 = vmul.f32 %v442, 0.020408163
      %v1365 = vmul.f32 %v445, 0.020408163
      %v1366 = vmul.f32 %v448, 0.020408163
      %v1367 = vmul.f32 %v451, 0.020408163
      %v1368 = vmul.f32 %v454, 0.020408163
      %v1369 = vmul.f32 %v457, 0.020408163
      %v1370 = vmul.f32 %v460, 0.020408163
      %v1371 = vmul.f32 %v463, 0.020408163
      %v1372 = vmul.f32 %v466, 0.020408163
      %v1373 = vmul.f32 %v469, 0.020408163
      %v1374 = vmul.f32 %v472, 0.020408163
      %v1375 = vmul.f32 %v475, 0.020408163
      %v1376 = vmul.f32 %v478, 0.020408163
      %v1377 = vmul.f32 %v481, 0.020408163
      %v1378 = vmul.f32 %v484, 0.020408163
      %v1379 = vmul.f32 %v487, 0.020408163
      %v1380 = vmul.f32 %v490, 0.020408163
      %v1381 = vmul.f32 %v493, 0.020408163
      %v1382 = vmul.f32 %v496, 0.020408163
      %v1383 = vmul.f32 %v499, 0.020408163
      %v1384 = vmul.f32 %v502, 0.020408163
      %v1385 = vmul.f32 %v505, 0.020408163
      %v1386 = vmul.f32 %v508, 0.020408163
      %v1387 = vmul.f32 %v511, 0.020408163
      %v1388 = vmul.f32 %v514, 0.020408163
      %v1389 = vmul.f32 %v517, 0.020408163
      %v1390 = vmul.f32 %v520, 0.020408163
      %v1391 = vmul.f32 %v523, 0.020408163
      %v1392 = vmul.f32 %v526, 0.020408163
      %v1393 = vmul.f32 %v529, 0.020408163
      %v1394 = vmul.f32 %v532, 0.020408163
      %v1395 = vmul.f32 %v535, 0.020408163
      %v1396 = vmul.f32 %v538, 0.020408163
      %v1397 = vmul.f32 %v541, 0.020408163
      %v1398 = vmul.f32 %v544, 0.020408163
      %v1399 = vmul.f32 %v547, 0.020408163
      %v1400 = vmul.f32 %v550, 0.020408163
      %v1401 = vmul.f32 %v553, 0.020408163
      %v1402 = vmul.f32 %v556, 0.020408163
      %v1403 = vmul.f32 %v559, 0.020408163
      %v1404 = vmul.f32 %v562, 0.020408163
      %v1405 = vmul.f32 %v565, 0.020408163
      %v1406 = vmul.f32 %v568, 0.020408163
      %v1407 = vmul.f32 %v571, 0.020408163
      %v1408 = vmul.f32 %v574, 0.020408163
      %v1409 = vmul.f32 %v577, 0.020408163
      %v1410 = vmul.f32 %v580, 0.020408163
      %v1411 = vmul.f32 %v583, 0.020408163
      %v1412 = vmul.f32 %v586, 0.020408163
      %v1413 = vmul.f32 %v589, 0.020408163
      %v1414 = vmul.f32 %v592, 0.020408163
      %v1415 = vmul.f32 %v595, 0.020408163
      %v1416 = vmul.f32 %v598, 0.020408163
      %v1417 = vmul.f32 %v601, 0.020408163
      %v1418 = vmul.f32 %v604, 0.020408163
      %v1419 = vmul.f32 %v607, 0.020408163
      %v1420 = vmul.f32 %v610, 0.020408163
      %v1421 = vmul.f32 %v613, 0.020408163
      %v1422 = vmul.f32 %v616, 0.020408163
      %v1423 = vmul.f32 %v619, 0.020408163
      %v1424 = vmul.f32 %v622, 0.020408163
      %v1425 = vmul.f32 %v625, 0.020408163
      %v1426 = vmul.f32 %v628, 0.020408163
      %v1427 = vmul.f32 %v631, 0.020408163
      %v1428 = vmul.f32 %v634, 0.020408163
      %v1429 = vmul.f32 %v637, 0.020408163
      %v1430 = vmul.f32 %v640, 0.020408163
      %v1431 = vmul.f32 %v643, 0.020408163
      %v1432 = vmul.f32 %v646, 0.020408163
      %v1433 = vmul.f32 %v649, 0.020408163
      %v1434 = vmul.f32 %v652, 0.020408163
      %v1435 = vmul.f32 %v655, 0.020408163
      %v1436 = vmul.f32 %v658, 0.020408163
      %v1437 = vmul.f32 %v661, 0.020408163
      %v1438 = vmul.f32 %v664, 0.020408163
      %v1439 = vmul.f32 %v667, 0.020408163
      %v1440 = vmul.f32 %v670, 0.020408163
      %v1441 = vmul.f32 %v673, 0.020408163
      %v1442 = vmul.f32 %v676, 0.020408163
      %v1443 = vmul.f32 %v679, 0.020408163
      %v1444 = vmul.f32 %v682, 0.020408163
      %v1445 = vmul.f32 %v685, 0.020408163
      %v1446 = vmul.f32 %v688, 0.020408163
      %v1447 = vmul.f32 %v691, 0.020408163
      %v1448 = vmul.f32 %v694, 0.020408163
      %v1449 = vmul.f32 %v697, 0.020408163
      %v1450 = vmul.f32 %v700, 0.020408163
      %v1451 = vmul.f32 %v703, 0.020408163
      %v1452 = vmul.f32 %v706, 0.020408163
      %v1453 = vmul.f32 %v709, 0.020408163
      %v1454 = vmul.f32 %v712, 0.020408163
      %v1455 = vmul.f32 %v715, 0.020408163
      %v1456 = vmul.f32 %v718, 0.020408163
      %v1457 = vmul.f32 %v721, 0.020408163
      %v1458 = vmul.f32 %v724, 0.020408163
      %v1459 = vmul.f32 %v727, 0.020408163
      %v1460 = vmul.f32 %v730, 0.020408163
      %v1461 = vmul.f32 %v733, 0.020408163
      %v1462 = vmul.f32 %v736, 0.020408163
      %v1463 = vmul.f32 %v739, 0.020408163
      %v1464 = vmul.f32 %v742, 0.020408163
      %v1465 = vmul.f32 %v745, 0.020408163
      %v1466 = vmul.f32 %v892, 0.020408163
      %v1467 = vmul.f32 %v895, 0.020408163
      %v1468 = vmul.f32 %v898, 0.020408163
      %v1469 = vmul.f32 %v901, 0.020408163
      %v1470 = vmul.f32 %v904, 0.020408163
      %v1471 = vmul.f32 %v907, 0.020408163
      %v1472 = vmul.f32 %v910, 0.020408163
      %v1473 = vmul.f32 %v913, 0.020408163
      %v1474 = vmul.f32 %v916, 0.020408163
      %v1475 = vmul.f32 %v919, 0.020408163
      %v1476 = vmul.f32 %v922, 0.020408163
      %v1477 = vmul.f32 %v925, 0.020408163
      %v1478 = vmul.f32 %v928, 0.020408163
      %v1479 = vmul.f32 %v931, 0.020408163
      %v1480 = vmul.f32 %v934, 0.020408163
      %v1481 = vmul.f32 %v937, 0.020408163
      %v1482 = vmul.f32 %v940, 0.020408163
      %v1483 = vmul.f32 %v943, 0.020408163
      %v1484 = vmul.f32 %v946, 0.020408163
      %v1485 = vmul.f32 %v949, 0.020408163
      %v1486 = vmul.f32 %v952, 0.020408163
      %v1487 = vmul.f32 %v955, 0.020408163
      %v1488 = vmul.f32 %v958, 0.020408163
      %v1489 = vmul.f32 %v961, 0.020408163
      %v1490 = vmul.f32 %v964, 0.020408163
      %v1491 = vmul.f32 %v967, 0.020408163
      %v1492 = vmul.f32 %v970, 0.020408163
      %v1493 = vmul.f32 %v973, 0.020408163
      %v1494 = vmul.f32 %v976, 0.020408163
      %v1495 = vmul.f32 %v979, 0.020408163
      %v1496 = vmul.f32 %v982, 0.020408163
      %v1497 = vmul.f32 %v985, 0.020408163
      %v1498 = vmul.f32 %v988, 0.020408163
      %v1499 = vmul.f32 %v991, 0.020408163
      %v1500 = vmul.f32 %v994, 0.020408163
      %v1501 = vmul.f32 %v997, 0.020408163
      %v1502 = vmul.f32 %v1000, 0.020408163
      %v1503 = vmul.f32 %v1003, 0.020408163
      %v1504 = vmul.f32 %v1006, 0.020408163
      %v1505 = vmul.f32 %v1009, 0.020408163
      %v1506 = vmul.f32 %v1012, 0.020408163
      %v1507 = vmul.f32 %v1015, 0.020408163
      %v1508 = vmul.f32 %v1018, 0.020408163
      %v1509 = vmul.f32 %v1021, 0.020408163
      %v1510 = vmul.f32 %v1024, 0.020408163
      %v1511 = vmul.f32 %v1027, 0.020408163
      %v1512 = vmul.f32 %v1030, 0.020408163
      %v1513 = vmul.f32 %v1033, 0.020408163
      %v1514 = vmul.f32 %v1036, 0.020408163
      %v1515 = vmul.f32 %v1039, 0.020408163
      %v1516 = vmul.f32 %v1042, 0.020408163
      %v1517 = vmul.f32 %v1045, 0.020408163
      %v1518 = vmul.f32 %v1048, 0.020408163
      %v1519 = vmul.f32 %v1051, 0.020408163
      %v1520 = vmul.f32 %v1054, 0.020408163
      %v1521 = vmul.f32 %v1057, 0.020408163
      %v1522 = vmul.f32 %v1060, 0.020408163
      %v1523 = vmul.f32 %v1063, 0.020408163
      %v1524 = vmul.f32 %v1066, 0.020408163
      %v1525 = vmul.f32 %v1069, 0.020408163
      %v1526 = vmul.f32 %v1072, 0.020408163
      %v1527 = vmul.f32 %v1075, 0.020408163
      %v1528 = vmul.f32 %v1078, 0.020408163
      %v1529 = vmul.f32 %v1081, 0.020408163
      %v1530 = vmul.f32 %v1084, 0.020408163
      %v1531 = vmul.f32 %v1087, 0.020408163
      %v1532 = vmul.f32 %v1090, 0.020408163
      %v1533 = vmul.f32 %v1093, 0.020408163
      %v1534 = vmul.f32 %v1096, 0.020408163
      %v1535 = vmul.f32 %v1099, 0.020408163
      %v1536 = vmul.f32 %v1102, 0.020408163
      %v1537 = vmul.f32 %v1105, 0.020408163
      %v1538 = vmul.f32 %v1108, 0.020408163
      %v1539 = vmul.f32 %v1111, 0.020408163
      %v1540 = vmul.f32 %v1114, 0.020408163
      %v1541 = vmul.f32 %v1117, 0.020408163
      %v1542 = vmul.f32 %v1120, 0.020408163
      %v1543 = vmul.f32 %v1123, 0.020408163
      %v1544 = vmul.f32 %v1126, 0.020408163
      %v1545 = vmul.f32 %v1129, 0.020408163
      %v1546 = vmul.f32 %v1132, 0.020408163
      %v1547 = vmul.f32 %v1135, 0.020408163
      %v1548 = vmul.f32 %v1138, 0.020408163
      %v1549 = vmul.f32 %v1141, 0.020408163
      %v1550 = vmul.f32 %v1144, 0.020408163
      %v1551 = vmul.f32 %v1147, 0.020408163
      %v1552 = vmul.f32 %v1150, 0.020408163
      %v1553 = vmul.f32 %v1153, 0.020408163
      %v1554 = vmul.f32 %v1156, 0.020408163
      %v1555 = vmul.f32 %v1159, 0.020408163
      %v1556 = vmul.f32 %v1162, 0.020408163
      %v1557 = vmul.f32 %v1165, 0.020408163
      %v1558 = vmul.f32 %v1168, 0.020408163
      %v1559 = vmul.f32 %v1171, 0.020408163
      %v1560 = vmul.f32 %v1174, 0.020408163
      %v1561 = vmul.f32 %v1177, 0.020408163
      %v1562 = vmul.f32 %v1180, 0.020408163
      %v1563 = vmul.f32 %v1183, 0.020408163
      %v1564 = vmul.f32 %v1186, 0.020408163
      %v1565 = vmul.f32 %v1189, 0.020408163
      %v1566 = vmul.f32 %v1192, 0.020408163
      %v1567 = vmul.f32 %v1195, 0.020408163
      %v1568 = vmul.f32 %v1198, 0.020408163
      %v1569 = vmul.f32 %v1201, 0.020408163
      %v1570 = vmul.f32 %v1204, 0.020408163
      %v1571 = vmul.f32 %v1207, 0.020408163
      %v1572 = vmul.f32 %v1210, 0.020408163
      %v1573 = vmul.f32 %v1213, 0.020408163
      %v1574 = vmul.f32 %v1216, 0.020408163
      %v1575 = vmul.f32 %v1219, 0.020408163
      %v1576 = vmul.f32 %v1222, 0.020408163
      %v1577 = vmul.f32 %v1225, 0.020408163
      %v1578 = vmul.f32 %v1228, 0.020408163
      %v1579 = vmul.f32 %v1231, 0.020408163
      %v1580 = vmul.f32 %v1234, 0.020408163
      %v1581 = vmul.f32 %v1237, 0.020408163
      %v1582 = vmul.f32 %v1240, 0.020408163
      %v1583 = vmul.f32 %v1243, 0.020408163
      %v1584 = vmul.f32 %v1246, 0.020408163
      %v1585 = vmul.f32 %v1249, 0.020408163
      %v1586 = vmul.f32 %v1252, 0.020408163
      %v1587 = vmul.f32 %v1255, 0.020408163
      %v1588 = vmul.f32 %v1258, 0.020408163
      %v1589 = vmul.f32 %v1261, 0.020408163
      %v1590 = vmul.f32 %v1264, 0.020408163
      %v1591 = vmul.f32 %v1267, 0.020408163
      %v1592 = vmul.f32 %v1270, 0.020408163
      %v1593 = vmul.f32 %v1273, 0.020408163
      %v1594 = vmul.f32 %v1276, 0.020408163
      %v1595 = vmul.f32 %v1279, 0.020408163
      %v1596 = vmul.f32 %v1282, 0.020408163
      %v1597 = vmul.f32 %v1285, 0.020408163
      %v1598 = vmul.f32 %v1288, 0.020408163
      %v1599 = vmul.f32 %v1291, 0.020408163
      %v1600 = vmul.f32 %v1294, 0.020408163
      %v1601 = vmul.f32 %v1297, 0.020408163
      %v1602 = vmul.f32 %v1300, 0.020408163
      %v1603 = vmul.f32 %v1303, 0.020408163
      %v1604 = vmul.f32 %v1306, 0.020408163
      %v1605 = vmul.f32 %v1309, 0.020408163
      %v1606 = vmul.f32 %v1312, 0.020408163
      %v1607 = vmul.f32 %v1315, 0.020408163
      %v1608 = vmul.f32 %v1318, 0.020408163
      %v1609 = vmul.f32 %v1321, 0.020408163
      %v1610 = vmul.f32 %v1322, %v1322
      %v1611 = vmul.f32 %v1323, %v1323
      %v1612 = vmul.f32 %v1324, %v1324
      %v1613 = vmul.f32 %v1325, %v1325
      %v1614 = vmul.f32 %v1326, %v1326
      %v1615 = vmul.f32 %v1327, %v1327
      %v1616 = vmul.f32 %v1328, %v1328
      %v1617 = vmul.f32 %v1329, %v1329
      %v1618 = vmul.f32 %v1330, %v1330
      %v1619 = vmul.f32 %v1331, %v1331
      %v1620 = vmul.f32 %v1332, %v1332
      %v1621 = vmul.f32 %v1333, %v1333
      %v1622 = vmul.f32 %v1334, %v1334
      %v1623 = vmul.f32 %v1335, %v1335
      %v1624 = vmul.f32 %v1336, %v1336
      %v1625 = vmul.f32 %v1337, %v1337
      %v1626 = vmul.f32 %v1338, %v1338
      %v1627 = vmul.f32 %v1339, %v1339
      %v1628 = vmul.f32 %v1340, %v1340
      %v1629 = vmul.f32 %v1341, %v1341
      %v1630 = vmul.f32 %v1342, %v1342
      %v1631 = vmul.f32 %v1343, %v1343
      %v1632 = vmul.f32 %v1344, %v1344
      %v1633 = vmul.f32 %v1345, %v1345
      %v1634 = vmul.f32 %v1346, %v1346
      %v1635 = vmul.f32 %v1347, %v1347
      %v1636 = vmul.f32 %v1348, %v1348
      %v1637 = vmul.f32 %v1349, %v1349
      %v1638 = vmul.f32 %v1350, %v1350
      %v1639 = vmul.f32 %v1351, %v1351
      %v1640 = vmul.f32 %v1352, %v1352
      %v1641 = vmul.f32 %v1353, %v1353
      %v1642 = vmul.f32 %v1354, %v1354
      %v1643 = vmul.f32 %v1355, %v1355
      %v1644 = vmul.f32 %v1356, %v1356
      %v1645 = vmul.f32 %v1357, %v1357
      %v1646 = vmul.f32 %v1358, %v1358
      %v1647 = vmul.f32 %v1359, %v1359
      %v1648 = vmul.f32 %v1360, %v1360
      %v1649 = vmul.f32 %v1361, %v1361
      %v1650 = vmul.f32 %v1362, %v1362
      %v1651 = vmul.f32 %v1363, %v1363
      %v1652 = vmul.f32 %v1364, %v1364
      %v1653 = vmul.f32 %v1365, %v1365
      %v1654 = vmul.f32 %v1366, %v1366
      %v1655 = vmul.f32 %v1367, %v1367
      %v1656 = vmul.f32 %v1368, %v1368
      %v1657 = vmul.f32 %v1369, %v1369
      %v1658 = vmul.f32 %v1370, %v1370
      %v1659 = vmul.f32 %v1371, %v1371
      %v1660 = vmul.f32 %v1372, %v1372
      %v1661 = vmul.f32 %v1373, %v1373
      %v1662 = vmul.f32 %v1374, %v1374
      %v1663 = vmul.f32 %v1375, %v1375
      %v1664 = vmul.f32 %v1376, %v1376
      %v1665 = vmul.f32 %v1377, %v1377
      %v1666 = vmul.f32 %v1378, %v1378
      %v1667 = vmul.f32 %v1379, %v1379
      %v1668 = vmul.f32 %v1380, %v1380
      %v1669 = vmul.f32 %v1381, %v1381
      %v1670 = vmul.f32 %v1382, %v1382
      %v1671 = vmul.f32 %v1383, %v1383
      %v1672 = vmul.f32 %v1384, %v1384
      %v1673 = vmul.f32 %v1385, %v1385
      %v1674 = vmul.f32 %v1386, %v1386
      %v1675 = vmul.f32 %v1387, %v1387
      %v1676 = vmul.f32 %v1388, %v1388
      %v1677 = vmul.f32 %v1389, %v1389
      %v1678 = vmul.f32 %v1390, %v1390
      %v1679 = vmul.f32 %v1391, %v1391
      %v1680 = vmul.f32 %v1392, %v1392
      %v1681 = vmul.f32 %v1393, %v1393
      %v1682 = vmul.f32 %v1394, %v1394
      %v1683 = vmul.f32 %v1395, %v1395
      %v1684 = vmul.f32 %v1396, %v1396
      %v1685 = vmul.f32 %v1397, %v1397
      %v1686 = vmul.f32 %v1398, %v1398
      %v1687 = vmul.f32 %v1399, %v1399
      %v1688 = vmul.f32 %v1400, %v1400
      %v1689 = vmul.f32 %v1401, %v1401
      %v1690 = vmul.f32 %v1402, %v1402
      %v1691 = vmul.f32 %v1403, %v1403
      %v1692 = vmul.f32 %v1404, %v1404
      %v1693 = vmul.f32 %v1405, %v1405
      %v1694 = vmul.f32 %v1406, %v1406
      %v1695 = vmul.f32 %v1407, %v1407
      %v1696 = vmul.f32 %v1408, %v1408
      %v1697 = vmul.f32 %v1409, %v1409
      %v1698 = vmul.f32 %v1410, %v1410
      %v1699 = vmul.f32 %v1411, %v1411
      %v1700 = vmul.f32 %v1412, %v1412
      %v1701 = vmul.f32 %v1413, %v1413
      %v1702 = vmul.f32 %v1414, %v1414
      %v1703 = vmul.f32 %v1415, %v1415
      %v1704 = vmul.f32 %v1416, %v1416
      %v1705 = vmul.f32 %v1417, %v1417
      %v1706 = vmul.f32 %v1418, %v1418
      %v1707 = vmul.f32 %v1419, %v1419
      %v1708 = vmul.f32 %v1420, %v1420
      %v1709 = vmul.f32 %v1421, %v1421
      %v1710 = vmul.f32 %v1422, %v1422
      %v1711 = vmul.f32 %v1423, %v1423
      %v1712 = vmul.f32 %v1424, %v1424
      %v1713 = vmul.f32 %v1425, %v1425
      %v1714 = vmul.f32 %v1426, %v1426
      %v1715 = vmul.f32 %v1427, %v1427
      %v1716 = vmul.f32 %v1428, %v1428
      %v1717 = vmul.f32 %v1429, %v1429
      %v1718 = vmul.f32 %v1430, %v1430
      %v1719 = vmul.f32 %v1431, %v1431
      %v1720 = vmul.f32 %v1432, %v1432
      %v1721 = vmul.f32 %v1433, %v1433
      %v1722 = vmul.f32 %v1434, %v1434
      %v1723 = vmul.f32 %v1435, %v1435
      %v1724 = vmul.f32 %v1436, %v1436
      %v1725 = vmul.f32 %v1437, %v1437
      %v1726 = vmul.f32 %v1438, %v1438
      %v1727 = vmul.f32 %v1439, %v1439
      %v1728 = vmul.f32 %v1440, %v1440
      %v1729 = vmul.f32 %v1441, %v1441
      %v1730 = vmul.f32 %v1442, %v1442
      %v1731 = vmul.f32 %v1443, %v1443
      %v1732 = vmul.f32 %v1444, %v1444
      %v1733 = vmul.f32 %v1445, %v1445
      %v1734 = vmul.f32 %v1446, %v1446
      %v1735 = vmul.f32 %v1447, %v1447
      %v1736 = vmul.f32 %v1448, %v1448
      %v1737 = vmul.f32 %v1449, %v1449
      %v1738 = vmul.f32 %v1450, %v1450
      %v1739 = vmul.f32 %v1451, %v1451
      %v1740 = vmul.f32 %v1452, %v1452
      %v1741 = vmul.f32 %v1453, %v1453
      %v1742 = vmul.f32 %v1454, %v1454
      %v1743 = vmul.f32 %v1455, %v1455
      %v1744 = vmul.f32 %v1456, %v1456
      %v1745 = vmul.f32 %v1457, %v1457
      %v1746 = vmul.f32 %v1458, %v1458
      %v1747 = vmul.f32 %v1459, %v1459
      %v1748 = vmul.f32 %v1460, %v1460
      %v1749 = vmul.f32 %v1461, %v1461
      %v1750 = vmul.f32 %v1462, %v1462
      %v1751 = vmul.f32 %v1463, %v1463
      %v1752 = vmul.f32 %v1464, %v1464
      %v1753 = vmul.f32 %v1465, %v1465
      %v1754 = vsub.f32 %v1466, %v1610
      %v1755 = vsub.f32 %v1467, %v1611
      %v1756 = vsub.f32 %v1468, %v1612
      %v1757 = vsub.f32 %v1469, %v1613
      %v1758 = vsub.f32 %v1470, %v1614
      %v1759 = vsub.f32 %v1471, %v1615
      %v1760 = vsub.f32 %v1472, %v1616
      %v1761 = vsub.f32 %v1473, %v1617
      %v1762 = vsub.f32 %v1474, %v1618
      %v1763 = vsub.f32 %v1475, %v1619
      %v1764 = vsub.f32 %v1476, %v1620
      %v1765 = vsub.f32 %v1477, %v1621
      %v1766 = vsub.f32 %v1478, %v1622
      %v1767 = vsub.f32 %v1479, %v1623
      %v1768 = vsub.f32 %v1480, %v1624
      %v1769 = vsub.f32 %v1481, %v1625
      %v1770 = vsub.f32 %v1482, %v1626
      %v1771 = vsub.f32 %v1483, %v1627
      %v1772 = vsub.f32 %v1484, %v1628
      %v1773 = vsub.f32 %v1485, %v1629
      %v1774 = vsub.f32 %v1486, %v1630
      %v1775 = vsub.f32 %v1487, %v1631
      %v1776 = vsub.f32 %v1488, %v1632
      %v1777 = vsub.f32 %v1489, %v1633
      %v1778 = vsub.f32 %v1490, %v1634
      %v1779 = vsub.f32 %v1491, %v1635
      %v1780 = vsub.f32 %v1492, %v1636
      %v1781 = vsub.f32 %v1493, %v1637
      %v1782 = vsub.f32 %v1494, %v1638
      %v1783 = vsub.f32 %v1495, %v1639
      %v1784 = vsub.f32 %v1496, %v1640
      %v1785 = vsub.f32 %v1497, %v1641
      %v1786 = vsub.f32 %v1498, %v1642
      %v1787 = vsub.f32 %v1499, %v1643
      %v1788 = vsub.f32 %v1500, %v1644
      %v1789 = vsub.f32 %v1501, %v1645
      %v1790 = vsub.f32 %v1502, %v1646
      %v1791 = vsub.f32 %v1503, %v1647
      %v1792 = vsub.f32 %v1504, %v1648
      %v1793 = vsub.f32 %v1505, %v1649
      %v1794 = vsub.f32 %v1506, %v1650
      %v1795 = vsub.f32 %v1507, %v1651
      %v1796 = vsub.f32 %v1508, %v1652
      %v1797 = vsub.f32 %v1509, %v1653
      %v1798 = vsub.f32 %v1510, %v1654
      %v1799 = vsub.f32 %v1511, %v1655
      %v1800 = vsub.f32 %v1512, %v1656
      %v1801 = vsub.f32 %v1513, %v1657
      %v1802 = vsub.f32 %v1514, %v1658
      %v1803 = vsub.f32 %v1515, %v1659
      %v1804 = vsub.f32 %v1516, %v1660
      %v1805 = vsub.f32 %v1517, %v1661
      %v1806 = vsub.f32 %v1518, %v1662
      %v1807 = vsub.f32 %v1519, %v1663
      %v1808 = vsub.f32 %v1520, %v1664
      %v1809 = vsub.f32 %v1521, %v1665
      %v1810 = vsub.f32 %v1522, %v1666
      %v1811 = vsub.f32 %v1523, %v1667
      %v1812 = vsub.f32 %v1524, %v1668
      %v1813 = vsub.f32 %v1525, %v1669
      %v1814 = vsub.f32 %v1526, %v1670
      %v1815 = vsub.f32 %v1527, %v1671
      %v1816 = vsub.f32 %v1528, %v1672
      %v1817 = vsub.f32 %v1529, %v1673
      %v1818 = vsub.f32 %v1530, %v1674
      %v1819 = vsub.f32 %v1531, %v1675
      %v1820 = vsub.f32 %v1532, %v1676
      %v1821 = vsub.f32 %v1533, %v1677
      %v1822 = vsub.f32 %v1534, %v1678
      %v1823 = vsub.f32 %v1535, %v1679
      %v1824 = vsub.f32 %v1536, %v1680
      %v1825 = vsub.f32 %v1537, %v1681
      %v1826 = vsub.f32 %v1538, %v1682
      %v1827 = vsub.f32 %v1539, %v1683
      %v1828 = vsub.f32 %v1540, %v1684
      %v1829 = vsub.f32 %v1541, %v1685
      %v1830 = vsub.f32 %v1542, %v1686
      %v1831 = vsub.f32 %v1543, %v1687
      %v1832 = vsub.f32 %v1544, %v1688
      %v1833 = vsub.f32 %v1545, %v1689
      %v1834 = vsub.f32 %v1546, %v1690
      %v1835 = vsub.f32 %v1547, %v1691
      %v1836 = vsub.f32 %v1548, %v1692
      %v1837 = vsub.f32 %v1549, %v1693
      %v1838 = vsub.f32 %v1550, %v1694
      %v1839 = vsub.f32 %v1551, %v1695
      %v1840 = vsub.f32 %v1552, %v1696
      %v1841 = vsub.f32 %v1553, %v1697
      %v1842 = vsub.f32 %v1554, %v1698
      %v1843 = vsub.f32 %v1555, %v1699
      %v1844 = vsub.f32 %v1556, %v1700
      %v1845 = vsub.f32 %v1557, %v1701
      %v1846 = vsub.f32 %v1558, %v1702
      %v1847 = vsub.f32 %v1559, %v1703
      %v1848 = vsub.f32 %v1560, %v1704
      %v1849 = vsub.f32 %v1561, %v1705
      %v1850 = vsub.f32 %v1562, %v1706
      %v1851 = vsub.f32 %v1563, %v1707
      %v1852 = vsub.f32 %v1564, %v1708
      %v1853 = vsub.f32 %v1565, %v1709
      %v1854 = vsub.f32 %v1566, %v1710
      %v1855 = vsub.f32 %v1567, %v1711
      %v1856 = vsub.f32 %v1568, %v1712
      %v1857 = vsub.f32 %v1569, %v1713
      %v1858 = vsub.f32 %v1570, %v1714
      %v1859 = vsub.f32 %v1571, %v1715
      %v1860 = vsub.f32 %v1572, %v1716
      %v1861 = vsub.f32 %v1573, %v1717
      %v1862 = vsub.f32 %v1574, %v1718
      %v1863 = vsub.f32 %v1575, %v1719
      %v1864 = vsub.f32 %v1576, %v1720
      %v1865 = vsub.f32 %v1577, %v1721
      %v1866 = vsub.f32 %v1578, %v1722
      %v1867 = vsub.f32 %v1579, %v1723
      %v1868 = vsub.f32 %v1580, %v1724
      %v1869 = vsub.f32 %v1581, %v1725
      %v1870 = vsub.f32 %v1582, %v1726
      %v1871 = vsub.f32 %v1583, %v1727
      %v1872 = vsub.f32 %v1584, %v1728
      %v1873 = vsub.f32 %v1585, %v1729
      %v1874 = vsub.f32 %v1586, %v1730
      %v1875 = vsub.f32 %v1587, %v1731
      %v1876 = vsub.f32 %v1588, %v1732
      %v1877 = vsub.f32 %v1589, %v1733
      %v1878 = vsub.f32 %v1590, %v1734
      %v1879 = vsub.f32 %v1591, %v1735
      %v1880 = vsub.f32 %v1592, %v1736
      %v1881 = vsub.f32 %v1593, %v1737
      %v1882 = vsub.f32 %v1594, %v1738
      %v1883 = vsub.f32 %v1595, %v1739
      %v1884 = vsub.f32 %v1596, %v1740
      %v1885 = vsub.f32 %v1597, %v1741
      %v1886 = vsub.f32 %v1598, %v1742
      %v1887 = vsub.f32 %v1599, %v1743
      %v1888 = vsub.f32 %v1600, %v1744
      %v1889 = vsub.f32 %v1601, %v1745
      %v1890 = vsub.f32 %v1602, %v1746
      %v1891 = vsub.f32 %v1603, %v1747
      %v1892 = vsub.f32 %v1604, %v1748
      %v1893 = vsub.f32 %v1605, %v1749
      %v1894 = vsub.f32 %v1606, %v1750
      %v1895 = vsub.f32 %v1607, %v1751
      %v1896 = vsub.f32 %v1608, %v1752
      %v1897 = vsub.f32 %v1609, %v1753
      %v1898 = vmax.f32 %v1754, 0.0
      %v1899 = vmax.f32 %v1755, 0.0
      %v1900 = vmax.f32 %v1756, 0.0
      %v1901 = vmax.f32 %v1757, 0.0
      %v1902 = vmax.f32 %v1758, 0.0
      %v1903 = vmax.f32 %v1759, 0.0
      %v1904 = vmax.f32 %v1760, 0.0
      %v1905 = vmax.f32 %v1761, 0.0
      %v1906 = vmax.f32 %v1762, 0.0
      %v1907 = vmax.f32 %v1763, 0.0
      %v1908 = vmax.f32 %v1764, 0.0
      %v1909 = vmax.f32 %v1765, 0.0
      %v1910 = vmax.f32 %v1766, 0.0
      %v1911 = vmax.f32 %v1767, 0.0
      %v1912 = vmax.f32 %v1768, 0.0
      %v1913 = vmax.f32 %v1769, 0.0
      %v1914 = vmax.f32 %v1770, 0.0
      %v1915 = vmax.f32 %v1771, 0.0
      %v1916 = vmax.f32 %v1772, 0.0
      %v1917 = vmax.f32 %v1773, 0.0
      %v1918 = vmax.f32 %v1774, 0.0
      %v1919 = vmax.f32 %v1775, 0.0
      %v1920 = vmax.f32 %v1776, 0.0
      %v1921 = vmax.f32 %v1777, 0.0
      %v1922 = vmax.f32 %v1778, 0.0
      %v1923 = vmax.f32 %v1779, 0.0
      %v1924 = vmax.f32 %v1780, 0.0
      %v1925 = vmax.f32 %v1781, 0.0
      %v1926 = vmax.f32 %v1782, 0.0
      %v1927 = vmax.f32 %v1783, 0.0
      %v1928 = vmax.f32 %v1784, 0.0
      %v1929 = vmax.f32 %v1785, 0.0
      %v1930 = vmax.f32 %v1786, 0.0
      %v1931 = vmax.f32 %v1787, 0.0
      %v1932 = vmax.f32 %v1788, 0.0
      %v1933 = vmax.f32 %v1789, 0.0
      %v1934 = vmax.f32 %v1790, 0.0
      %v1935 = vmax.f32 %v1791, 0.0
      %v1936 = vmax.f32 %v1792, 0.0
      %v1937 = vmax.f32 %v1793, 0.0
      %v1938 = vmax.f32 %v1794, 0.0
      %v1939 = vmax.f32 %v1795, 0.0
      %v1940 = vmax.f32 %v1796, 0.0
      %v1941 = vmax.f32 %v1797, 0.0
      %v1942 = vmax.f32 %v1798, 0.0
      %v1943 = vmax.f32 %v1799, 0.0
      %v1944 = vmax.f32 %v1800, 0.0
      %v1945 = vmax.f32 %v1801, 0.0
      %v1946 = vmax.f32 %v1802, 0.0
      %v1947 = vmax.f32 %v1803, 0.0
      %v1948 = vmax.f32 %v1804, 0.0
      %v1949 = vmax.f32 %v1805, 0.0
      %v1950 = vmax.f32 %v1806, 0.0
      %v1951 = vmax.f32 %v1807, 0.0
      %v1952 = vmax.f32 %v1808, 0.0
      %v1953 = vmax.f32 %v1809, 0.0
      %v1954 = vmax.f32 %v1810, 0.0
      %v1955 = vmax.f32 %v1811, 0.0
      %v1956 = vmax.f32 %v1812, 0.0
      %v1957 = vmax.f32 %v1813, 0.0
      %v1958 = vmax.f32 %v1814, 0.0
      %v1959 = vmax.f32 %v1815, 0.0
      %v1960 = vmax.f32 %v1816, 0.0
      %v1961 = vmax.f32 %v1817, 0.0
      %v1962 = vmax.f32 %v1818, 0.0
      %v1963 = vmax.f32 %v1819, 0.0
      %v1964 = vmax.f32 %v1820, 0.0
      %v1965 = vmax.f32 %v1821, 0.0
      %v1966 = vmax.f32 %v1822, 0.0
      %v1967 = vmax.f32 %v1823, 0.0
      %v1968 = vmax.f32 %v1824, 0.0
      %v1969 = vmax.f32 %v1825, 0.0
      %v1970 = vmax.f32 %v1826, 0.0
      %v1971 = vmax.f32 %v1827, 0.0
      %v1972 = vmax.f32 %v1828, 0.0
      %v1973 = vmax.f32 %v1829, 0.0
      %v1974 = vmax.f32 %v1830, 0.0
      %v1975 = vmax.f32 %v1831, 0.0
      %v1976 = vmax.f32 %v1832, 0.0
      %v1977 = vmax.f32 %v1833, 0.0
      %v1978 = vmax.f32 %v1834, 0.0
      %v1979 = vmax.f32 %v1835, 0.0
      %v1980 = vmax.f32 %v1836, 0.0
      %v1981 = vmax.f32 %v1837, 0.0
      %v1982 = vmax.f32 %v1838, 0.0
      %v1983 = vmax.f32 %v1839, 0.0
      %v1984 = vmax.f32 %v1840, 0.0
      %v1985 = vmax.f32 %v1841, 0.0
      %v1986 = vmax.f32 %v1842, 0.0
      %v1987 = vmax.f32 %v1843, 0.0
      %v1988 = vmax.f32 %v1844, 0.0
      %v1989 = vmax.f32 %v1845, 0.0
      %v1990 = vmax.f32 %v1846, 0.0
      %v1991 = vmax.f32 %v1847, 0.0
      %v1992 = vmax.f32 %v1848, 0.0
      %v1993 = vmax.f32 %v1849, 0.0
      %v1994 = vmax.f32 %v1850, 0.0
      %v1995 = vmax.f32 %v1851, 0.0
      %v1996 = vmax.f32 %v1852, 0.0
      %v1997 = vmax.f32 %v1853, 0.0
      %v1998 = vmax.f32 %v1854, 0.0
      %v1999 = vmax.f32 %v1855, 0.0
      %v2000 = vmax.f32 %v1856, 0.0
      %v2001 = vmax.f32 %v1857, 0.0
      %v2002 = vmax.f32 %v1858, 0.0
      %v2003 = vmax.f32 %v1859, 0.0
      %v2004 = vmax.f32 %v1860, 0.0
      %v2005 = vmax.f32 %v1861, 0.0
      %v2006 = vmax.f32 %v1862, 0.0
      %v2007 = vmax.f32 %v1863, 0.0
      %v2008 = vmax.f32 %v1864, 0.0
      %v2009 = vmax.f32 %v1865, 0.0
      %v2010 = vmax.f32 %v1866, 0.0
      %v2011 = vmax.f32 %v1867, 0.0
      %v2012 = vmax.f32 %v1868, 0.0
      %v2013 = vmax.f32 %v1869, 0.0
      %v2014 = vmax.f32 %v1870, 0.0
      %v2015 = vmax.f32 %v1871, 0.0
      %v2016 = vmax.f32 %v1872, 0.0
      %v2017 = vmax.f32 %v1873, 0.0
      %v2018 = vmax.f32 %v1874, 0.0
      %v2019 = vmax.f32 %v1875, 0.0
      %v2020 = vmax.f32 %v1876, 0.0
      %v2021 = vmax.f32 %v1877, 0.0
      %v2022 = vmax.f32 %v1878, 0.0
      %v2023 = vmax.f32 %v1879, 0.0
      %v2024 = vmax.f32 %v1880, 0.0
      %v2025 = vmax.f32 %v1881, 0.0
      %v2026 = vmax.f32 %v1882, 0.0
      %v2027 = vmax.f32 %v1883, 0.0
      %v2028 = vmax.f32 %v1884, 0.0
      %v2029 = vmax.f32 %v1885, 0.0
      %v2030 = vmax.f32 %v1886, 0.0
      %v2031 = vmax.f32 %v1887, 0.0
      %v2032 = vmax.f32 %v1888, 0.0
      %v2033 = vmax.f32 %v1889, 0.0
      %v2034 = vmax.f32 %v1890, 0.0
      %v2035 = vmax.f32 %v1891, 0.0
      %v2036 = vmax.f32 %v1892, 0.0
      %v2037 = vmax.f32 %v1893, 0.0
      %v2038 = vmax.f32 %v1894, 0.0
      %v2039 = vmax.f32 %v1895, 0.0
      %v2040 = vmax.f32 %v1896, 0.0
      %v2041 = vmax.f32 %v1897, 0.0
      %v2042 = vadd.f32 %v1898, 0.001
      %v2043 = vadd.f32 %v1899, 0.001
      %v2044 = vadd.f32 %v1900, 0.001
      %v2045 = vadd.f32 %v1901, 0.001
      %v2046 = vadd.f32 %v1902, 0.001
      %v2047 = vadd.f32 %v1903, 0.001
      %v2048 = vadd.f32 %v1904, 0.001
      %v2049 = vadd.f32 %v1905, 0.001
      %v2050 = vadd.f32 %v1906, 0.001
      %v2051 = vadd.f32 %v1907, 0.001
      %v2052 = vadd.f32 %v1908, 0.001
      %v2053 = vadd.f32 %v1909, 0.001
      %v2054 = vadd.f32 %v1910, 0.001
      %v2055 = vadd.f32 %v1911, 0.001
      %v2056 = vadd.f32 %v1912, 0.001
      %v2057 = vadd.f32 %v1913, 0.001
      %v2058 = vadd.f32 %v1914, 0.001
      %v2059 = vadd.f32 %v1915, 0.001
      %v2060 = vadd.f32 %v1916, 0.001
      %v2061 = vadd.f32 %v1917, 0.001
      %v2062 = vadd.f32 %v1918, 0.001
      %v2063 = vadd.f32 %v1919, 0.001
      %v2064 = vadd.f32 %v1920, 0.001
      %v2065 = vadd.f32 %v1921, 0.001
      %v2066 = vadd.f32 %v1922, 0.001
      %v2067 = vadd.f32 %v1923, 0.001
      %v2068 = vadd.f32 %v1924, 0.001
      %v2069 = vadd.f32 %v1925, 0.001
      %v2070 = vadd.f32 %v1926, 0.001
      %v2071 = vadd.f32 %v1927, 0.001
      %v2072 = vadd.f32 %v1928, 0.001
      %v2073 = vadd.f32 %v1929, 0.001
      %v2074 = vadd.f32 %v1930, 0.001
      %v2075 = vadd.f32 %v1931, 0.001
      %v2076 = vadd.f32 %v1932, 0.001
      %v2077 = vadd.f32 %v1933, 0.001
      %v2078 = vadd.f32 %v1934, 0.001
      %v2079 = vadd.f32 %v1935, 0.001
      %v2080 = vadd.f32 %v1936, 0.001
      %v2081 = vadd.f32 %v1937, 0.001
      %v2082 = vadd.f32 %v1938, 0.001
      %v2083 = vadd.f32 %v1939, 0.001
      %v2084 = vadd.f32 %v1940, 0.001
      %v2085 = vadd.f32 %v1941, 0.001
      %v2086 = vadd.f32 %v1942, 0.001
      %v2087 = vadd.f32 %v1943, 0.001
      %v2088 = vadd.f32 %v1944, 0.001
      %v2089 = vadd.f32 %v1945, 0.001
      %v2090 = vadd.f32 %v1946, 0.001
      %v2091 = vadd.f32 %v1947, 0.001
      %v2092 = vadd.f32 %v1948, 0.001
      %v2093 = vadd.f32 %v1949, 0.001
      %v2094 = vadd.f32 %v1950, 0.001
      %v2095 = vadd.f32 %v1951, 0.001
      %v2096 = vadd.f32 %v1952, 0.001
      %v2097 = vadd.f32 %v1953, 0.001
      %v2098 = vadd.f32 %v1954, 0.001
      %v2099 = vadd.f32 %v1955, 0.001
      %v2100 = vadd.f32 %v1956, 0.001
      %v2101 = vadd.f32 %v1957, 0.001
      %v2102 = vadd.f32 %v1958, 0.001
      %v2103 = vadd.f32 %v1959, 0.001
      %v2104 = vadd.f32 %v1960, 0.001
      %v2105 = vadd.f32 %v1961, 0.001
      %v2106 = vadd.f32 %v1962, 0.001
      %v2107 = vadd.f32 %v1963, 0.001
      %v2108 = vadd.f32 %v1964, 0.001
      %v2109 = vadd.f32 %v1965, 0.001
      %v2110 = vadd.f32 %v1966, 0.001
      %v2111 = vadd.f32 %v1967, 0.001
      %v2112 = vadd.f32 %v1968, 0.001
      %v2113 = vadd.f32 %v1969, 0.001
      %v2114 = vadd.f32 %v1970, 0.001
      %v2115 = vadd.f32 %v1971, 0.001
      %v2116 = vadd.f32 %v1972, 0.001
      %v2117 = vadd.f32 %v1973, 0.001
      %v2118 = vadd.f32 %v1974, 0.001
      %v2119 = vadd.f32 %v1975, 0.001
      %v2120 = vadd.f32 %v1976, 0.001
      %v2121 = vadd.f32 %v1977, 0.001
      %v2122 = vadd.f32 %v1978, 0.001
      %v2123 = vadd.f32 %v1979, 0.001
      %v2124 = vadd.f32 %v1980, 0.001
      %v2125 = vadd.f32 %v1981, 0.001
      %v2126 = vadd.f32 %v1982, 0.001
      %v2127 = vadd.f32 %v1983, 0.001
      %v2128 = vadd.f32 %v1984, 0.001
      %v2129 = vadd.f32 %v1985, 0.001
      %v2130 = vadd.f32 %v1986, 0.001
      %v2131 = vadd.f32 %v1987, 0.001
      %v2132 = vadd.f32 %v1988, 0.001
      %v2133 = vadd.f32 %v1989, 0.001
      %v2134 = vadd.f32 %v1990, 0.001
      %v2135 = vadd.f32 %v1991, 0.001
      %v2136 = vadd.f32 %v1992, 0.001
      %v2137 = vadd.f32 %v1993, 0.001
      %v2138 = vadd.f32 %v1994, 0.001
      %v2139 = vadd.f32 %v1995, 0.001
      %v2140 = vadd.f32 %v1996, 0.001
      %v2141 = vadd.f32 %v1997, 0.001
      %v2142 = vadd.f32 %v1998, 0.001
      %v2143 = vadd.f32 %v1999, 0.001
      %v2144 = vadd.f32 %v2000, 0.001
      %v2145 = vadd.f32 %v2001, 0.001
      %v2146 = vadd.f32 %v2002, 0.001
      %v2147 = vadd.f32 %v2003, 0.001
      %v2148 = vadd.f32 %v2004, 0.001
      %v2149 = vadd.f32 %v2005, 0.001
      %v2150 = vadd.f32 %v2006, 0.001
      %v2151 = vadd.f32 %v2007, 0.001
      %v2152 = vadd.f32 %v2008, 0.001
      %v2153 = vadd.f32 %v2009, 0.001
      %v2154 = vadd.f32 %v2010, 0.001
      %v2155 = vadd.f32 %v2011, 0.001
      %v2156 = vadd.f32 %v2012, 0.001
      %v2157 = vadd.f32 %v2013, 0.001
      %v2158 = vadd.f32 %v2014, 0.001
      %v2159 = vadd.f32 %v2015, 0.001
      %v2160 = vadd.f32 %v2016, 0.001
      %v2161 = vadd.f32 %v2017, 0.001
      %v2162 = vadd.f32 %v2018, 0.001
      %v2163 = vadd.f32 %v2019, 0.001
      %v2164 = vadd.f32 %v2020, 0.001
      %v2165 = vadd.f32 %v2021, 0.001
      %v2166 = vadd.f32 %v2022, 0.001
      %v2167 = vadd.f32 %v2023, 0.001
      %v2168 = vadd.f32 %v2024, 0.001
      %v2169 = vadd.f32 %v2025, 0.001
      %v2170 = vadd.f32 %v2026, 0.001
      %v2171 = vadd.f32 %v2027, 0.001
      %v2172 = vadd.f32 %v2028, 0.001
      %v2173 = vadd.f32 %v2029, 0.001
      %v2174 = vadd.f32 %v2030, 0.001
      %v2175 = vadd.f32 %v2031, 0.001
      %v2176 = vadd.f32 %v2032, 0.001
      %v2177 = vadd.f32 %v2033, 0.001
      %v2178 = vadd.f32 %v2034, 0.001
      %v2179 = vadd.f32 %v2035, 0.001
      %v2180 = vadd.f32 %v2036, 0.001
      %v2181 = vadd.f32 %v2037, 0.001
      %v2182 = vadd.f32 %v2038, 0.001
      %v2183 = vadd.f32 %v2039, 0.001
      %v2184 = vadd.f32 %v2040, 0.001
      %v2185 = vadd.f32 %v2041, 0.001
      %v2186 = vrsqrt.pop %v2042
      %v2187 = vrsqrt.pop %v2043
      %v2188 = vrsqrt.pop %v2044
      %v2189 = vrsqrt.pop %v2045
      %v2190 = vrsqrt.pop %v2046
      %v2191 = vrsqrt.pop %v2047
      %v2192 = vrsqrt.pop %v2048
      %v2193 = vrsqrt.pop %v2049
      %v2194 = vrsqrt.pop %v2050
      %v2195 = vrsqrt.pop %v2051
      %v2196 = vrsqrt.pop %v2052
      %v2197 = vrsqrt.pop %v2053
      %v2198 = vrsqrt.pop %v2054
      %v2199 = vrsqrt.pop %v2055
      %v2200 = vrsqrt.pop %v2056
      %v2201 = vrsqrt.pop %v2057
      %v2202 = vrsqrt.pop %v2058
      %v2203 = vrsqrt.pop %v2059
      %v2204 = vrsqrt.pop %v2060
      %v2205 = vrsqrt.pop %v2061
      %v2206 = vrsqrt.pop %v2062
      %v2207 = vrsqrt.pop %v2063
      %v2208 = vrsqrt.pop %v2064
      %v2209 = vrsqrt.pop %v2065
      %v2210 = vrsqrt.pop %v2066
      %v2211 = vrsqrt.pop %v2067
      %v2212 = vrsqrt.pop %v2068
      %v2213 = vrsqrt.pop %v2069
      %v2214 = vrsqrt.pop %v2070
      %v2215 = vrsqrt.pop %v2071
      %v2216 = vrsqrt.pop %v2072
      %v2217 = vrsqrt.pop %v2073
      %v2218 = vrsqrt.pop %v2074
      %v2219 = vrsqrt.pop %v2075
      %v2220 = vrsqrt.pop %v2076
      %v2221 = vrsqrt.pop %v2077
      %v2222 = vrsqrt.pop %v2078
      %v2223 = vrsqrt.pop %v2079
      %v2224 = vrsqrt.pop %v2080
      %v2225 = vrsqrt.pop %v2081
      %v2226 = vrsqrt.pop %v2082
      %v2227 = vrsqrt.pop %v2083
      %v2228 = vrsqrt.pop %v2084
      %v2229 = vrsqrt.pop %v2085
      %v2230 = vrsqrt.pop %v2086
      %v2231 = vrsqrt.pop %v2087
      %v2232 = vrsqrt.pop %v2088
      %v2233 = vrsqrt.pop %v2089
      %v2234 = vrsqrt.pop %v2090
      %v2235 = vrsqrt.pop %v2091
      %v2236 = vrsqrt.pop %v2092
      %v2237 = vrsqrt.pop %v2093
      %v2238 = vrsqrt.pop %v2094
      %v2239 = vrsqrt.pop %v2095
      %v2240 = vrsqrt.pop %v2096
      %v2241 = vrsqrt.pop %v2097
      %v2242 = vrsqrt.pop %v2098
      %v2243 = vrsqrt.pop %v2099
      %v2244 = vrsqrt.pop %v2100
      %v2245 = vrsqrt.pop %v2101
      %v2246 = vrsqrt.pop %v2102
      %v2247 = vrsqrt.pop %v2103
      %v2248 = vrsqrt.pop %v2104
      %v2249 = vrsqrt.pop %v2105
      %v2250 = vrsqrt.pop %v2106
      %v2251 = vrsqrt.pop %v2107
      %v2252 = vrsqrt.pop %v2108
      %v2253 = vrsqrt.pop %v2109
      %v2254 = vrsqrt.pop %v2110
      %v2255 = vrsqrt.pop %v2111
      %v2256 = vrsqrt.pop %v2112
      %v2257 = vrsqrt.pop %v2113
      %v2258 = vrsqrt.pop %v2114
      %v2259 = vrsqrt.pop %v2115
      %v2260 = vrsqrt.pop %v2116
      %v2261 = vrsqrt.pop %v2117
      %v2262 = vrsqrt.pop %v2118
      %v2263 = vrsqrt.pop %v2119
      %v2264 = vrsqrt.pop %v2120
      %v2265 = vrsqrt.pop %v2121
      %v2266 = vrsqrt.pop %v2122
      %v2267 = vrsqrt.pop %v2123
      %v2268 = vrsqrt.pop %v2124
      %v2269 = vrsqrt.pop %v2125
      %v2270 = vrsqrt.pop %v2126
      %v2271 = vrsqrt.pop %v2127
      %v2272 = vrsqrt.pop %v2128
      %v2273 = vrsqrt.pop %v2129
      %v2274 = vrsqrt.pop %v2130
      %v2275 = vrsqrt.pop %v2131
      %v2276 = vrsqrt.pop %v2132
      %v2277 = vrsqrt.pop %v2133
      %v2278 = vrsqrt.pop %v2134
      %v2279 = vrsqrt.pop %v2135
      %v2280 = vrsqrt.pop %v2136
      %v2281 = vrsqrt.pop %v2137
      %v2282 = vrsqrt.pop %v2138
      %v2283 = vrsqrt.pop %v2139
      %v2284 = vrsqrt.pop %v2140
      %v2285 = vrsqrt.pop %v2141
      %v2286 = vrsqrt.pop %v2142
      %v2287 = vrsqrt.pop %v2143
      %v2288 = vrsqrt.pop %v2144
      %v2289 = vrsqrt.pop %v2145
      %v2290 = vrsqrt.pop %v2146
      %v2291 = vrsqrt.pop %v2147
      %v2292 = vrsqrt.pop %v2148
      %v2293 = vrsqrt.pop %v2149
      %v2294 = vrsqrt.pop %v2150
      %v2295 = vrsqrt.pop %v2151
      %v2296 = vrsqrt.pop %v2152
      %v2297 = vrsqrt.pop %v2153
      %v2298 = vrsqrt.pop %v2154
      %v2299 = vrsqrt.pop %v2155
      %v2300 = vrsqrt.pop %v2156
      %v2301 = vrsqrt.pop %v2157
      %v2302 = vrsqrt.pop %v2158
      %v2303 = vrsqrt.pop %v2159
      %v2304 = vrsqrt.pop %v2160
      %v2305 = vrsqrt.pop %v2161
      %v2306 = vrsqrt.pop %v2162
      %v2307 = vrsqrt.pop %v2163
      %v2308 = vrsqrt.pop %v2164
      %v2309 = vrsqrt.pop %v2165
      %v2310 = vrsqrt.pop %v2166
      %v2311 = vrsqrt.pop %v2167
      %v2312 = vrsqrt.pop %v2168
      %v2313 = vrsqrt.pop %v2169
      %v2314 = vrsqrt.pop %v2170
      %v2315 = vrsqrt.pop %v2171
      %v2316 = vrsqrt.pop %v2172
      %v2317 = vrsqrt.pop %v2173
      %v2318 = vrsqrt.pop %v2174
      %v2319 = vrsqrt.pop %v2175
      %v2320 = vrsqrt.pop %v2176
      %v2321 = vrsqrt.pop %v2177
      %v2322 = vrsqrt.pop %v2178
      %v2323 = vrsqrt.pop %v2179
      %v2324 = vrsqrt.pop %v2180
      %v2325 = vrsqrt.pop %v2181
      %v2326 = vrsqrt.pop %v2182
      %v2327 = vrsqrt.pop %v2183
      %v2328 = vrsqrt.pop %v2184
      %v2329 = vrsqrt.pop %v2185
      %v2330 = vld [vmem:[%s161] sm:$0xff]
      %v2331 = vld [vmem:[%s161 + $0x8] sm:$0xff]
      %v2332 = vld [vmem:[%s161 + $0x10] sm:$0xff]
      %v2333 = vld [vmem:[%s161 + $0x18] sm:$0xff]
      %v2334 = vld [vmem:[%s161 + $0x20] sm:$0xff]
      %v2335 = vld [vmem:[%s161 + $0x28] sm:$0xff]
      %v2336 = vld [vmem:[%s161 + $0x30] sm:$0xff]
      %v2337 = vld [vmem:[%s161 + $0x38] sm:$0xff]
      %v2338 = vld [vmem:[%s161 + $0x40] sm:$0xff]
      %v2339 = vld [vmem:[%s161 + $0x48] sm:$0xff]
      %v2340 = vld [vmem:[%s161 + $0x50] sm:$0xff]
      %v2341 = vld [vmem:[%s161 + $0x58] sm:$0xff]
      %v2342 = vld [vmem:[%s161 + $0x60] sm:$0xff]
      %v2343 = vld [vmem:[%s161 + $0x68] sm:$0xff]
      %v2344 = vld [vmem:[%s161 + $0x70] sm:$0xff]
      %v2345 = vld [vmem:[%s161 + $0x78] sm:$0xff]
      %v2346 = vld [vmem:[%s161 + $0x80] sm:$0xff]
      %v2347 = vld [vmem:[%s161 + $0x88] sm:$0xff]
      %v2348 = vld [vmem:[%s161 + $0x90] sm:$0xff]
      %v2349 = vld [vmem:[%s161 + $0x98] sm:$0xff]
      %v2350 = vld [vmem:[%s161 + $0xa0] sm:$0xff]
      %v2351 = vld [vmem:[%s161 + $0xa8] sm:$0xff]
      %v2352 = vld [vmem:[%s161 + $0xb0] sm:$0xff]
      %v2353 = vld [vmem:[%s161 + $0xb8] sm:$0xff]
      %v2354 = vld [vmem:[%s161 + $0xc0] sm:$0xff]
      %v2355 = vld [vmem:[%s161 + $0xc8] sm:$0xff]
      %v2356 = vld [vmem:[%s161 + $0xd0] sm:$0xff]
      %v2357 = vld [vmem:[%s161 + $0xd8] sm:$0xff]
      %v2358 = vld [vmem:[%s161 + $0xe0] sm:$0xff]
      %v2359 = vld [vmem:[%s161 + $0xe8] sm:$0xff]
      %v2360 = vld [vmem:[%s161 + $0xf0] sm:$0xff]
      %v2361 = vld [vmem:[%s161 + $0xf8] sm:$0xff]
      %v2362 = vld [vmem:[%s161 + $0x100] sm:$0xff]
      %v2363 = vld [vmem:[%s161 + $0x108] sm:$0xff]
      %v2364 = vld [vmem:[%s161 + $0x110] sm:$0xff]
      %v2365 = vld [vmem:[%s161 + $0x118] sm:$0xff]
      %v2366 = vld [vmem:[%s161 + $0x120] sm:$0xff]
      %v2367 = vld [vmem:[%s161 + $0x128] sm:$0xff]
      %v2368 = vld [vmem:[%s161 + $0x130] sm:$0xff]
      %v2369 = vld [vmem:[%s161 + $0x138] sm:$0xff]
      %v2370 = vld [vmem:[%s161 + $0x140] sm:$0xff]
      %v2371 = vld [vmem:[%s161 + $0x148] sm:$0xff]
      %v2372 = vld [vmem:[%s161 + $0x150] sm:$0xff]
      %v2373 = vld [vmem:[%s161 + $0x158] sm:$0xff]
      %v2374 = vld [vmem:[%s161 + $0x160] sm:$0xff]
      %v2375 = vld [vmem:[%s161 + $0x168] sm:$0xff]
      %v2376 = vld [vmem:[%s161 + $0x170] sm:$0xff]
      %v2377 = vld [vmem:[%s161 + $0x178] sm:$0xff]
      %v2378 = vld [vmem:[%s161 + $0x180] sm:$0xff]
      %v2379 = vld [vmem:[%s161 + $0x188] sm:$0xff]
      %v2380 = vld [vmem:[%s161 + $0x190] sm:$0xff]
      %v2381 = vld [vmem:[%s161 + $0x198] sm:$0xff]
      %v2382 = vld [vmem:[%s161 + $0x1a0] sm:$0xff]
      %v2383 = vld [vmem:[%s161 + $0x1a8] sm:$0xff]
      %v2384 = vld [vmem:[%s161 + $0x1b0] sm:$0xff]
      %v2385 = vld [vmem:[%s161 + $0x1b8] sm:$0xff]
      %v2386 = vld [vmem:[%s161 + $0x1c0] sm:$0xff]
      %v2387 = vld [vmem:[%s161 + $0x1c8] sm:$0xff]
      %v2388 = vld [vmem:[%s161 + $0x1d0] sm:$0xff]
      %v2389 = vld [vmem:[%s161 + $0x1d8] sm:$0xff]
      %v2390 = vld [vmem:[%s161 + $0x1e0] sm:$0xff]
      %v2391 = vld [vmem:[%s161 + $0x1e8] sm:$0xff]
      %v2392 = vld [vmem:[%s161 + $0x1f0] sm:$0xff]
      %v2393 = vld [vmem:[%s161 + $0x1f8] sm:$0xff]
      %v2394 = vld [vmem:[%s161 + $0x200] sm:$0xff]
      %v2395 = vld [vmem:[%s161 + $0x208] sm:$0xff]
      %v2396 = vld [vmem:[%s161 + $0x210] sm:$0xff]
      %v2397 = vld [vmem:[%s161 + $0x218] sm:$0xff]
      %v2398 = vld [vmem:[%s161 + $0x220] sm:$0xff]
      %v2399 = vld [vmem:[%s161 + $0x228] sm:$0xff]
      %v2400 = vld [vmem:[%s161 + $0x230] sm:$0xff]
      %v2401 = vld [vmem:[%s161 + $0x238] sm:$0xff]
      %v2402 = vld [vmem:[%s161 + $0x240] sm:$0xff]
      %v2403 = vld [vmem:[%s161 + $0x248] sm:$0xff]
      %v2404 = vld [vmem:[%s161 + $0x250] sm:$0xff]
      %v2405 = vld [vmem:[%s161 + $0x258] sm:$0xff]
      %v2406 = vld [vmem:[%s161 + $0x260] sm:$0xff]
      %v2407 = vld [vmem:[%s161 + $0x268] sm:$0xff]
      %v2408 = vld [vmem:[%s161 + $0x270] sm:$0xff]
      %v2409 = vld [vmem:[%s161 + $0x278] sm:$0xff]
      %v2410 = vld [vmem:[%s161 + $0x280] sm:$0xff]
      %v2411 = vld [vmem:[%s161 + $0x288] sm:$0xff]
      %v2412 = vld [vmem:[%s161 + $0x290] sm:$0xff]
      %v2413 = vld [vmem:[%s161 + $0x298] sm:$0xff]
      %v2414 = vld [vmem:[%s161 + $0x2a0] sm:$0xff]
      %v2415 = vld [vmem:[%s161 + $0x2a8] sm:$0xff]
      %v2416 = vld [vmem:[%s161 + $0x2b0] sm:$0xff]
      %v2417 = vld [vmem:[%s161 + $0x2b8] sm:$0xff]
      %v2418 = vld [vmem:[%s161 + $0x2c0] sm:$0xff]
      %v2419 = vld [vmem:[%s161 + $0x2c8] sm:$0xff]
      %v2420 = vld [vmem:[%s161 + $0x2d0] sm:$0xff]
      %v2421 = vld [vmem:[%s161 + $0x2d8] sm:$0xff]
      %v2422 = vld [vmem:[%s161 + $0x2e0] sm:$0xff]
      %v2423 = vld [vmem:[%s161 + $0x2e8] sm:$0xff]
      %v2424 = vld [vmem:[%s161 + $0x2f0] sm:$0xff]
      %v2425 = vld [vmem:[%s161 + $0x2f8] sm:$0xff]
      %v2426 = vld [vmem:[%s161 + $0x300] sm:$0xff]
      %v2427 = vld [vmem:[%s161 + $0x308] sm:$0xff]
      %v2428 = vld [vmem:[%s161 + $0x310] sm:$0xff]
      %v2429 = vld [vmem:[%s161 + $0x318] sm:$0xff]
      %v2430 = vld [vmem:[%s161 + $0x320] sm:$0xff]
      %v2431 = vld [vmem:[%s161 + $0x328] sm:$0xff]
      %v2432 = vld [vmem:[%s161 + $0x330] sm:$0xff]
      %v2433 = vld [vmem:[%s161 + $0x338] sm:$0xff]
      %v2434 = vld [vmem:[%s161 + $0x340] sm:$0xff]
      %v2435 = vld [vmem:[%s161 + $0x348] sm:$0xff]
      %v2436 = vld [vmem:[%s161 + $0x350] sm:$0xff]
      %v2437 = vld [vmem:[%s161 + $0x358] sm:$0xff]
      %v2438 = vld [vmem:[%s161 + $0x360] sm:$0xff]
      %v2439 = vld [vmem:[%s161 + $0x368] sm:$0xff]
      %v2440 = vld [vmem:[%s161 + $0x370] sm:$0xff]
      %v2441 = vld [vmem:[%s161 + $0x378] sm:$0xff]
      %v2442 = vld [vmem:[%s161 + $0x380] sm:$0xff]
      %v2443 = vld [vmem:[%s161 + $0x388] sm:$0xff]
      %v2444 = vld [vmem:[%s161 + $0x390] sm:$0xff]
      %v2445 = vld [vmem:[%s161 + $0x398] sm:$0xff]
      %v2446 = vld [vmem:[%s161 + $0x3a0] sm:$0xff]
      %v2447 = vld [vmem:[%s161 + $0x3a8] sm:$0xff]
      %v2448 = vld [vmem:[%s161 + $0x3b0] sm:$0xff]
      %v2449 = vld [vmem:[%s161 + $0x3b8] sm:$0xff]
      %v2450 = vld [vmem:[%s161 + $0x3c0] sm:$0xff]
      %v2451 = vld [vmem:[%s161 + $0x3c8] sm:$0xff]
      %v2452 = vld [vmem:[%s161 + $0x3d0] sm:$0xff]
      %v2453 = vld [vmem:[%s161 + $0x3d8] sm:$0xff]
      %v2454 = vld [vmem:[%s161 + $0x3e0] sm:$0xff]
      %v2455 = vld [vmem:[%s161 + $0x3e8] sm:$0xff]
      %v2456 = vld [vmem:[%s161 + $0x3f0] sm:$0xff]
      %v2457 = vld [vmem:[%s161 + $0x3f8] sm:$0xff]
      %v2458 = vld [vmem:[%s161 + $0x400] sm:$0xff]
      %v2459 = vld [vmem:[%s161 + $0x408] sm:$0xff]
      %v2460 = vld [vmem:[%s161 + $0x410] sm:$0xff]
      %v2461 = vld [vmem:[%s161 + $0x418] sm:$0xff]
      %v2462 = vld [vmem:[%s161 + $0x420] sm:$0xff]
      %v2463 = vld [vmem:[%s161 + $0x428] sm:$0xff]
      %v2464 = vld [vmem:[%s161 + $0x430] sm:$0xff]
      %v2465 = vld [vmem:[%s161 + $0x438] sm:$0xff]
      %v2466 = vld [vmem:[%s161 + $0x440] sm:$0xff]
      %v2467 = vld [vmem:[%s161 + $0x448] sm:$0xff]
      %v2468 = vld [vmem:[%s161 + $0x450] sm:$0xff]
      %v2469 = vld [vmem:[%s161 + $0x458] sm:$0xff]
      %v2470 = vld [vmem:[%s161 + $0x460] sm:$0xff]
      %v2471 = vld [vmem:[%s161 + $0x468] sm:$0xff]
      %v2472 = vld [vmem:[%s161 + $0x470] sm:$0xff]
      %v2473 = vld [vmem:[%s161 + $0x478] sm:$0xff]
      %v2474 = vmul.f32 %v2186, %v2330
      %v2475 = vmul.f32 %v2187, %v2331
      %v2476 = vmul.f32 %v2188, %v2332
      %v2477 = vmul.f32 %v2189, %v2333
      %v2478 = vmul.f32 %v2190, %v2334
      %v2479 = vmul.f32 %v2191, %v2335
      %v2480 = vmul.f32 %v2192, %v2336
      %v2481 = vmul.f32 %v2193, %v2337
      %v2482 = vmul.f32 %v2194, %v2338
      %v2483 = vmul.f32 %v2195, %v2339
      %v2484 = vmul.f32 %v2196, %v2340
      %v2485 = vmul.f32 %v2197, %v2341
      %v2486 = vmul.f32 %v2198, %v2342
      %v2487 = vmul.f32 %v2199, %v2343
      %v2488 = vmul.f32 %v2200, %v2344
      %v2489 = vmul.f32 %v2201, %v2345
      %v2490 = vmul.f32 %v2202, %v2346
      %v2491 = vmul.f32 %v2203, %v2347
      %v2492 = vmul.f32 %v2204, %v2348
      %v2493 = vmul.f32 %v2205, %v2349
      %v2494 = vmul.f32 %v2206, %v2350
      %v2495 = vmul.f32 %v2207, %v2351
      %v2496 = vmul.f32 %v2208, %v2352
      %v2497 = vmul.f32 %v2209, %v2353
      %v2498 = vmul.f32 %v2210, %v2354
      %v2499 = vmul.f32 %v2211, %v2355
      %v2500 = vmul.f32 %v2212, %v2356
      %v2501 = vmul.f32 %v2213, %v2357
      %v2502 = vmul.f32 %v2214, %v2358
      %v2503 = vmul.f32 %v2215, %v2359
      %v2504 = vmul.f32 %v2216, %v2360
      %v2505 = vmul.f32 %v2217, %v2361
      %v2506 = vmul.f32 %v2218, %v2362
      %v2507 = vmul.f32 %v2219, %v2363
      %v2508 = vmul.f32 %v2220, %v2364
      %v2509 = vmul.f32 %v2221, %v2365
      %v2510 = vmul.f32 %v2222, %v2366
      %v2511 = vmul.f32 %v2223, %v2367
      %v2512 = vmul.f32 %v2224, %v2368
      %v2513 = vmul.f32 %v2225, %v2369
      %v2514 = vmul.f32 %v2226, %v2370
      %v2515 = vmul.f32 %v2227, %v2371
      %v2516 = vmul.f32 %v2228, %v2372
      %v2517 = vmul.f32 %v2229, %v2373
      %v2518 = vmul.f32 %v2230, %v2374
      %v2519 = vmul.f32 %v2231, %v2375
      %v2520 = vmul.f32 %v2232, %v2376
      %v2521 = vmul.f32 %v2233, %v2377
      %v2522 = vmul.f32 %v2234, %v2378
      %v2523 = vmul.f32 %v2235, %v2379
      %v2524 = vmul.f32 %v2236, %v2380
      %v2525 = vmul.f32 %v2237, %v2381
      %v2526 = vmul.f32 %v2238, %v2382
      %v2527 = vmul.f32 %v2239, %v2383
      %v2528 = vmul.f32 %v2240, %v2384
      %v2529 = vmul.f32 %v2241, %v2385
      %v2530 = vmul.f32 %v2242, %v2386
      %v2531 = vmul.f32 %v2243, %v2387
      %v2532 = vmul.f32 %v2244, %v2388
      %v2533 = vmul.f32 %v2245, %v2389
      %v2534 = vmul.f32 %v2246, %v2390
      %v2535 = vmul.f32 %v2247, %v2391
      %v2536 = vmul.f32 %v2248, %v2392
      %v2537 = vmul.f32 %v2249, %v2393
      %v2538 = vmul.f32 %v2250, %v2394
      %v2539 = vmul.f32 %v2251, %v2395
      %v2540 = vmul.f32 %v2252, %v2396
      %v2541 = vmul.f32 %v2253, %v2397
      %v2542 = vmul.f32 %v2254, %v2398
      %v2543 = vmul.f32 %v2255, %v2399
      %v2544 = vmul.f32 %v2256, %v2400
      %v2545 = vmul.f32 %v2257, %v2401
      %v2546 = vmul.f32 %v2258, %v2402
      %v2547 = vmul.f32 %v2259, %v2403
      %v2548 = vmul.f32 %v2260, %v2404
      %v2549 = vmul.f32 %v2261, %v2405
      %v2550 = vmul.f32 %v2262, %v2406
      %v2551 = vmul.f32 %v2263, %v2407
      %v2552 = vmul.f32 %v2264, %v2408
      %v2553 = vmul.f32 %v2265, %v2409
      %v2554 = vmul.f32 %v2266, %v2410
      %v2555 = vmul.f32 %v2267, %v2411
      %v2556 = vmul.f32 %v2268, %v2412
      %v2557 = vmul.f32 %v2269, %v2413
      %v2558 = vmul.f32 %v2270, %v2414
      %v2559 = vmul.f32 %v2271, %v2415
      %v2560 = vmul.f32 %v2272, %v2416
      %v2561 = vmul.f32 %v2273, %v2417
      %v2562 = vmul.f32 %v2274, %v2418
      %v2563 = vmul.f32 %v2275, %v2419
      %v2564 = vmul.f32 %v2276, %v2420
      %v2565 = vmul.f32 %v2277, %v2421
      %v2566 = vmul.f32 %v2278, %v2422
      %v2567 = vmul.f32 %v2279, %v2423
      %v2568 = vmul.f32 %v2280, %v2424
      %v2569 = vmul.f32 %v2281, %v2425
      %v2570 = vmul.f32 %v2282, %v2426
      %v2571 = vmul.f32 %v2283, %v2427
      %v2572 = vmul.f32 %v2284, %v2428
      %v2573 = vmul.f32 %v2285, %v2429
      %v2574 = vmul.f32 %v2286, %v2430
      %v2575 = vmul.f32 %v2287, %v2431
      %v2576 = vmul.f32 %v2288, %v2432
      %v2577 = vmul.f32 %v2289, %v2433
      %v2578 = vmul.f32 %v2290, %v2434
      %v2579 = vmul.f32 %v2291, %v2435
      %v2580 = vmul.f32 %v2292, %v2436
      %v2581 = vmul.f32 %v2293, %v2437
      %v2582 = vmul.f32 %v2294, %v2438
      %v2583 = vmul.f32 %v2295, %v2439
      %v2584 = vmul.f32 %v2296, %v2440
      %v2585 = vmul.f32 %v2297, %v2441
      %v2586 = vmul.f32 %v2298, %v2442
      %v2587 = vmul.f32 %v2299, %v2443
      %v2588 = vmul.f32 %v2300, %v2444
      %v2589 = vmul.f32 %v2301, %v2445
      %v2590 = vmul.f32 %v2302, %v2446
      %v2591 = vmul.f32 %v2303, %v2447
      %v2592 = vmul.f32 %v2304, %v2448
      %v2593 = vmul.f32 %v2305, %v2449
      %v2594 = vmul.f32 %v2306, %v2450
      %v2595 = vmul.f32 %v2307, %v2451
      %v2596 = vmul.f32 %v2308, %v2452
      %v2597 = vmul.f32 %v2309, %v2453
      %v2598 = vmul.f32 %v2310, %v2454
      %v2599 = vmul.f32 %v2311, %v2455
      %v2600 = vmul.f32 %v2312, %v2456
      %v2601 = vmul.f32 %v2313, %v2457
      %v2602 = vmul.f32 %v2314, %v2458
      %v2603 = vmul.f32 %v2315, %v2459
      %v2604 = vmul.f32 %v2316, %v2460
      %v2605 = vmul.f32 %v2317, %v2461
      %v2606 = vmul.f32 %v2318, %v2462
      %v2607 = vmul.f32 %v2319, %v2463
      %v2608 = vmul.f32 %v2320, %v2464
      %v2609 = vmul.f32 %v2321, %v2465
      %v2610 = vmul.f32 %v2322, %v2466
      %v2611 = vmul.f32 %v2323, %v2467
      %v2612 = vmul.f32 %v2324, %v2468
      %v2613 = vmul.f32 %v2325, %v2469
      %v2614 = vmul.f32 %v2326, %v2470
      %v2615 = vmul.f32 %v2327, %v2471
      %v2616 = vmul.f32 %v2328, %v2472
      %v2617 = vmul.f32 %v2329, %v2473
      %v2618 = vmul.f32 %v1322, %v2474
      %v2619 = vmul.f32 %v1323, %v2475
      %v2620 = vmul.f32 %v1324, %v2476
      %v2621 = vmul.f32 %v1325, %v2477
      %v2622 = vmul.f32 %v1326, %v2478
      %v2623 = vmul.f32 %v1327, %v2479
      %v2624 = vmul.f32 %v1328, %v2480
      %v2625 = vmul.f32 %v1329, %v2481
      %v2626 = vmul.f32 %v1330, %v2482
      %v2627 = vmul.f32 %v1331, %v2483
      %v2628 = vmul.f32 %v1332, %v2484
      %v2629 = vmul.f32 %v1333, %v2485
      %v2630 = vmul.f32 %v1334, %v2486
      %v2631 = vmul.f32 %v1335, %v2487
      %v2632 = vmul.f32 %v1336, %v2488
      %v2633 = vmul.f32 %v1337, %v2489
      %v2634 = vmul.f32 %v1338, %v2490
      %v2635 = vmul.f32 %v1339, %v2491
      %v2636 = vmul.f32 %v1340, %v2492
      %v2637 = vmul.f32 %v1341, %v2493
      %v2638 = vmul.f32 %v1342, %v2494
      %v2639 = vmul.f32 %v1343, %v2495
      %v2640 = vmul.f32 %v1344, %v2496
      %v2641 = vmul.f32 %v1345, %v2497
      %v2642 = vmul.f32 %v1346, %v2498
      %v2643 = vmul.f32 %v1347, %v2499
      %v2644 = vmul.f32 %v1348, %v2500
      %v2645 = vmul.f32 %v1349, %v2501
      %v2646 = vmul.f32 %v1350, %v2502
      %v2647 = vmul.f32 %v1351, %v2503
      %v2648 = vmul.f32 %v1352, %v2504
      %v2649 = vmul.f32 %v1353, %v2505
      %v2650 = vmul.f32 %v1354, %v2506
      %v2651 = vmul.f32 %v1355, %v2507
      %v2652 = vmul.f32 %v1356, %v2508
      %v2653 = vmul.f32 %v1357, %v2509
      %v2654 = vmul.f32 %v1358, %v2510
      %v2655 = vmul.f32 %v1359, %v2511
      %v2656 = vmul.f32 %v1360, %v2512
      %v2657 = vmul.f32 %v1361, %v2513
      %v2658 = vmul.f32 %v1362, %v2514
      %v2659 = vmul.f32 %v1363, %v2515
      %v2660 = vmul.f32 %v1364, %v2516
      %v2661 = vmul.f32 %v1365, %v2517
      %v2662 = vmul.f32 %v1366, %v2518
      %v2663 = vmul.f32 %v1367, %v2519
      %v2664 = vmul.f32 %v1368, %v2520
      %v2665 = vmul.f32 %v1369, %v2521
      %v2666 = vmul.f32 %v1370, %v2522
      %v2667 = vmul.f32 %v1371, %v2523
      %v2668 = vmul.f32 %v1372, %v2524
      %v2669 = vmul.f32 %v1373, %v2525
      %v2670 = vmul.f32 %v1374, %v2526
      %v2671 = vmul.f32 %v1375, %v2527
      %v2672 = vmul.f32 %v1376, %v2528
      %v2673 = vmul.f32 %v1377, %v2529
      %v2674 = vmul.f32 %v1378, %v2530
      %v2675 = vmul.f32 %v1379, %v2531
      %v2676 = vmul.f32 %v1380, %v2532
      %v2677 = vmul.f32 %v1381, %v2533
      %v2678 = vmul.f32 %v1382, %v2534
      %v2679 = vmul.f32 %v1383, %v2535
      %v2680 = vmul.f32 %v1384, %v2536
      %v2681 = vmul.f32 %v1385, %v2537
      %v2682 = vmul.f32 %v1386, %v2538
      %v2683 = vmul.f32 %v1387, %v2539
      %v2684 = vmul.f32 %v1388, %v2540
      %v2685 = vmul.f32 %v1389, %v2541
      %v2686 = vmul.f32 %v1390, %v2542
      %v2687 = vmul.f32 %v1391, %v2543
      %v2688 = vmul.f32 %v1392, %v2544
      %v2689 = vmul.f32 %v1393, %v2545
      %v2690 = vmul.f32 %v1394, %v2546
      %v2691 = vmul.f32 %v1395, %v2547
      %v2692 = vmul.f32 %v1396, %v2548
      %v2693 = vmul.f32 %v1397, %v2549
      %v2694 = vmul.f32 %v1398, %v2550
      %v2695 = vmul.f32 %v1399, %v2551
      %v2696 = vmul.f32 %v1400, %v2552
      %v2697 = vmul.f32 %v1401, %v2553
      %v2698 = vmul.f32 %v1402, %v2554
      %v2699 = vmul.f32 %v1403, %v2555
      %v2700 = vmul.f32 %v1404, %v2556
      %v2701 = vmul.f32 %v1405, %v2557
      %v2702 = vmul.f32 %v1406, %v2558
      %v2703 = vmul.f32 %v1407, %v2559
      %v2704 = vmul.f32 %v1408, %v2560
      %v2705 = vmul.f32 %v1409, %v2561
      %v2706 = vmul.f32 %v1410, %v2562
      %v2707 = vmul.f32 %v1411, %v2563
      %v2708 = vmul.f32 %v1412, %v2564
      %v2709 = vmul.f32 %v1413, %v2565
      %v2710 = vmul.f32 %v1414, %v2566
      %v2711 = vmul.f32 %v1415, %v2567
      %v2712 = vmul.f32 %v1416, %v2568
      %v2713 = vmul.f32 %v1417, %v2569
      %v2714 = vmul.f32 %v1418, %v2570
      %v2715 = vmul.f32 %v1419, %v2571
      %v2716 = vmul.f32 %v1420, %v2572
      %v2717 = vmul.f32 %v1421, %v2573
      %v2718 = vmul.f32 %v1422, %v2574
      %v2719 = vmul.f32 %v1423, %v2575
      %v2720 = vmul.f32 %v1424, %v2576
      %v2721 = vmul.f32 %v1425, %v2577
      %v2722 = vmul.f32 %v1426, %v2578
      %v2723 = vmul.f32 %v1427, %v2579
      %v2724 = vmul.f32 %v1428, %v2580
      %v2725 = vmul.f32 %v1429, %v2581
      %v2726 = vmul.f32 %v1430, %v2582
      %v2727 = vmul.f32 %v1431, %v2583
      %v2728 = vmul.f32 %v1432, %v2584
      %v2729 = vmul.f32 %v1433, %v2585
      %v2730 = vmul.f32 %v1434, %v2586
      %v2731 = vmul.f32 %v1435, %v2587
      %v2732 = vmul.f32 %v1436, %v2588
      %v2733 = vmul.f32 %v1437, %v2589
      %v2734 = vmul.f32 %v1438, %v2590
      %v2735 = vmul.f32 %v1439, %v2591
      %v2736 = vmul.f32 %v1440, %v2592
      %v2737 = vmul.f32 %v1441, %v2593
      %v2738 = vmul.f32 %v1442, %v2594
      %v2739 = vmul.f32 %v1443, %v2595
      %v2740 = vmul.f32 %v1444, %v2596
      %v2741 = vmul.f32 %v1445, %v2597
      %v2742 = vmul.f32 %v1446, %v2598
      %v2743 = vmul.f32 %v1447, %v2599
      %v2744 = vmul.f32 %v1448, %v2600
      %v2745 = vmul.f32 %v1449, %v2601
      %v2746 = vmul.f32 %v1450, %v2602
      %v2747 = vmul.f32 %v1451, %v2603
      %v2748 = vmul.f32 %v1452, %v2604
      %v2749 = vmul.f32 %v1453, %v2605
      %v2750 = vmul.f32 %v1454, %v2606
      %v2751 = vmul.f32 %v1455, %v2607
      %v2752 = vmul.f32 %v1456, %v2608
      %v2753 = vmul.f32 %v1457, %v2609
      %v2754 = vmul.f32 %v1458, %v2610
      %v2755 = vmul.f32 %v1459, %v2611
      %v2756 = vmul.f32 %v1460, %v2612
      %v2757 = vmul.f32 %v1461, %v2613
      %v2758 = vmul.f32 %v1462, %v2614
      %v2759 = vmul.f32 %v1463, %v2615
      %v2760 = vmul.f32 %v1464, %v2616
      %v2761 = vmul.f32 %v1465, %v2617
      %2906 = vrot.lane.b32.xlu0 %v2618, 1
      %v2907 = vpop.permute.xlu0 %2906
      %2908 = vrot.lane.b32.xlu0 %v2619, 1
      %v2909 = vpop.permute.xlu0 %2908
      %2910 = vrot.lane.b32.xlu0 %v2620, 1
      %v2911 = vpop.permute.xlu0 %2910
      %2912 = vrot.lane.b32.xlu0 %v2621, 1
      %v2913 = vpop.permute.xlu0 %2912
      %2914 = vrot.lane.b32.xlu0 %v2622, 1
      %v2915 = vpop.permute.xlu0 %2914
      %2916 = vrot.lane.b32.xlu0 %v2623, 1
      %v2917 = vpop.permute.xlu0 %2916
      %2918 = vrot.lane.b32.xlu0 %v2624, 1
      %v2919 = vpop.permute.xlu0 %2918
      %2920 = vrot.lane.b32.xlu0 %v2625, 1
      %v2921 = vpop.permute.xlu0 %2920
      %2922 = vrot.lane.b32.xlu0 %v2626, 1
      %v2923 = vpop.permute.xlu0 %2922
      %2924 = vrot.lane.b32.xlu0 %v2627, 1
      %v2925 = vpop.permute.xlu0 %2924
      %2926 = vrot.lane.b32.xlu0 %v2628, 1
      %v2927 = vpop.permute.xlu0 %2926
      %2928 = vrot.lane.b32.xlu0 %v2629, 1
      %v2929 = vpop.permute.xlu0 %2928
      %2930 = vrot.lane.b32.xlu0 %v2630, 1
      %v2931 = vpop.permute.xlu0 %2930
      %2932 = vrot.lane.b32.xlu0 %v2631, 1
      %v2933 = vpop.permute.xlu0 %2932
      %2934 = vrot.lane.b32.xlu0 %v2632, 1
      %v2935 = vpop.permute.xlu0 %2934
      %2936 = vrot.lane.b32.xlu0 %v2633, 1
      %v2937 = vpop.permute.xlu0 %2936
      %2938 = vrot.lane.b32.xlu0 %v2634, 1
      %v2939 = vpop.permute.xlu0 %2938
      %2940 = vrot.lane.b32.xlu0 %v2635, 1
      %v2941 = vpop.permute.xlu0 %2940
      %2942 = vrot.lane.b32.xlu0 %v2636, 1
      %v2943 = vpop.permute.xlu0 %2942
      %2944 = vrot.lane.b32.xlu0 %v2637, 1
      %v2945 = vpop.permute.xlu0 %2944
      %2946 = vrot.lane.b32.xlu0 %v2638, 1
      %v2947 = vpop.permute.xlu0 %2946
      %2948 = vrot.lane.b32.xlu0 %v2639, 1
      %v2949 = vpop.permute.xlu0 %2948
      %2950 = vrot.lane.b32.xlu0 %v2640, 1
      %v2951 = vpop.permute.xlu0 %2950
      %2952 = vrot.lane.b32.xlu0 %v2641, 1
      %v2953 = vpop.permute.xlu0 %2952
      %2954 = vrot.lane.b32.xlu0 %v2642, 1
      %v2955 = vpop.permute.xlu0 %2954
      %2956 = vrot.lane.b32.xlu0 %v2643, 1
      %v2957 = vpop.permute.xlu0 %2956
      %2958 = vrot.lane.b32.xlu0 %v2644, 1
      %v2959 = vpop.permute.xlu0 %2958
      %2960 = vrot.lane.b32.xlu0 %v2645, 1
      %v2961 = vpop.permute.xlu0 %2960
      %2962 = vrot.lane.b32.xlu0 %v2646, 1
      %v2963 = vpop.permute.xlu0 %2962
      %2964 = vrot.lane.b32.xlu0 %v2647, 1
      %v2965 = vpop.permute.xlu0 %2964
      %2966 = vrot.lane.b32.xlu0 %v2648, 1
      %v2967 = vpop.permute.xlu0 %2966
      %2968 = vrot.lane.b32.xlu0 %v2649, 1
      %v2969 = vpop.permute.xlu0 %2968
      %2970 = vrot.lane.b32.xlu0 %v2650, 1
      %v2971 = vpop.permute.xlu0 %2970
      %2972 = vrot.lane.b32.xlu0 %v2651, 1
      %v2973 = vpop.permute.xlu0 %2972
      %2974 = vrot.lane.b32.xlu0 %v2652, 1
      %v2975 = vpop.permute.xlu0 %2974
      %2976 = vrot.lane.b32.xlu0 %v2653, 1
      %v2977 = vpop.permute.xlu0 %2976
      %2978 = vrot.lane.b32.xlu0 %v2654, 1
      %v2979 = vpop.permute.xlu0 %2978
      %2980 = vrot.lane.b32.xlu0 %v2655, 1
      %v2981 = vpop.permute.xlu0 %2980
      %2982 = vrot.lane.b32.xlu0 %v2656, 1
      %v2983 = vpop.permute.xlu0 %2982
      %2984 = vrot.lane.b32.xlu0 %v2657, 1
      %v2985 = vpop.permute.xlu0 %2984
      %2986 = vrot.lane.b32.xlu0 %v2658, 1
      %v2987 = vpop.permute.xlu0 %2986
      %2988 = vrot.lane.b32.xlu0 %v2659, 1
      %v2989 = vpop.permute.xlu0 %2988
      %2990 = vrot.lane.b32.xlu0 %v2660, 1
      %v2991 = vpop.permute.xlu0 %2990
      %2992 = vrot.lane.b32.xlu0 %v2661, 1
      %v2993 = vpop.permute.xlu0 %2992
      %2994 = vrot.lane.b32.xlu0 %v2662, 1
      %v2995 = vpop.permute.xlu0 %2994
      %2996 = vrot.lane.b32.xlu0 %v2663, 1
      %v2997 = vpop.permute.xlu0 %2996
      %2998 = vrot.lane.b32.xlu0 %v2664, 1
      %v2999 = vpop.permute.xlu0 %2998
      %3000 = vrot.lane.b32.xlu0 %v2665, 1
      %v3001 = vpop.permute.xlu0 %3000
      %3002 = vrot.lane.b32.xlu0 %v2666, 1
      %v3003 = vpop.permute.xlu0 %3002
      %3004 = vrot.lane.b32.xlu0 %v2667, 1
      %v3005 = vpop.permute.xlu0 %3004
      %3006 = vrot.lane.b32.xlu0 %v2668, 1
      %v3007 = vpop.permute.xlu0 %3006
      %3008 = vrot.lane.b32.xlu0 %v2669, 1
      %v3009 = vpop.permute.xlu0 %3008
      %3010 = vrot.lane.b32.xlu0 %v2670, 1
      %v3011 = vpop.permute.xlu0 %3010
      %3012 = vrot.lane.b32.xlu0 %v2671, 1
      %v3013 = vpop.permute.xlu0 %3012
      %3014 = vrot.lane.b32.xlu0 %v2672, 1
      %v3015 = vpop.permute.xlu0 %3014
      %3016 = vrot.lane.b32.xlu0 %v2673, 1
      %v3017 = vpop.permute.xlu0 %3016
      %3018 = vrot.lane.b32.xlu0 %v2674, 1
      %v3019 = vpop.permute.xlu0 %3018
      %3020 = vrot.lane.b32.xlu0 %v2675, 1
      %v3021 = vpop.permute.xlu0 %3020
      %3022 = vrot.lane.b32.xlu0 %v2676, 1
      %v3023 = vpop.permute.xlu0 %3022
      %3024 = vrot.lane.b32.xlu0 %v2677, 1
      %v3025 = vpop.permute.xlu0 %3024
      %3026 = vrot.lane.b32.xlu0 %v2678, 1
      %v3027 = vpop.permute.xlu0 %3026
      %3028 = vrot.lane.b32.xlu0 %v2679, 1
      %v3029 = vpop.permute.xlu0 %3028
      %3030 = vrot.lane.b32.xlu0 %v2680, 1
      %v3031 = vpop.permute.xlu0 %3030
      %3032 = vrot.lane.b32.xlu0 %v2681, 1
      %v3033 = vpop.permute.xlu0 %3032
      %3034 = vrot.lane.b32.xlu0 %v2682, 1
      %v3035 = vpop.permute.xlu0 %3034
      %3036 = vrot.lane.b32.xlu0 %v2683, 1
      %v3037 = vpop.permute.xlu0 %3036
      %3038 = vrot.lane.b32.xlu0 %v2684, 1
      %v3039 = vpop.permute.xlu0 %3038
      %3040 = vrot.lane.b32.xlu0 %v2685, 1
      %v3041 = vpop.permute.xlu0 %3040
      %3042 = vrot.lane.b32.xlu0 %v2686, 1
      %v3043 = vpop.permute.xlu0 %3042
      %3044 = vrot.lane.b32.xlu0 %v2687, 1
      %v3045 = vpop.permute.xlu0 %3044
      %3046 = vrot.lane.b32.xlu0 %v2688, 1
      %v3047 = vpop.permute.xlu0 %3046
      %3048 = vrot.lane.b32.xlu0 %v2689, 1
      %v3049 = vpop.permute.xlu0 %3048
      %3050 = vrot.lane.b32.xlu0 %v2690, 1
      %v3051 = vpop.permute.xlu0 %3050
      %3052 = vrot.lane.b32.xlu0 %v2691, 1
      %v3053 = vpop.permute.xlu0 %3052
      %3054 = vrot.lane.b32.xlu0 %v2692, 1
      %v3055 = vpop.permute.xlu0 %3054
      %3056 = vrot.lane.b32.xlu0 %v2693, 1
      %v3057 = vpop.permute.xlu0 %3056
      %3058 = vrot.lane.b32.xlu0 %v2694, 1
      %v3059 = vpop.permute.xlu0 %3058
      %3060 = vrot.lane.b32.xlu0 %v2695, 1
      %v3061 = vpop.permute.xlu0 %3060
      %3062 = vrot.lane.b32.xlu0 %v2696, 1
      %v3063 = vpop.permute.xlu0 %3062
      %3064 = vrot.lane.b32.xlu0 %v2697, 1
      %v3065 = vpop.permute.xlu0 %3064
      %3066 = vrot.lane.b32.xlu0 %v2698, 1
      %v3067 = vpop.permute.xlu0 %3066
      %3068 = vrot.lane.b32.xlu0 %v2699, 1
      %v3069 = vpop.permute.xlu0 %3068
      %3070 = vrot.lane.b32.xlu0 %v2700, 1
      %v3071 = vpop.permute.xlu0 %3070
      %3072 = vrot.lane.b32.xlu0 %v2701, 1
      %v3073 = vpop.permute.xlu0 %3072
      %3074 = vrot.lane.b32.xlu0 %v2702, 1
      %v3075 = vpop.permute.xlu0 %3074
      %3076 = vrot.lane.b32.xlu0 %v2703, 1
      %v3077 = vpop.permute.xlu0 %3076
      %3078 = vrot.lane.b32.xlu0 %v2704, 1
      %v3079 = vpop.permute.xlu0 %3078
      %3080 = vrot.lane.b32.xlu0 %v2705, 1
      %v3081 = vpop.permute.xlu0 %3080
      %3082 = vrot.lane.b32.xlu0 %v2706, 1
      %v3083 = vpop.permute.xlu0 %3082
      %3084 = vrot.lane.b32.xlu0 %v2707, 1
      %v3085 = vpop.permute.xlu0 %3084
      %3086 = vrot.lane.b32.xlu0 %v2708, 1
      %v3087 = vpop.permute.xlu0 %3086
      %3088 = vrot.lane.b32.xlu0 %v2709, 1
      %v3089 = vpop.permute.xlu0 %3088
      %3090 = vrot.lane.b32.xlu0 %v2710, 1
      %v3091 = vpop.permute.xlu0 %3090
      %3092 = vrot.lane.b32.xlu0 %v2711, 1
      %v3093 = vpop.permute.xlu0 %3092
      %3094 = vrot.lane.b32.xlu0 %v2712, 1
      %v3095 = vpop.permute.xlu0 %3094
      %3096 = vrot.lane.b32.xlu0 %v2713, 1
      %v3097 = vpop.permute.xlu0 %3096
      %3098 = vrot.lane.b32.xlu0 %v2714, 1
      %v3099 = vpop.permute.xlu0 %3098
      %3100 = vrot.lane.b32.xlu0 %v2715, 1
      %v3101 = vpop.permute.xlu0 %3100
      %3102 = vrot.lane.b32.xlu0 %v2716, 1
      %v3103 = vpop.permute.xlu0 %3102
      %3104 = vrot.lane.b32.xlu0 %v2717, 1
      %v3105 = vpop.permute.xlu0 %3104
      %3106 = vrot.lane.b32.xlu0 %v2718, 1
      %v3107 = vpop.permute.xlu0 %3106
      %3108 = vrot.lane.b32.xlu0 %v2719, 1
      %v3109 = vpop.permute.xlu0 %3108
      %3110 = vrot.lane.b32.xlu0 %v2720, 1
      %v3111 = vpop.permute.xlu0 %3110
      %3112 = vrot.lane.b32.xlu0 %v2721, 1
      %v3113 = vpop.permute.xlu0 %3112
      %3114 = vrot.lane.b32.xlu0 %v2722, 1
      %v3115 = vpop.permute.xlu0 %3114
      %3116 = vrot.lane.b32.xlu0 %v2723, 1
      %v3117 = vpop.permute.xlu0 %3116
      %3118 = vrot.lane.b32.xlu0 %v2724, 1
      %v3119 = vpop.permute.xlu0 %3118
      %3120 = vrot.lane.b32.xlu0 %v2725, 1
      %v3121 = vpop.permute.xlu0 %3120
      %3122 = vrot.lane.b32.xlu0 %v2726, 1
      %v3123 = vpop.permute.xlu0 %3122
      %3124 = vrot.lane.b32.xlu0 %v2727, 1
      %v3125 = vpop.permute.xlu0 %3124
      %3126 = vrot.lane.b32.xlu0 %v2728, 1
      %v3127 = vpop.permute.xlu0 %3126
      %3128 = vrot.lane.b32.xlu0 %v2729, 1
      %v3129 = vpop.permute.xlu0 %3128
      %3130 = vrot.lane.b32.xlu0 %v2730, 1
      %v3131 = vpop.permute.xlu0 %3130
      %3132 = vrot.lane.b32.xlu0 %v2731, 1
      %v3133 = vpop.permute.xlu0 %3132
      %3134 = vrot.lane.b32.xlu0 %v2732, 1
      %v3135 = vpop.permute.xlu0 %3134
      %3136 = vrot.lane.b32.xlu0 %v2733, 1
      %v3137 = vpop.permute.xlu0 %3136
      %3138 = vrot.lane.b32.xlu0 %v2734, 1
      %v3139 = vpop.permute.xlu0 %3138
      %3140 = vrot.lane.b32.xlu0 %v2735, 1
      %v3141 = vpop.permute.xlu0 %3140
      %3142 = vrot.lane.b32.xlu0 %v2736, 1
      %v3143 = vpop.permute.xlu0 %3142
      %3144 = vrot.lane.b32.xlu0 %v2737, 1
      %v3145 = vpop.permute.xlu0 %3144
      %3146 = vrot.lane.b32.xlu0 %v2738, 1
      %v3147 = vpop.permute.xlu0 %3146
      %3148 = vrot.lane.b32.xlu0 %v2739, 1
      %v3149 = vpop.permute.xlu0 %3148
      %3150 = vrot.lane.b32.xlu0 %v2740, 1
      %v3151 = vpop.permute.xlu0 %3150
      %3152 = vrot.lane.b32.xlu0 %v2741, 1
      %v3153 = vpop.permute.xlu0 %3152
      %3154 = vrot.lane.b32.xlu0 %v2742, 1
      %v3155 = vpop.permute.xlu0 %3154
      %3156 = vrot.lane.b32.xlu0 %v2743, 1
      %v3157 = vpop.permute.xlu0 %3156
      %3158 = vrot.lane.b32.xlu0 %v2744, 1
      %v3159 = vpop.permute.xlu0 %3158
      %3160 = vrot.lane.b32.xlu0 %v2745, 1
      %v3161 = vpop.permute.xlu0 %3160
      %3162 = vrot.lane.b32.xlu0 %v2746, 1
      %v3163 = vpop.permute.xlu0 %3162
      %3164 = vrot.lane.b32.xlu0 %v2747, 1
      %v3165 = vpop.permute.xlu0 %3164
      %3166 = vrot.lane.b32.xlu0 %v2748, 1
      %v3167 = vpop.permute.xlu0 %3166
      %3168 = vrot.lane.b32.xlu0 %v2749, 1
      %v3169 = vpop.permute.xlu0 %3168
      %3170 = vrot.lane.b32.xlu0 %v2750, 1
      %v3171 = vpop.permute.xlu0 %3170
      %3172 = vrot.lane.b32.xlu0 %v2751, 1
      %v3173 = vpop.permute.xlu0 %3172
      %3174 = vrot.lane.b32.xlu0 %v2752, 1
      %v3175 = vpop.permute.xlu0 %3174
      %3176 = vrot.lane.b32.xlu0 %v2753, 1
      %v3177 = vpop.permute.xlu0 %3176
      %3178 = vrot.lane.b32.xlu0 %v2754, 1
      %v3179 = vpop.permute.xlu0 %3178
      %3180 = vrot.lane.b32.xlu0 %v2755, 1
      %v3181 = vpop.permute.xlu0 %3180
      %3182 = vrot.lane.b32.xlu0 %v2756, 1
      %v3183 = vpop.permute.xlu0 %3182
      %3184 = vrot.lane.b32.xlu0 %v2757, 1
      %v3185 = vpop.permute.xlu0 %3184
      %3186 = vrot.lane.b32.xlu0 %v2758, 1
      %v3187 = vpop.permute.xlu0 %3186
      %3188 = vrot.lane.b32.xlu0 %v2759, 1
      %v3189 = vpop.permute.xlu0 %3188
      %3190 = vrot.lane.b32.xlu0 %v2760, 1
      %v3191 = vpop.permute.xlu0 %3190
      %3192 = vrot.lane.b32.xlu0 %v2761, 1
      %v3193 = vpop.permute.xlu0 %3192
      %v3338 = vsub.f32 %v2330, %v2907
      %v3339 = vsub.f32 %v2331, %v2909
      %v3340 = vsub.f32 %v2332, %v2911
      %v3341 = vsub.f32 %v2333, %v2913
      %v3342 = vsub.f32 %v2334, %v2915
      %v3343 = vsub.f32 %v2335, %v2917
      %v3344 = vsub.f32 %v2336, %v2919
      %v3345 = vsub.f32 %v2337, %v2921
      %v3346 = vsub.f32 %v2338, %v2923
      %v3347 = vsub.f32 %v2339, %v2925
      %v3348 = vsub.f32 %v2340, %v2927
      %v3349 = vsub.f32 %v2341, %v2929
      %v3350 = vsub.f32 %v2342, %v2931
      %v3351 = vsub.f32 %v2343, %v2933
      %v3352 = vsub.f32 %v2344, %v2935
      %v3353 = vsub.f32 %v2345, %v2937
      %v3354 = vsub.f32 %v2346, %v2939
      %v3355 = vsub.f32 %v2347, %v2941
      %v3356 = vsub.f32 %v2348, %v2943
      %v3357 = vsub.f32 %v2349, %v2945
      %v3358 = vsub.f32 %v2350, %v2947
      %v3359 = vsub.f32 %v2351, %v2949
      %v3360 = vsub.f32 %v2352, %v2951
      %v3361 = vsub.f32 %v2353, %v2953
      %v3362 = vsub.f32 %v2354, %v2955
      %v3363 = vsub.f32 %v2355, %v2957
      %v3364 = vsub.f32 %v2356, %v2959
      %v3365 = vsub.f32 %v2357, %v2961
      %v3366 = vsub.f32 %v2358, %v2963
      %v3367 = vsub.f32 %v2359, %v2965
      %v3368 = vsub.f32 %v2360, %v2967
      %v3369 = vsub.f32 %v2361, %v2969
      %v3370 = vsub.f32 %v2362, %v2971
      %v3371 = vsub.f32 %v2363, %v2973
      %v3372 = vsub.f32 %v2364, %v2975
      %v3373 = vsub.f32 %v2365, %v2977
      %v3374 = vsub.f32 %v2366, %v2979
      %v3375 = vsub.f32 %v2367, %v2981
      %v3376 = vsub.f32 %v2368, %v2983
      %v3377 = vsub.f32 %v2369, %v2985
      %v3378 = vsub.f32 %v2370, %v2987
      %v3379 = vsub.f32 %v2371, %v2989
      %v3380 = vsub.f32 %v2372, %v2991
      %v3381 = vsub.f32 %v2373, %v2993
      %v3382 = vsub.f32 %v2374, %v2995
      %v3383 = vsub.f32 %v2375, %v2997
      %v3384 = vsub.f32 %v2376, %v2999
      %v3385 = vsub.f32 %v2377, %v3001
      %v3386 = vsub.f32 %v2378, %v3003
      %v3387 = vsub.f32 %v2379, %v3005
      %v3388 = vsub.f32 %v2380, %v3007
      %v3389 = vsub.f32 %v2381, %v3009
      %v3390 = vsub.f32 %v2382, %v3011
      %v3391 = vsub.f32 %v2383, %v3013
      %v3392 = vsub.f32 %v2384, %v3015
      %v3393 = vsub.f32 %v2385, %v3017
      %v3394 = vsub.f32 %v2386, %v3019
      %v3395 = vsub.f32 %v2387, %v3021
      %v3396 = vsub.f32 %v2388, %v3023
      %v3397 = vsub.f32 %v2389, %v3025
      %v3398 = vsub.f32 %v2390, %v3027
      %v3399 = vsub.f32 %v2391, %v3029
      %v3400 = vsub.f32 %v2392, %v3031
      %v3401 = vsub.f32 %v2393, %v3033
      %v3402 = vsub.f32 %v2394, %v3035
      %v3403 = vsub.f32 %v2395, %v3037
      %v3404 = vsub.f32 %v2396, %v3039
      %v3405 = vsub.f32 %v2397, %v3041
      %v3406 = vsub.f32 %v2398, %v3043
      %v3407 = vsub.f32 %v2399, %v3045
      %v3408 = vsub.f32 %v2400, %v3047
      %v3409 = vsub.f32 %v2401, %v3049
      %v3410 = vsub.f32 %v2402, %v3051
      %v3411 = vsub.f32 %v2403, %v3053
      %v3412 = vsub.f32 %v2404, %v3055
      %v3413 = vsub.f32 %v2405, %v3057
      %v3414 = vsub.f32 %v2406, %v3059
      %v3415 = vsub.f32 %v2407, %v3061
      %v3416 = vsub.f32 %v2408, %v3063
      %v3417 = vsub.f32 %v2409, %v3065
      %v3418 = vsub.f32 %v2410, %v3067
      %v3419 = vsub.f32 %v2411, %v3069
      %v3420 = vsub.f32 %v2412, %v3071
      %v3421 = vsub.f32 %v2413, %v3073
      %v3422 = vsub.f32 %v2414, %v3075
      %v3423 = vsub.f32 %v2415, %v3077
      %v3424 = vsub.f32 %v2416, %v3079
      %v3425 = vsub.f32 %v2417, %v3081
      %v3426 = vsub.f32 %v2418, %v3083
      %v3427 = vsub.f32 %v2419, %v3085
      %v3428 = vsub.f32 %v2420, %v3087
      %v3429 = vsub.f32 %v2421, %v3089
      %v3430 = vsub.f32 %v2422, %v3091
      %v3431 = vsub.f32 %v2423, %v3093
      %v3432 = vsub.f32 %v2424, %v3095
      %v3433 = vsub.f32 %v2425, %v3097
      %v3434 = vsub.f32 %v2426, %v3099
      %v3435 = vsub.f32 %v2427, %v3101
      %v3436 = vsub.f32 %v2428, %v3103
      %v3437 = vsub.f32 %v2429, %v3105
      %v3438 = vsub.f32 %v2430, %v3107
      %v3439 = vsub.f32 %v2431, %v3109
      %v3440 = vsub.f32 %v2432, %v3111
      %v3441 = vsub.f32 %v2433, %v3113
      %v3442 = vsub.f32 %v2434, %v3115
      %v3443 = vsub.f32 %v2435, %v3117
      %v3444 = vsub.f32 %v2436, %v3119
      %v3445 = vsub.f32 %v2437, %v3121
      %v3446 = vsub.f32 %v2438, %v3123
      %v3447 = vsub.f32 %v2439, %v3125
      %v3448 = vsub.f32 %v2440, %v3127
      %v3449 = vsub.f32 %v2441, %v3129
      %v3450 = vsub.f32 %v2442, %v3131
      %v3451 = vsub.f32 %v2443, %v3133
      %v3452 = vsub.f32 %v2444, %v3135
      %v3453 = vsub.f32 %v2445, %v3137
      %v3454 = vsub.f32 %v2446, %v3139
      %v3455 = vsub.f32 %v2447, %v3141
      %v3456 = vsub.f32 %v2448, %v3143
      %v3457 = vsub.f32 %v2449, %v3145
      %v3458 = vsub.f32 %v2450, %v3147
      %v3459 = vsub.f32 %v2451, %v3149
      %v3460 = vsub.f32 %v2452, %v3151
      %v3461 = vsub.f32 %v2453, %v3153
      %v3462 = vsub.f32 %v2454, %v3155
      %v3463 = vsub.f32 %v2455, %v3157
      %v3464 = vsub.f32 %v2456, %v3159
      %v3465 = vsub.f32 %v2457, %v3161
      %v3466 = vsub.f32 %v2458, %v3163
      %v3467 = vsub.f32 %v2459, %v3165
      %v3468 = vsub.f32 %v2460, %v3167
      %v3469 = vsub.f32 %v2461, %v3169
      %v3470 = vsub.f32 %v2462, %v3171
      %v3471 = vsub.f32 %v2463, %v3173
      %v3472 = vsub.f32 %v2464, %v3175
      %v3473 = vsub.f32 %v2465, %v3177
      %v3474 = vsub.f32 %v2466, %v3179
      %v3475 = vsub.f32 %v2467, %v3181
      %v3476 = vsub.f32 %v2468, %v3183
      %v3477 = vsub.f32 %v2469, %v3185
      %v3478 = vsub.f32 %v2470, %v3187
      %v3479 = vsub.f32 %v2471, %v3189
      %v3480 = vsub.f32 %v2472, %v3191
      %v3481 = vsub.f32 %v2473, %v3193
      %3483 = vset.pattern.permute.xlu0 0
      %3484 = vperm.xlu0 %3483, %v2474
      %v3485 = vpop.permute.xlu0 %3484
      %3488 = vset.pattern.permute.xlu0 0
      %3489 = vperm.xlu0 %3488, %v2475
      %v3490 = vpop.permute.xlu0 %3489
      %3493 = vset.pattern.permute.xlu0 0
      %3494 = vperm.xlu0 %3493, %v2476
      %v3495 = vpop.permute.xlu0 %3494
      %3498 = vset.pattern.permute.xlu0 0
      %3499 = vperm.xlu0 %3498, %v2477
      %v3500 = vpop.permute.xlu0 %3499
      %3503 = vset.pattern.permute.xlu0 0
      %3504 = vperm.xlu0 %3503, %v2478
      %v3505 = vpop.permute.xlu0 %3504
      %3508 = vset.pattern.permute.xlu0 0
      %3509 = vperm.xlu0 %3508, %v2479
      %v3510 = vpop.permute.xlu0 %3509
      %3513 = vset.pattern.permute.xlu0 0
      %3514 = vperm.xlu0 %3513, %v2480
      %v3515 = vpop.permute.xlu0 %3514
      %3518 = vset.pattern.permute.xlu0 0
      %3519 = vperm.xlu0 %3518, %v2481
      %v3520 = vpop.permute.xlu0 %3519
      %3523 = vset.pattern.permute.xlu0 0
      %3524 = vperm.xlu0 %3523, %v2482
      %v3525 = vpop.permute.xlu0 %3524
      %3528 = vset.pattern.permute.xlu0 0
      %3529 = vperm.xlu0 %3528, %v2483
      %v3530 = vpop.permute.xlu0 %3529
      %3533 = vset.pattern.permute.xlu0 0
      %3534 = vperm.xlu0 %3533, %v2484
      %v3535 = vpop.permute.xlu0 %3534
      %3538 = vset.pattern.permute.xlu0 0
      %3539 = vperm.xlu0 %3538, %v2485
      %v3540 = vpop.permute.xlu0 %3539
      %3543 = vset.pattern.permute.xlu0 0
      %3544 = vperm.xlu0 %3543, %v2486
      %v3545 = vpop.permute.xlu0 %3544
      %3548 = vset.pattern.permute.xlu0 0
      %3549 = vperm.xlu0 %3548, %v2487
      %v3550 = vpop.permute.xlu0 %3549
      %3553 = vset.pattern.permute.xlu0 0
      %3554 = vperm.xlu0 %3553, %v2488
      %v3555 = vpop.permute.xlu0 %3554
      %3558 = vset.pattern.permute.xlu0 0
      %3559 = vperm.xlu0 %3558, %v2489
      %v3560 = vpop.permute.xlu0 %3559
      %3563 = vset.pattern.permute.xlu0 0
      %3564 = vperm.xlu0 %3563, %v2490
      %v3565 = vpop.permute.xlu0 %3564
      %3568 = vset.pattern.permute.xlu0 0
      %3569 = vperm.xlu0 %3568, %v2491
      %v3570 = vpop.permute.xlu0 %3569
      %3573 = vset.pattern.permute.xlu0 0
      %3574 = vperm.xlu0 %3573, %v2492
      %v3575 = vpop.permute.xlu0 %3574
      %3578 = vset.pattern.permute.xlu0 0
      %3579 = vperm.xlu0 %3578, %v2493
      %v3580 = vpop.permute.xlu0 %3579
      %3583 = vset.pattern.permute.xlu0 0
      %3584 = vperm.xlu0 %3583, %v2494
      %v3585 = vpop.permute.xlu0 %3584
      %3588 = vset.pattern.permute.xlu0 0
      %3589 = vperm.xlu0 %3588, %v2495
      %v3590 = vpop.permute.xlu0 %3589
      %3593 = vset.pattern.permute.xlu0 0
      %3594 = vperm.xlu0 %3593, %v2496
      %v3595 = vpop.permute.xlu0 %3594
      %3598 = vset.pattern.permute.xlu0 0
      %3599 = vperm.xlu0 %3598, %v2497
      %v3600 = vpop.permute.xlu0 %3599
      %3603 = vset.pattern.permute.xlu0 0
      %3604 = vperm.xlu0 %3603, %v2498
      %v3605 = vpop.permute.xlu0 %3604
      %3608 = vset.pattern.permute.xlu0 0
      %3609 = vperm.xlu0 %3608, %v2499
      %v3610 = vpop.permute.xlu0 %3609
      %3613 = vset.pattern.permute.xlu0 0
      %3614 = vperm.xlu0 %3613, %v2500
      %v3615 = vpop.permute.xlu0 %3614
      %3618 = vset.pattern.permute.xlu0 0
      %3619 = vperm.xlu0 %3618, %v2501
      %v3620 = vpop.permute.xlu0 %3619
      %3623 = vset.pattern.permute.xlu0 0
      %3624 = vperm.xlu0 %3623, %v2502
      %v3625 = vpop.permute.xlu0 %3624
      %3628 = vset.pattern.permute.xlu0 0
      %3629 = vperm.xlu0 %3628, %v2503
      %v3630 = vpop.permute.xlu0 %3629
      %3633 = vset.pattern.permute.xlu0 0
      %3634 = vperm.xlu0 %3633, %v2504
      %v3635 = vpop.permute.xlu0 %3634
      %3638 = vset.pattern.permute.xlu0 0
      %3639 = vperm.xlu0 %3638, %v2505
      %v3640 = vpop.permute.xlu0 %3639
      %3643 = vset.pattern.permute.xlu0 0
      %3644 = vperm.xlu0 %3643, %v2506
      %v3645 = vpop.permute.xlu0 %3644
      %3648 = vset.pattern.permute.xlu0 0
      %3649 = vperm.xlu0 %3648, %v2507
      %v3650 = vpop.permute.xlu0 %3649
      %3653 = vset.pattern.permute.xlu0 0
      %3654 = vperm.xlu0 %3653, %v2508
      %v3655 = vpop.permute.xlu0 %3654
      %3658 = vset.pattern.permute.xlu0 0
      %3659 = vperm.xlu0 %3658, %v2509
      %v3660 = vpop.permute.xlu0 %3659
      %3663 = vset.pattern.permute.xlu0 0
      %3664 = vperm.xlu0 %3663, %v2510
      %v3665 = vpop.permute.xlu0 %3664
      %3668 = vset.pattern.permute.xlu0 0
      %3669 = vperm.xlu0 %3668, %v2511
      %v3670 = vpop.permute.xlu0 %3669
      %3673 = vset.pattern.permute.xlu0 0
      %3674 = vperm.xlu0 %3673, %v2512
      %v3675 = vpop.permute.xlu0 %3674
      %3678 = vset.pattern.permute.xlu0 0
      %3679 = vperm.xlu0 %3678, %v2513
      %v3680 = vpop.permute.xlu0 %3679
      %3683 = vset.pattern.permute.xlu0 0
      %3684 = vperm.xlu0 %3683, %v2514
      %v3685 = vpop.permute.xlu0 %3684
      %3688 = vset.pattern.permute.xlu0 0
      %3689 = vperm.xlu0 %3688, %v2515
      %v3690 = vpop.permute.xlu0 %3689
      %3693 = vset.pattern.permute.xlu0 0
      %3694 = vperm.xlu0 %3693, %v2516
      %v3695 = vpop.permute.xlu0 %3694
      %3698 = vset.pattern.permute.xlu0 0
      %3699 = vperm.xlu0 %3698, %v2517
      %v3700 = vpop.permute.xlu0 %3699
      %3703 = vset.pattern.permute.xlu0 0
      %3704 = vperm.xlu0 %3703, %v2518
      %v3705 = vpop.permute.xlu0 %3704
      %3708 = vset.pattern.permute.xlu0 0
      %3709 = vperm.xlu0 %3708, %v2519
      %v3710 = vpop.permute.xlu0 %3709
      %3713 = vset.pattern.permute.xlu0 0
      %3714 = vperm.xlu0 %3713, %v2520
      %v3715 = vpop.permute.xlu0 %3714
      %3718 = vset.pattern.permute.xlu0 0
      %3719 = vperm.xlu0 %3718, %v2521
      %v3720 = vpop.permute.xlu0 %3719
      %3723 = vset.pattern.permute.xlu0 0
      %3724 = vperm.xlu0 %3723, %v2522
      %v3725 = vpop.permute.xlu0 %3724
      %3728 = vset.pattern.permute.xlu0 0
      %3729 = vperm.xlu0 %3728, %v2523
      %v3730 = vpop.permute.xlu0 %3729
      %3733 = vset.pattern.permute.xlu0 0
      %3734 = vperm.xlu0 %3733, %v2524
      %v3735 = vpop.permute.xlu0 %3734
      %3738 = vset.pattern.permute.xlu0 0
      %3739 = vperm.xlu0 %3738, %v2525
      %v3740 = vpop.permute.xlu0 %3739
      %3743 = vset.pattern.permute.xlu0 0
      %3744 = vperm.xlu0 %3743, %v2526
      %v3745 = vpop.permute.xlu0 %3744
      %3748 = vset.pattern.permute.xlu0 0
      %3749 = vperm.xlu0 %3748, %v2527
      %v3750 = vpop.permute.xlu0 %3749
      %3753 = vset.pattern.permute.xlu0 0
      %3754 = vperm.xlu0 %3753, %v2528
      %v3755 = vpop.permute.xlu0 %3754
      %3758 = vset.pattern.permute.xlu0 0
      %3759 = vperm.xlu0 %3758, %v2529
      %v3760 = vpop.permute.xlu0 %3759
      %3763 = vset.pattern.permute.xlu0 0
      %3764 = vperm.xlu0 %3763, %v2530
      %v3765 = vpop.permute.xlu0 %3764
      %3768 = vset.pattern.permute.xlu0 0
      %3769 = vperm.xlu0 %3768, %v2531
      %v3770 = vpop.permute.xlu0 %3769
      %3773 = vset.pattern.permute.xlu0 0
      %3774 = vperm.xlu0 %3773, %v2532
      %v3775 = vpop.permute.xlu0 %3774
      %3778 = vset.pattern.permute.xlu0 0
      %3779 = vperm.xlu0 %3778, %v2533
      %v3780 = vpop.permute.xlu0 %3779
      %3783 = vset.pattern.permute.xlu0 0
      %3784 = vperm.xlu0 %3783, %v2534
      %v3785 = vpop.permute.xlu0 %3784
      %3788 = vset.pattern.permute.xlu0 0
      %3789 = vperm.xlu0 %3788, %v2535
      %v3790 = vpop.permute.xlu0 %3789
      %3793 = vset.pattern.permute.xlu0 0
      %3794 = vperm.xlu0 %3793, %v2536
      %v3795 = vpop.permute.xlu0 %3794
      %3798 = vset.pattern.permute.xlu0 0
      %3799 = vperm.xlu0 %3798, %v2537
      %v3800 = vpop.permute.xlu0 %3799
      %3803 = vset.pattern.permute.xlu0 0
      %3804 = vperm.xlu0 %3803, %v2538
      %v3805 = vpop.permute.xlu0 %3804
      %3808 = vset.pattern.permute.xlu0 0
      %3809 = vperm.xlu0 %3808, %v2539
      %v3810 = vpop.permute.xlu0 %3809
      %3813 = vset.pattern.permute.xlu0 0
      %3814 = vperm.xlu0 %3813, %v2540
      %v3815 = vpop.permute.xlu0 %3814
      %3818 = vset.pattern.permute.xlu0 0
      %3819 = vperm.xlu0 %3818, %v2541
      %v3820 = vpop.permute.xlu0 %3819
      %3823 = vset.pattern.permute.xlu0 0
      %3824 = vperm.xlu0 %3823, %v2542
      %v3825 = vpop.permute.xlu0 %3824
      %3828 = vset.pattern.permute.xlu0 0
      %3829 = vperm.xlu0 %3828, %v2543
      %v3830 = vpop.permute.xlu0 %3829
      %3833 = vset.pattern.permute.xlu0 0
      %3834 = vperm.xlu0 %3833, %v2544
      %v3835 = vpop.permute.xlu0 %3834
      %3838 = vset.pattern.permute.xlu0 0
      %3839 = vperm.xlu0 %3838, %v2545
      %v3840 = vpop.permute.xlu0 %3839
      %3843 = vset.pattern.permute.xlu0 0
      %3844 = vperm.xlu0 %3843, %v2546
      %v3845 = vpop.permute.xlu0 %3844
      %3848 = vset.pattern.permute.xlu0 0
      %3849 = vperm.xlu0 %3848, %v2547
      %v3850 = vpop.permute.xlu0 %3849
      %3853 = vset.pattern.permute.xlu0 0
      %3854 = vperm.xlu0 %3853, %v2548
      %v3855 = vpop.permute.xlu0 %3854
      %3858 = vset.pattern.permute.xlu0 0
      %3859 = vperm.xlu0 %3858, %v2549
      %v3860 = vpop.permute.xlu0 %3859
      %3863 = vset.pattern.permute.xlu0 0
      %3864 = vperm.xlu0 %3863, %v2550
      %v3865 = vpop.permute.xlu0 %3864
      %3868 = vset.pattern.permute.xlu0 0
      %3869 = vperm.xlu0 %3868, %v2551
      %v3870 = vpop.permute.xlu0 %3869
      %3873 = vset.pattern.permute.xlu0 0
      %3874 = vperm.xlu0 %3873, %v2552
      %v3875 = vpop.permute.xlu0 %3874
      %3878 = vset.pattern.permute.xlu0 0
      %3879 = vperm.xlu0 %3878, %v2553
      %v3880 = vpop.permute.xlu0 %3879
      %3883 = vset.pattern.permute.xlu0 0
      %3884 = vperm.xlu0 %3883, %v2554
      %v3885 = vpop.permute.xlu0 %3884
      %3888 = vset.pattern.permute.xlu0 0
      %3889 = vperm.xlu0 %3888, %v2555
      %v3890 = vpop.permute.xlu0 %3889
      %3893 = vset.pattern.permute.xlu0 0
      %3894 = vperm.xlu0 %3893, %v2556
      %v3895 = vpop.permute.xlu0 %3894
      %3898 = vset.pattern.permute.xlu0 0
      %3899 = vperm.xlu0 %3898, %v2557
      %v3900 = vpop.permute.xlu0 %3899
      %3903 = vset.pattern.permute.xlu0 0
      %3904 = vperm.xlu0 %3903, %v2558
      %v3905 = vpop.permute.xlu0 %3904
      %3908 = vset.pattern.permute.xlu0 0
      %3909 = vperm.xlu0 %3908, %v2559
      %v3910 = vpop.permute.xlu0 %3909
      %3913 = vset.pattern.permute.xlu0 0
      %3914 = vperm.xlu0 %3913, %v2560
      %v3915 = vpop.permute.xlu0 %3914
      %3918 = vset.pattern.permute.xlu0 0
      %3919 = vperm.xlu0 %3918, %v2561
      %v3920 = vpop.permute.xlu0 %3919
      %3923 = vset.pattern.permute.xlu0 0
      %3924 = vperm.xlu0 %3923, %v2562
      %v3925 = vpop.permute.xlu0 %3924
      %3928 = vset.pattern.permute.xlu0 0
      %3929 = vperm.xlu0 %3928, %v2563
      %v3930 = vpop.permute.xlu0 %3929
      %3933 = vset.pattern.permute.xlu0 0
      %3934 = vperm.xlu0 %3933, %v2564
      %v3935 = vpop.permute.xlu0 %3934
      %3938 = vset.pattern.permute.xlu0 0
      %3939 = vperm.xlu0 %3938, %v2565
      %v3940 = vpop.permute.xlu0 %3939
      %3943 = vset.pattern.permute.xlu0 0
      %3944 = vperm.xlu0 %3943, %v2566
      %v3945 = vpop.permute.xlu0 %3944
      %3948 = vset.pattern.permute.xlu0 0
      %3949 = vperm.xlu0 %3948, %v2567
      %v3950 = vpop.permute.xlu0 %3949
      %3953 = vset.pattern.permute.xlu0 0
      %3954 = vperm.xlu0 %3953, %v2568
      %v3955 = vpop.permute.xlu0 %3954
      %3958 = vset.pattern.permute.xlu0 0
      %3959 = vperm.xlu0 %3958, %v2569
      %v3960 = vpop.permute.xlu0 %3959
      %3963 = vset.pattern.permute.xlu0 0
      %3964 = vperm.xlu0 %3963, %v2570
      %v3965 = vpop.permute.xlu0 %3964
      %3968 = vset.pattern.permute.xlu0 0
      %3969 = vperm.xlu0 %3968, %v2571
      %v3970 = vpop.permute.xlu0 %3969
      %3973 = vset.pattern.permute.xlu0 0
      %3974 = vperm.xlu0 %3973, %v2572
      %v3975 = vpop.permute.xlu0 %3974
      %3978 = vset.pattern.permute.xlu0 0
      %3979 = vperm.xlu0 %3978, %v2573
      %v3980 = vpop.permute.xlu0 %3979
      %3983 = vset.pattern.permute.xlu0 0
      %3984 = vperm.xlu0 %3983, %v2574
      %v3985 = vpop.permute.xlu0 %3984
      %3988 = vset.pattern.permute.xlu0 0
      %3989 = vperm.xlu0 %3988, %v2575
      %v3990 = vpop.permute.xlu0 %3989
      %3993 = vset.pattern.permute.xlu0 0
      %3994 = vperm.xlu0 %3993, %v2576
      %v3995 = vpop.permute.xlu0 %3994
      %3998 = vset.pattern.permute.xlu0 0
      %3999 = vperm.xlu0 %3998, %v2577
      %v4000 = vpop.permute.xlu0 %3999
      %4003 = vset.pattern.permute.xlu0 0
      %4004 = vperm.xlu0 %4003, %v2578
      %v4005 = vpop.permute.xlu0 %4004
      %4008 = vset.pattern.permute.xlu0 0
      %4009 = vperm.xlu0 %4008, %v2579
      %v4010 = vpop.permute.xlu0 %4009
      %4013 = vset.pattern.permute.xlu0 0
      %4014 = vperm.xlu0 %4013, %v2580
      %v4015 = vpop.permute.xlu0 %4014
      %4018 = vset.pattern.permute.xlu0 0
      %4019 = vperm.xlu0 %4018, %v2581
      %v4020 = vpop.permute.xlu0 %4019
      %4023 = vset.pattern.permute.xlu0 0
      %4024 = vperm.xlu0 %4023, %v2582
      %v4025 = vpop.permute.xlu0 %4024
      %4028 = vset.pattern.permute.xlu0 0
      %4029 = vperm.xlu0 %4028, %v2583
      %v4030 = vpop.permute.xlu0 %4029
      %4033 = vset.pattern.permute.xlu0 0
      %4034 = vperm.xlu0 %4033, %v2584
      %v4035 = vpop.permute.xlu0 %4034
      %4038 = vset.pattern.permute.xlu0 0
      %4039 = vperm.xlu0 %4038, %v2585
      %v4040 = vpop.permute.xlu0 %4039
      %4043 = vset.pattern.permute.xlu0 0
      %4044 = vperm.xlu0 %4043, %v2586
      %v4045 = vpop.permute.xlu0 %4044
      %4048 = vset.pattern.permute.xlu0 0
      %4049 = vperm.xlu0 %4048, %v2587
      %v4050 = vpop.permute.xlu0 %4049
      %4053 = vset.pattern.permute.xlu0 0
      %4054 = vperm.xlu0 %4053, %v2588
      %v4055 = vpop.permute.xlu0 %4054
      %4058 = vset.pattern.permute.xlu0 0
      %4059 = vperm.xlu0 %4058, %v2589
      %v4060 = vpop.permute.xlu0 %4059
      %4063 = vset.pattern.permute.xlu0 0
      %4064 = vperm.xlu0 %4063, %v2590
      %v4065 = vpop.permute.xlu0 %4064
      %4068 = vset.pattern.permute.xlu0 0
      %4069 = vperm.xlu0 %4068, %v2591
      %v4070 = vpop.permute.xlu0 %4069
      %4073 = vset.pattern.permute.xlu0 0
      %4074 = vperm.xlu0 %4073, %v2592
      %v4075 = vpop.permute.xlu0 %4074
      %4078 = vset.pattern.permute.xlu0 0
      %4079 = vperm.xlu0 %4078, %v2593
      %v4080 = vpop.permute.xlu0 %4079
      %4083 = vset.pattern.permute.xlu0 0
      %4084 = vperm.xlu0 %4083, %v2594
      %v4085 = vpop.permute.xlu0 %4084
      %4088 = vset.pattern.permute.xlu0 0
      %4089 = vperm.xlu0 %4088, %v2595
      %v4090 = vpop.permute.xlu0 %4089
      %4093 = vset.pattern.permute.xlu0 0
      %4094 = vperm.xlu0 %4093, %v2596
      %v4095 = vpop.permute.xlu0 %4094
      %4098 = vset.pattern.permute.xlu0 0
      %4099 = vperm.xlu0 %4098, %v2597
      %v4100 = vpop.permute.xlu0 %4099
      %4103 = vset.pattern.permute.xlu0 0
      %4104 = vperm.xlu0 %4103, %v2598
      %v4105 = vpop.permute.xlu0 %4104
      %4108 = vset.pattern.permute.xlu0 0
      %4109 = vperm.xlu0 %4108, %v2599
      %v4110 = vpop.permute.xlu0 %4109
      %4113 = vset.pattern.permute.xlu0 0
      %4114 = vperm.xlu0 %4113, %v2600
      %v4115 = vpop.permute.xlu0 %4114
      %4118 = vset.pattern.permute.xlu0 0
      %4119 = vperm.xlu0 %4118, %v2601
      %v4120 = vpop.permute.xlu0 %4119
      %4123 = vset.pattern.permute.xlu0 0
      %4124 = vperm.xlu0 %4123, %v2602
      %v4125 = vpop.permute.xlu0 %4124
      %4128 = vset.pattern.permute.xlu0 0
      %4129 = vperm.xlu0 %4128, %v2603
      %v4130 = vpop.permute.xlu0 %4129
      %4133 = vset.pattern.permute.xlu0 0
      %4134 = vperm.xlu0 %4133, %v2604
      %v4135 = vpop.permute.xlu0 %4134
      %4138 = vset.pattern.permute.xlu0 0
      %4139 = vperm.xlu0 %4138, %v2605
      %v4140 = vpop.permute.xlu0 %4139
      %4143 = vset.pattern.permute.xlu0 0
      %4144 = vperm.xlu0 %4143, %v2606
      %v4145 = vpop.permute.xlu0 %4144
      %4148 = vset.pattern.permute.xlu0 0
      %4149 = vperm.xlu0 %4148, %v2607
      %v4150 = vpop.permute.xlu0 %4149
      %4153 = vset.pattern.permute.xlu0 0
      %4154 = vperm.xlu0 %4153, %v2608
      %v4155 = vpop.permute.xlu0 %4154
      %4158 = vset.pattern.permute.xlu0 0
      %4159 = vperm.xlu0 %4158, %v2609
      %v4160 = vpop.permute.xlu0 %4159
      %4163 = vset.pattern.permute.xlu0 0
      %4164 = vperm.xlu0 %4163, %v2610
      %v4165 = vpop.permute.xlu0 %4164
      %4168 = vset.pattern.permute.xlu0 0
      %4169 = vperm.xlu0 %4168, %v2611
      %v4170 = vpop.permute.xlu0 %4169
      %4173 = vset.pattern.permute.xlu0 0
      %4174 = vperm.xlu0 %4173, %v2612
      %v4175 = vpop.permute.xlu0 %4174
      %4178 = vset.pattern.permute.xlu0 0
      %4179 = vperm.xlu0 %4178, %v2613
      %v4180 = vpop.permute.xlu0 %4179
      %4183 = vset.pattern.permute.xlu0 0
      %4184 = vperm.xlu0 %4183, %v2614
      %v4185 = vpop.permute.xlu0 %4184
      %4188 = vset.pattern.permute.xlu0 0
      %4189 = vperm.xlu0 %4188, %v2615
      %v4190 = vpop.permute.xlu0 %4189
      %4193 = vset.pattern.permute.xlu0 0
      %4194 = vperm.xlu0 %4193, %v2616
      %v4195 = vpop.permute.xlu0 %4194
      %4198 = vset.pattern.permute.xlu0 0
      %4199 = vperm.xlu0 %4198, %v2617
      %v4200 = vpop.permute.xlu0 %4199
      %v4202 = vmul.f32 %v169, %v3485
      %v4203 = vmul.f32 %v170, %v3490
      %v4204 = vmul.f32 %v171, %v3495
      %v4205 = vmul.f32 %v172, %v3500
      %v4206 = vmul.f32 %v173, %v3505
      %v4207 = vmul.f32 %v174, %v3510
      %v4208 = vmul.f32 %v175, %v3515
      %v4209 = vmul.f32 %v176, %v3520
      %v4210 = vmul.f32 %v177, %v3525
      %v4211 = vmul.f32 %v178, %v3530
      %v4212 = vmul.f32 %v179, %v3535
      %v4213 = vmul.f32 %v180, %v3540
      %v4214 = vmul.f32 %v181, %v3545
      %v4215 = vmul.f32 %v182, %v3550
      %v4216 = vmul.f32 %v183, %v3555
      %v4217 = vmul.f32 %v184, %v3560
      %v4218 = vmul.f32 %v185, %v3565
      %v4219 = vmul.f32 %v186, %v3570
      %v4220 = vmul.f32 %v187, %v3575
      %v4221 = vmul.f32 %v188, %v3580
      %v4222 = vmul.f32 %v189, %v3585
      %v4223 = vmul.f32 %v190, %v3590
      %v4224 = vmul.f32 %v191, %v3595
      %v4225 = vmul.f32 %v192, %v3600
      %v4226 = vmul.f32 %v193, %v3605
      %v4227 = vmul.f32 %v194, %v3610
      %v4228 = vmul.f32 %v195, %v3615
      %v4229 = vmul.f32 %v196, %v3620
      %v4230 = vmul.f32 %v197, %v3625
      %v4231 = vmul.f32 %v198, %v3630
      %v4232 = vmul.f32 %v199, %v3635
      %v4233 = vmul.f32 %v200, %v3640
      %v4234 = vmul.f32 %v201, %v3645
      %v4235 = vmul.f32 %v202, %v3650
      %v4236 = vmul.f32 %v203, %v3655
      %v4237 = vmul.f32 %v204, %v3660
      %v4238 = vmul.f32 %v205, %v3665
      %v4239 = vmul.f32 %v206, %v3670
      %v4240 = vmul.f32 %v207, %v3675
      %v4241 = vmul.f32 %v208, %v3680
      %v4242 = vmul.f32 %v209, %v3685
      %v4243 = vmul.f32 %v210, %v3690
      %v4244 = vmul.f32 %v211, %v3695
      %v4245 = vmul.f32 %v212, %v3700
      %v4246 = vmul.f32 %v213, %v3705
      %v4247 = vmul.f32 %v214, %v3710
      %v4248 = vmul.f32 %v215, %v3715
      %v4249 = vmul.f32 %v216, %v3720
      %v4250 = vmul.f32 %v217, %v3725
      %v4251 = vmul.f32 %v218, %v3730
      %v4252 = vmul.f32 %v219, %v3735
      %v4253 = vmul.f32 %v220, %v3740
      %v4254 = vmul.f32 %v221, %v3745
      %v4255 = vmul.f32 %v222, %v3750
      %v4256 = vmul.f32 %v223, %v3755
      %v4257 = vmul.f32 %v224, %v3760
      %v4258 = vmul.f32 %v225, %v3765
      %v4259 = vmul.f32 %v226, %v3770
      %v4260 = vmul.f32 %v227, %v3775
      %v4261 = vmul.f32 %v228, %v3780
      %v4262 = vmul.f32 %v229, %v3785
      %v4263 = vmul.f32 %v230, %v3790
      %v4264 = vmul.f32 %v231, %v3795
      %v4265 = vmul.f32 %v232, %v3800
      %v4266 = vmul.f32 %v233, %v3805
      %v4267 = vmul.f32 %v234, %v3810
      %v4268 = vmul.f32 %v235, %v3815
      %v4269 = vmul.f32 %v236, %v3820
      %v4270 = vmul.f32 %v237, %v3825
      %v4271 = vmul.f32 %v238, %v3830
      %v4272 = vmul.f32 %v239, %v3835
      %v4273 = vmul.f32 %v240, %v3840
      %v4274 = vmul.f32 %v241, %v3845
      %v4275 = vmul.f32 %v242, %v3850
      %v4276 = vmul.f32 %v243, %v3855
      %v4277 = vmul.f32 %v244, %v3860
      %v4278 = vmul.f32 %v245, %v3865
      %v4279 = vmul.f32 %v246, %v3870
      %v4280 = vmul.f32 %v247, %v3875
      %v4281 = vmul.f32 %v248, %v3880
      %v4282 = vmul.f32 %v249, %v3885
      %v4283 = vmul.f32 %v250, %v3890
      %v4284 = vmul.f32 %v251, %v3895
      %v4285 = vmul.f32 %v252, %v3900
      %v4286 = vmul.f32 %v253, %v3905
      %v4287 = vmul.f32 %v254, %v3910
      %v4288 = vmul.f32 %v255, %v3915
      %v4289 = vmul.f32 %v256, %v3920
      %v4290 = vmul.f32 %v257, %v3925
      %v4291 = vmul.f32 %v258, %v3930
      %v4292 = vmul.f32 %v259, %v3935
      %v4293 = vmul.f32 %v260, %v3940
      %v4294 = vmul.f32 %v261, %v3945
      %v4295 = vmul.f32 %v262, %v3950
      %v4296 = vmul.f32 %v263, %v3955
      %v4297 = vmul.f32 %v264, %v3960
      %v4298 = vmul.f32 %v265, %v3965
      %v4299 = vmul.f32 %v266, %v3970
      %v4300 = vmul.f32 %v267, %v3975
      %v4301 = vmul.f32 %v268, %v3980
      %v4302 = vmul.f32 %v269, %v3985
      %v4303 = vmul.f32 %v270, %v3990
      %v4304 = vmul.f32 %v271, %v3995
      %v4305 = vmul.f32 %v272, %v4000
      %v4306 = vmul.f32 %v273, %v4005
      %v4307 = vmul.f32 %v274, %v4010
      %v4308 = vmul.f32 %v275, %v4015
      %v4309 = vmul.f32 %v276, %v4020
      %v4310 = vmul.f32 %v277, %v4025
      %v4311 = vmul.f32 %v278, %v4030
      %v4312 = vmul.f32 %v279, %v4035
      %v4313 = vmul.f32 %v280, %v4040
      %v4314 = vmul.f32 %v281, %v4045
      %v4315 = vmul.f32 %v282, %v4050
      %v4316 = vmul.f32 %v283, %v4055
      %v4317 = vmul.f32 %v284, %v4060
      %v4318 = vmul.f32 %v285, %v4065
      %v4319 = vmul.f32 %v286, %v4070
      %v4320 = vmul.f32 %v287, %v4075
      %v4321 = vmul.f32 %v288, %v4080
      %v4322 = vmul.f32 %v289, %v4085
      %v4323 = vmul.f32 %v290, %v4090
      %v4324 = vmul.f32 %v291, %v4095
      %v4325 = vmul.f32 %v292, %v4100
      %v4326 = vmul.f32 %v293, %v4105
      %v4327 = vmul.f32 %v294, %v4110
      %v4328 = vmul.f32 %v295, %v4115
      %v4329 = vmul.f32 %v296, %v4120
      %v4330 = vmul.f32 %v297, %v4125
      %v4331 = vmul.f32 %v298, %v4130
      %v4332 = vmul.f32 %v299, %v4135
      %v4333 = vmul.f32 %v300, %v4140
      %v4334 = vmul.f32 %v301, %v4145
      %v4335 = vmul.f32 %v302, %v4150
      %v4336 = vmul.f32 %v303, %v4155
      %v4337 = vmul.f32 %v304, %v4160
      %v4338 = vmul.f32 %v305, %v4165
      %v4339 = vmul.f32 %v306, %v4170
      %v4340 = vmul.f32 %v307, %v4175
      %v4341 = vmul.f32 %v308, %v4180
      %v4342 = vmul.f32 %v309, %v4185
      %v4343 = vmul.f32 %v310, %v4190
      %v4344 = vmul.f32 %v311, %v4195
      %v4345 = vmul.f32 %v312, %v4200
      %4347 = vset.pattern.permute.xlu0 1
      %4348 = vperm.xlu0 %4347, %v3338
      %v4349 = vpop.permute.xlu0 %4348
      %4352 = vset.pattern.permute.xlu0 1
      %4353 = vperm.xlu0 %4352, %v3339
      %v4354 = vpop.permute.xlu0 %4353
      %4357 = vset.pattern.permute.xlu0 1
      %4358 = vperm.xlu0 %4357, %v3340
      %v4359 = vpop.permute.xlu0 %4358
      %4362 = vset.pattern.permute.xlu0 1
      %4363 = vperm.xlu0 %4362, %v3341
      %v4364 = vpop.permute.xlu0 %4363
      %4367 = vset.pattern.permute.xlu0 1
      %4368 = vperm.xlu0 %4367, %v3342
      %v4369 = vpop.permute.xlu0 %4368
      %4372 = vset.pattern.permute.xlu0 1
      %4373 = vperm.xlu0 %4372, %v3343
      %v4374 = vpop.permute.xlu0 %4373
      %4377 = vset.pattern.permute.xlu0 1
      %4378 = vperm.xlu0 %4377, %v3344
      %v4379 = vpop.permute.xlu0 %4378
      %4382 = vset.pattern.permute.xlu0 1
      %4383 = vperm.xlu0 %4382, %v3345
      %v4384 = vpop.permute.xlu0 %4383
      %4387 = vset.pattern.permute.xlu0 1
      %4388 = vperm.xlu0 %4387, %v3346
      %v4389 = vpop.permute.xlu0 %4388
      %4392 = vset.pattern.permute.xlu0 1
      %4393 = vperm.xlu0 %4392, %v3347
      %v4394 = vpop.permute.xlu0 %4393
      %4397 = vset.pattern.permute.xlu0 1
      %4398 = vperm.xlu0 %4397, %v3348
      %v4399 = vpop.permute.xlu0 %4398
      %4402 = vset.pattern.permute.xlu0 1
      %4403 = vperm.xlu0 %4402, %v3349
      %v4404 = vpop.permute.xlu0 %4403
      %4407 = vset.pattern.permute.xlu0 1
      %4408 = vperm.xlu0 %4407, %v3350
      %v4409 = vpop.permute.xlu0 %4408
      %4412 = vset.pattern.permute.xlu0 1
      %4413 = vperm.xlu0 %4412, %v3351
      %v4414 = vpop.permute.xlu0 %4413
      %4417 = vset.pattern.permute.xlu0 1
      %4418 = vperm.xlu0 %4417, %v3352
      %v4419 = vpop.permute.xlu0 %4418
      %4422 = vset.pattern.permute.xlu0 1
      %4423 = vperm.xlu0 %4422, %v3353
      %v4424 = vpop.permute.xlu0 %4423
      %4427 = vset.pattern.permute.xlu0 1
      %4428 = vperm.xlu0 %4427, %v3354
      %v4429 = vpop.permute.xlu0 %4428
      %4432 = vset.pattern.permute.xlu0 1
      %4433 = vperm.xlu0 %4432, %v3355
      %v4434 = vpop.permute.xlu0 %4433
      %4437 = vset.pattern.permute.xlu0 1
      %4438 = vperm.xlu0 %4437, %v3356
      %v4439 = vpop.permute.xlu0 %4438
      %4442 = vset.pattern.permute.xlu0 1
      %4443 = vperm.xlu0 %4442, %v3357
      %v4444 = vpop.permute.xlu0 %4443
      %4447 = vset.pattern.permute.xlu0 1
      %4448 = vperm.xlu0 %4447, %v3358
      %v4449 = vpop.permute.xlu0 %4448
      %4452 = vset.pattern.permute.xlu0 1
      %4453 = vperm.xlu0 %4452, %v3359
      %v4454 = vpop.permute.xlu0 %4453
      %4457 = vset.pattern.permute.xlu0 1
      %4458 = vperm.xlu0 %4457, %v3360
      %v4459 = vpop.permute.xlu0 %4458
      %4462 = vset.pattern.permute.xlu0 1
      %4463 = vperm.xlu0 %4462, %v3361
      %v4464 = vpop.permute.xlu0 %4463
      %4467 = vset.pattern.permute.xlu0 1
      %4468 = vperm.xlu0 %4467, %v3362
      %v4469 = vpop.permute.xlu0 %4468
      %4472 = vset.pattern.permute.xlu0 1
      %4473 = vperm.xlu0 %4472, %v3363
      %v4474 = vpop.permute.xlu0 %4473
      %4477 = vset.pattern.permute.xlu0 1
      %4478 = vperm.xlu0 %4477, %v3364
      %v4479 = vpop.permute.xlu0 %4478
      %4482 = vset.pattern.permute.xlu0 1
      %4483 = vperm.xlu0 %4482, %v3365
      %v4484 = vpop.permute.xlu0 %4483
      %4487 = vset.pattern.permute.xlu0 1
      %4488 = vperm.xlu0 %4487, %v3366
      %v4489 = vpop.permute.xlu0 %4488
      %4492 = vset.pattern.permute.xlu0 1
      %4493 = vperm.xlu0 %4492, %v3367
      %v4494 = vpop.permute.xlu0 %4493
      %4497 = vset.pattern.permute.xlu0 1
      %4498 = vperm.xlu0 %4497, %v3368
      %v4499 = vpop.permute.xlu0 %4498
      %4502 = vset.pattern.permute.xlu0 1
      %4503 = vperm.xlu0 %4502, %v3369
      %v4504 = vpop.permute.xlu0 %4503
      %4507 = vset.pattern.permute.xlu0 1
      %4508 = vperm.xlu0 %4507, %v3370
      %v4509 = vpop.permute.xlu0 %4508
      %4512 = vset.pattern.permute.xlu0 1
      %4513 = vperm.xlu0 %4512, %v3371
      %v4514 = vpop.permute.xlu0 %4513
      %4517 = vset.pattern.permute.xlu0 1
      %4518 = vperm.xlu0 %4517, %v3372
      %v4519 = vpop.permute.xlu0 %4518
      %4522 = vset.pattern.permute.xlu0 1
      %4523 = vperm.xlu0 %4522, %v3373
      %v4524 = vpop.permute.xlu0 %4523
      %4527 = vset.pattern.permute.xlu0 1
      %4528 = vperm.xlu0 %4527, %v3374
      %v4529 = vpop.permute.xlu0 %4528
      %4532 = vset.pattern.permute.xlu0 1
      %4533 = vperm.xlu0 %4532, %v3375
      %v4534 = vpop.permute.xlu0 %4533
      %4537 = vset.pattern.permute.xlu0 1
      %4538 = vperm.xlu0 %4537, %v3376
      %v4539 = vpop.permute.xlu0 %4538
      %4542 = vset.pattern.permute.xlu0 1
      %4543 = vperm.xlu0 %4542, %v3377
      %v4544 = vpop.permute.xlu0 %4543
      %4547 = vset.pattern.permute.xlu0 1
      %4548 = vperm.xlu0 %4547, %v3378
      %v4549 = vpop.permute.xlu0 %4548
      %4552 = vset.pattern.permute.xlu0 1
      %4553 = vperm.xlu0 %4552, %v3379
      %v4554 = vpop.permute.xlu0 %4553
      %4557 = vset.pattern.permute.xlu0 1
      %4558 = vperm.xlu0 %4557, %v3380
      %v4559 = vpop.permute.xlu0 %4558
      %4562 = vset.pattern.permute.xlu0 1
      %4563 = vperm.xlu0 %4562, %v3381
      %v4564 = vpop.permute.xlu0 %4563
      %4567 = vset.pattern.permute.xlu0 1
      %4568 = vperm.xlu0 %4567, %v3382
      %v4569 = vpop.permute.xlu0 %4568
      %4572 = vset.pattern.permute.xlu0 1
      %4573 = vperm.xlu0 %4572, %v3383
      %v4574 = vpop.permute.xlu0 %4573
      %4577 = vset.pattern.permute.xlu0 1
      %4578 = vperm.xlu0 %4577, %v3384
      %v4579 = vpop.permute.xlu0 %4578
      %4582 = vset.pattern.permute.xlu0 1
      %4583 = vperm.xlu0 %4582, %v3385
      %v4584 = vpop.permute.xlu0 %4583
      %4587 = vset.pattern.permute.xlu0 1
      %4588 = vperm.xlu0 %4587, %v3386
      %v4589 = vpop.permute.xlu0 %4588
      %4592 = vset.pattern.permute.xlu0 1
      %4593 = vperm.xlu0 %4592, %v3387
      %v4594 = vpop.permute.xlu0 %4593
      %4597 = vset.pattern.permute.xlu0 1
      %4598 = vperm.xlu0 %4597, %v3388
      %v4599 = vpop.permute.xlu0 %4598
      %4602 = vset.pattern.permute.xlu0 1
      %4603 = vperm.xlu0 %4602, %v3389
      %v4604 = vpop.permute.xlu0 %4603
      %4607 = vset.pattern.permute.xlu0 1
      %4608 = vperm.xlu0 %4607, %v3390
      %v4609 = vpop.permute.xlu0 %4608
      %4612 = vset.pattern.permute.xlu0 1
      %4613 = vperm.xlu0 %4612, %v3391
      %v4614 = vpop.permute.xlu0 %4613
      %4617 = vset.pattern.permute.xlu0 1
      %4618 = vperm.xlu0 %4617, %v3392
      %v4619 = vpop.permute.xlu0 %4618
      %4622 = vset.pattern.permute.xlu0 1
      %4623 = vperm.xlu0 %4622, %v3393
      %v4624 = vpop.permute.xlu0 %4623
      %4627 = vset.pattern.permute.xlu0 1
      %4628 = vperm.xlu0 %4627, %v3394
      %v4629 = vpop.permute.xlu0 %4628
      %4632 = vset.pattern.permute.xlu0 1
      %4633 = vperm.xlu0 %4632, %v3395
      %v4634 = vpop.permute.xlu0 %4633
      %4637 = vset.pattern.permute.xlu0 1
      %4638 = vperm.xlu0 %4637, %v3396
      %v4639 = vpop.permute.xlu0 %4638
      %4642 = vset.pattern.permute.xlu0 1
      %4643 = vperm.xlu0 %4642, %v3397
      %v4644 = vpop.permute.xlu0 %4643
      %4647 = vset.pattern.permute.xlu0 1
      %4648 = vperm.xlu0 %4647, %v3398
      %v4649 = vpop.permute.xlu0 %4648
      %4652 = vset.pattern.permute.xlu0 1
      %4653 = vperm.xlu0 %4652, %v3399
      %v4654 = vpop.permute.xlu0 %4653
      %4657 = vset.pattern.permute.xlu0 1
      %4658 = vperm.xlu0 %4657, %v3400
      %v4659 = vpop.permute.xlu0 %4658
      %4662 = vset.pattern.permute.xlu0 1
      %4663 = vperm.xlu0 %4662, %v3401
      %v4664 = vpop.permute.xlu0 %4663
      %4667 = vset.pattern.permute.xlu0 1
      %4668 = vperm.xlu0 %4667, %v3402
      %v4669 = vpop.permute.xlu0 %4668
      %4672 = vset.pattern.permute.xlu0 1
      %4673 = vperm.xlu0 %4672, %v3403
      %v4674 = vpop.permute.xlu0 %4673
      %4677 = vset.pattern.permute.xlu0 1
      %4678 = vperm.xlu0 %4677, %v3404
      %v4679 = vpop.permute.xlu0 %4678
      %4682 = vset.pattern.permute.xlu0 1
      %4683 = vperm.xlu0 %4682, %v3405
      %v4684 = vpop.permute.xlu0 %4683
      %4687 = vset.pattern.permute.xlu0 1
      %4688 = vperm.xlu0 %4687, %v3406
      %v4689 = vpop.permute.xlu0 %4688
      %4692 = vset.pattern.permute.xlu0 1
      %4693 = vperm.xlu0 %4692, %v3407
      %v4694 = vpop.permute.xlu0 %4693
      %4697 = vset.pattern.permute.xlu0 1
      %4698 = vperm.xlu0 %4697, %v3408
      %v4699 = vpop.permute.xlu0 %4698
      %4702 = vset.pattern.permute.xlu0 1
      %4703 = vperm.xlu0 %4702, %v3409
      %v4704 = vpop.permute.xlu0 %4703
      %4707 = vset.pattern.permute.xlu0 1
      %4708 = vperm.xlu0 %4707, %v3410
      %v4709 = vpop.permute.xlu0 %4708
      %4712 = vset.pattern.permute.xlu0 1
      %4713 = vperm.xlu0 %4712, %v3411
      %v4714 = vpop.permute.xlu0 %4713
      %4717 = vset.pattern.permute.xlu0 1
      %4718 = vperm.xlu0 %4717, %v3412
      %v4719 = vpop.permute.xlu0 %4718
      %4722 = vset.pattern.permute.xlu0 1
      %4723 = vperm.xlu0 %4722, %v3413
      %v4724 = vpop.permute.xlu0 %4723
      %4727 = vset.pattern.permute.xlu0 1
      %4728 = vperm.xlu0 %4727, %v3414
      %v4729 = vpop.permute.xlu0 %4728
      %4732 = vset.pattern.permute.xlu0 1
      %4733 = vperm.xlu0 %4732, %v3415
      %v4734 = vpop.permute.xlu0 %4733
      %4737 = vset.pattern.permute.xlu0 1
      %4738 = vperm.xlu0 %4737, %v3416
      %v4739 = vpop.permute.xlu0 %4738
      %4742 = vset.pattern.permute.xlu0 1
      %4743 = vperm.xlu0 %4742, %v3417
      %v4744 = vpop.permute.xlu0 %4743
      %4747 = vset.pattern.permute.xlu0 1
      %4748 = vperm.xlu0 %4747, %v3418
      %v4749 = vpop.permute.xlu0 %4748
      %4752 = vset.pattern.permute.xlu0 1
      %4753 = vperm.xlu0 %4752, %v3419
      %v4754 = vpop.permute.xlu0 %4753
      %4757 = vset.pattern.permute.xlu0 1
      %4758 = vperm.xlu0 %4757, %v3420
      %v4759 = vpop.permute.xlu0 %4758
      %4762 = vset.pattern.permute.xlu0 1
      %4763 = vperm.xlu0 %4762, %v3421
      %v4764 = vpop.permute.xlu0 %4763
      %4767 = vset.pattern.permute.xlu0 1
      %4768 = vperm.xlu0 %4767, %v3422
      %v4769 = vpop.permute.xlu0 %4768
      %4772 = vset.pattern.permute.xlu0 1
      %4773 = vperm.xlu0 %4772, %v3423
      %v4774 = vpop.permute.xlu0 %4773
      %4777 = vset.pattern.permute.xlu0 1
      %4778 = vperm.xlu0 %4777, %v3424
      %v4779 = vpop.permute.xlu0 %4778
      %4782 = vset.pattern.permute.xlu0 1
      %4783 = vperm.xlu0 %4782, %v3425
      %v4784 = vpop.permute.xlu0 %4783
      %4787 = vset.pattern.permute.xlu0 1
      %4788 = vperm.xlu0 %4787, %v3426
      %v4789 = vpop.permute.xlu0 %4788
      %4792 = vset.pattern.permute.xlu0 1
      %4793 = vperm.xlu0 %4792, %v3427
      %v4794 = vpop.permute.xlu0 %4793
      %4797 = vset.pattern.permute.xlu0 1
      %4798 = vperm.xlu0 %4797, %v3428
      %v4799 = vpop.permute.xlu0 %4798
      %4802 = vset.pattern.permute.xlu0 1
      %4803 = vperm.xlu0 %4802, %v3429
      %v4804 = vpop.permute.xlu0 %4803
      %4807 = vset.pattern.permute.xlu0 1
      %4808 = vperm.xlu0 %4807, %v3430
      %v4809 = vpop.permute.xlu0 %4808
      %4812 = vset.pattern.permute.xlu0 1
      %4813 = vperm.xlu0 %4812, %v3431
      %v4814 = vpop.permute.xlu0 %4813
      %4817 = vset.pattern.permute.xlu0 1
      %4818 = vperm.xlu0 %4817, %v3432
      %v4819 = vpop.permute.xlu0 %4818
      %4822 = vset.pattern.permute.xlu0 1
      %4823 = vperm.xlu0 %4822, %v3433
      %v4824 = vpop.permute.xlu0 %4823
      %4827 = vset.pattern.permute.xlu0 1
      %4828 = vperm.xlu0 %4827, %v3434
      %v4829 = vpop.permute.xlu0 %4828
      %4832 = vset.pattern.permute.xlu0 1
      %4833 = vperm.xlu0 %4832, %v3435
      %v4834 = vpop.permute.xlu0 %4833
      %4837 = vset.pattern.permute.xlu0 1
      %4838 = vperm.xlu0 %4837, %v3436
      %v4839 = vpop.permute.xlu0 %4838
      %4842 = vset.pattern.permute.xlu0 1
      %4843 = vperm.xlu0 %4842, %v3437
      %v4844 = vpop.permute.xlu0 %4843
      %4847 = vset.pattern.permute.xlu0 1
      %4848 = vperm.xlu0 %4847, %v3438
      %v4849 = vpop.permute.xlu0 %4848
      %4852 = vset.pattern.permute.xlu0 1
      %4853 = vperm.xlu0 %4852, %v3439
      %v4854 = vpop.permute.xlu0 %4853
      %4857 = vset.pattern.permute.xlu0 1
      %4858 = vperm.xlu0 %4857, %v3440
      %v4859 = vpop.permute.xlu0 %4858
      %4862 = vset.pattern.permute.xlu0 1
      %4863 = vperm.xlu0 %4862, %v3441
      %v4864 = vpop.permute.xlu0 %4863
      %4867 = vset.pattern.permute.xlu0 1
      %4868 = vperm.xlu0 %4867, %v3442
      %v4869 = vpop.permute.xlu0 %4868
      %4872 = vset.pattern.permute.xlu0 1
      %4873 = vperm.xlu0 %4872, %v3443
      %v4874 = vpop.permute.xlu0 %4873
      %4877 = vset.pattern.permute.xlu0 1
      %4878 = vperm.xlu0 %4877, %v3444
      %v4879 = vpop.permute.xlu0 %4878
      %4882 = vset.pattern.permute.xlu0 1
      %4883 = vperm.xlu0 %4882, %v3445
      %v4884 = vpop.permute.xlu0 %4883
      %4887 = vset.pattern.permute.xlu0 1
      %4888 = vperm.xlu0 %4887, %v3446
      %v4889 = vpop.permute.xlu0 %4888
      %4892 = vset.pattern.permute.xlu0 1
      %4893 = vperm.xlu0 %4892, %v3447
      %v4894 = vpop.permute.xlu0 %4893
      %4897 = vset.pattern.permute.xlu0 1
      %4898 = vperm.xlu0 %4897, %v3448
      %v4899 = vpop.permute.xlu0 %4898
      %4902 = vset.pattern.permute.xlu0 1
      %4903 = vperm.xlu0 %4902, %v3449
      %v4904 = vpop.permute.xlu0 %4903
      %4907 = vset.pattern.permute.xlu0 1
      %4908 = vperm.xlu0 %4907, %v3450
      %v4909 = vpop.permute.xlu0 %4908
      %4912 = vset.pattern.permute.xlu0 1
      %4913 = vperm.xlu0 %4912, %v3451
      %v4914 = vpop.permute.xlu0 %4913
      %4917 = vset.pattern.permute.xlu0 1
      %4918 = vperm.xlu0 %4917, %v3452
      %v4919 = vpop.permute.xlu0 %4918
      %4922 = vset.pattern.permute.xlu0 1
      %4923 = vperm.xlu0 %4922, %v3453
      %v4924 = vpop.permute.xlu0 %4923
      %4927 = vset.pattern.permute.xlu0 1
      %4928 = vperm.xlu0 %4927, %v3454
      %v4929 = vpop.permute.xlu0 %4928
      %4932 = vset.pattern.permute.xlu0 1
      %4933 = vperm.xlu0 %4932, %v3455
      %v4934 = vpop.permute.xlu0 %4933
      %4937 = vset.pattern.permute.xlu0 1
      %4938 = vperm.xlu0 %4937, %v3456
      %v4939 = vpop.permute.xlu0 %4938
      %4942 = vset.pattern.permute.xlu0 1
      %4943 = vperm.xlu0 %4942, %v3457
      %v4944 = vpop.permute.xlu0 %4943
      %4947 = vset.pattern.permute.xlu0 1
      %4948 = vperm.xlu0 %4947, %v3458
      %v4949 = vpop.permute.xlu0 %4948
      %4952 = vset.pattern.permute.xlu0 1
      %4953 = vperm.xlu0 %4952, %v3459
      %v4954 = vpop.permute.xlu0 %4953
      %4957 = vset.pattern.permute.xlu0 1
      %4958 = vperm.xlu0 %4957, %v3460
      %v4959 = vpop.permute.xlu0 %4958
      %4962 = vset.pattern.permute.xlu0 1
      %4963 = vperm.xlu0 %4962, %v3461
      %v4964 = vpop.permute.xlu0 %4963
      %4967 = vset.pattern.permute.xlu0 1
      %4968 = vperm.xlu0 %4967, %v3462
      %v4969 = vpop.permute.xlu0 %4968
      %4972 = vset.pattern.permute.xlu0 1
      %4973 = vperm.xlu0 %4972, %v3463
      %v4974 = vpop.permute.xlu0 %4973
      %4977 = vset.pattern.permute.xlu0 1
      %4978 = vperm.xlu0 %4977, %v3464
      %v4979 = vpop.permute.xlu0 %4978
      %4982 = vset.pattern.permute.xlu0 1
      %4983 = vperm.xlu0 %4982, %v3465
      %v4984 = vpop.permute.xlu0 %4983
      %4987 = vset.pattern.permute.xlu0 1
      %4988 = vperm.xlu0 %4987, %v3466
      %v4989 = vpop.permute.xlu0 %4988
      %4992 = vset.pattern.permute.xlu0 1
      %4993 = vperm.xlu0 %4992, %v3467
      %v4994 = vpop.permute.xlu0 %4993
      %4997 = vset.pattern.permute.xlu0 1
      %4998 = vperm.xlu0 %4997, %v3468
      %v4999 = vpop.permute.xlu0 %4998
      %5002 = vset.pattern.permute.xlu0 1
      %5003 = vperm.xlu0 %5002, %v3469
      %v5004 = vpop.permute.xlu0 %5003
      %5007 = vset.pattern.permute.xlu0 1
      %5008 = vperm.xlu0 %5007, %v3470
      %v5009 = vpop.permute.xlu0 %5008
      %5012 = vset.pattern.permute.xlu0 1
      %5013 = vperm.xlu0 %5012, %v3471
      %v5014 = vpop.permute.xlu0 %5013
      %5017 = vset.pattern.permute.xlu0 1
      %5018 = vperm.xlu0 %5017, %v3472
      %v5019 = vpop.permute.xlu0 %5018
      %5022 = vset.pattern.permute.xlu0 1
      %5023 = vperm.xlu0 %5022, %v3473
      %v5024 = vpop.permute.xlu0 %5023
      %5027 = vset.pattern.permute.xlu0 1
      %5028 = vperm.xlu0 %5027, %v3474
      %v5029 = vpop.permute.xlu0 %5028
      %5032 = vset.pattern.permute.xlu0 1
      %5033 = vperm.xlu0 %5032, %v3475
      %v5034 = vpop.permute.xlu0 %5033
      %5037 = vset.pattern.permute.xlu0 1
      %5038 = vperm.xlu0 %5037, %v3476
      %v5039 = vpop.permute.xlu0 %5038
      %5042 = vset.pattern.permute.xlu0 1
      %5043 = vperm.xlu0 %5042, %v3477
      %v5044 = vpop.permute.xlu0 %5043
      %5047 = vset.pattern.permute.xlu0 1
      %5048 = vperm.xlu0 %5047, %v3478
      %v5049 = vpop.permute.xlu0 %5048
      %5052 = vset.pattern.permute.xlu0 1
      %5053 = vperm.xlu0 %5052, %v3479
      %v5054 = vpop.permute.xlu0 %5053
      %5057 = vset.pattern.permute.xlu0 1
      %5058 = vperm.xlu0 %5057, %v3480
      %v5059 = vpop.permute.xlu0 %5058
      %5062 = vset.pattern.permute.xlu0 1
      %5063 = vperm.xlu0 %5062, %v3481
      %v5064 = vpop.permute.xlu0 %5063
      %v5066 = vadd.f32 %v4202, %v4349
      %v5067 = vadd.f32 %v4203, %v4354
      %v5068 = vadd.f32 %v4204, %v4359
      %v5069 = vadd.f32 %v4205, %v4364
      %v5070 = vadd.f32 %v4206, %v4369
      %v5071 = vadd.f32 %v4207, %v4374
      %v5072 = vadd.f32 %v4208, %v4379
      %v5073 = vadd.f32 %v4209, %v4384
      %v5074 = vadd.f32 %v4210, %v4389
      %v5075 = vadd.f32 %v4211, %v4394
      %v5076 = vadd.f32 %v4212, %v4399
      %v5077 = vadd.f32 %v4213, %v4404
      %v5078 = vadd.f32 %v4214, %v4409
      %v5079 = vadd.f32 %v4215, %v4414
      %v5080 = vadd.f32 %v4216, %v4419
      %v5081 = vadd.f32 %v4217, %v4424
      %v5082 = vadd.f32 %v4218, %v4429
      %v5083 = vadd.f32 %v4219, %v4434
      %v5084 = vadd.f32 %v4220, %v4439
      %v5085 = vadd.f32 %v4221, %v4444
      %v5086 = vadd.f32 %v4222, %v4449
      %v5087 = vadd.f32 %v4223, %v4454
      %v5088 = vadd.f32 %v4224, %v4459
      %v5089 = vadd.f32 %v4225, %v4464
      %v5090 = vadd.f32 %v4226, %v4469
      %v5091 = vadd.f32 %v4227, %v4474
      %v5092 = vadd.f32 %v4228, %v4479
      %v5093 = vadd.f32 %v4229, %v4484
      %v5094 = vadd.f32 %v4230, %v4489
      %v5095 = vadd.f32 %v4231, %v4494
      %v5096 = vadd.f32 %v4232, %v4499
      %v5097 = vadd.f32 %v4233, %v4504
      %v5098 = vadd.f32 %v4234, %v4509
      %v5099 = vadd.f32 %v4235, %v4514
      %v5100 = vadd.f32 %v4236, %v4519
      %v5101 = vadd.f32 %v4237, %v4524
      %v5102 = vadd.f32 %v4238, %v4529
      %v5103 = vadd.f32 %v4239, %v4534
      %v5104 = vadd.f32 %v4240, %v4539
      %v5105 = vadd.f32 %v4241, %v4544
      %v5106 = vadd.f32 %v4242, %v4549
      %v5107 = vadd.f32 %v4243, %v4554
      %v5108 = vadd.f32 %v4244, %v4559
      %v5109 = vadd.f32 %v4245, %v4564
      %v5110 = vadd.f32 %v4246, %v4569
      %v5111 = vadd.f32 %v4247, %v4574
      %v5112 = vadd.f32 %v4248, %v4579
      %v5113 = vadd.f32 %v4249, %v4584
      %v5114 = vadd.f32 %v4250, %v4589
      %v5115 = vadd.f32 %v4251, %v4594
      %v5116 = vadd.f32 %v4252, %v4599
      %v5117 = vadd.f32 %v4253, %v4604
      %v5118 = vadd.f32 %v4254, %v4609
      %v5119 = vadd.f32 %v4255, %v4614
      %v5120 = vadd.f32 %v4256, %v4619
      %v5121 = vadd.f32 %v4257, %v4624
      %v5122 = vadd.f32 %v4258, %v4629
      %v5123 = vadd.f32 %v4259, %v4634
      %v5124 = vadd.f32 %v4260, %v4639
      %v5125 = vadd.f32 %v4261, %v4644
      %v5126 = vadd.f32 %v4262, %v4649
      %v5127 = vadd.f32 %v4263, %v4654
      %v5128 = vadd.f32 %v4264, %v4659
      %v5129 = vadd.f32 %v4265, %v4664
      %v5130 = vadd.f32 %v4266, %v4669
      %v5131 = vadd.f32 %v4267, %v4674
      %v5132 = vadd.f32 %v4268, %v4679
      %v5133 = vadd.f32 %v4269, %v4684
      %v5134 = vadd.f32 %v4270, %v4689
      %v5135 = vadd.f32 %v4271, %v4694
      %v5136 = vadd.f32 %v4272, %v4699
      %v5137 = vadd.f32 %v4273, %v4704
      %v5138 = vadd.f32 %v4274, %v4709
      %v5139 = vadd.f32 %v4275, %v4714
      %v5140 = vadd.f32 %v4276, %v4719
      %v5141 = vadd.f32 %v4277, %v4724
      %v5142 = vadd.f32 %v4278, %v4729
      %v5143 = vadd.f32 %v4279, %v4734
      %v5144 = vadd.f32 %v4280, %v4739
      %v5145 = vadd.f32 %v4281, %v4744
      %v5146 = vadd.f32 %v4282, %v4749
      %v5147 = vadd.f32 %v4283, %v4754
      %v5148 = vadd.f32 %v4284, %v4759
      %v5149 = vadd.f32 %v4285, %v4764
      %v5150 = vadd.f32 %v4286, %v4769
      %v5151 = vadd.f32 %v4287, %v4774
      %v5152 = vadd.f32 %v4288, %v4779
      %v5153 = vadd.f32 %v4289, %v4784
      %v5154 = vadd.f32 %v4290, %v4789
      %v5155 = vadd.f32 %v4291, %v4794
      %v5156 = vadd.f32 %v4292, %v4799
      %v5157 = vadd.f32 %v4293, %v4804
      %v5158 = vadd.f32 %v4294, %v4809
      %v5159 = vadd.f32 %v4295, %v4814
      %v5160 = vadd.f32 %v4296, %v4819
      %v5161 = vadd.f32 %v4297, %v4824
      %v5162 = vadd.f32 %v4298, %v4829
      %v5163 = vadd.f32 %v4299, %v4834
      %v5164 = vadd.f32 %v4300, %v4839
      %v5165 = vadd.f32 %v4301, %v4844
      %v5166 = vadd.f32 %v4302, %v4849
      %v5167 = vadd.f32 %v4303, %v4854
      %v5168 = vadd.f32 %v4304, %v4859
      %v5169 = vadd.f32 %v4305, %v4864
      %v5170 = vadd.f32 %v4306, %v4869
      %v5171 = vadd.f32 %v4307, %v4874
      %v5172 = vadd.f32 %v4308, %v4879
      %v5173 = vadd.f32 %v4309, %v4884
      %v5174 = vadd.f32 %v4310, %v4889
      %v5175 = vadd.f32 %v4311, %v4894
      %v5176 = vadd.f32 %v4312, %v4899
      %v5177 = vadd.f32 %v4313, %v4904
      %v5178 = vadd.f32 %v4314, %v4909
      %v5179 = vadd.f32 %v4315, %v4914
      %v5180 = vadd.f32 %v4316, %v4919
      %v5181 = vadd.f32 %v4317, %v4924
      %v5182 = vadd.f32 %v4318, %v4929
      %v5183 = vadd.f32 %v4319, %v4934
      %v5184 = vadd.f32 %v4320, %v4939
      %v5185 = vadd.f32 %v4321, %v4944
      %v5186 = vadd.f32 %v4322, %v4949
      %v5187 = vadd.f32 %v4323, %v4954
      %v5188 = vadd.f32 %v4324, %v4959
      %v5189 = vadd.f32 %v4325, %v4964
      %v5190 = vadd.f32 %v4326, %v4969
      %v5191 = vadd.f32 %v4327, %v4974
      %v5192 = vadd.f32 %v4328, %v4979
      %v5193 = vadd.f32 %v4329, %v4984
      %v5194 = vadd.f32 %v4330, %v4989
      %v5195 = vadd.f32 %v4331, %v4994
      %v5196 = vadd.f32 %v4332, %v4999
      %v5197 = vadd.f32 %v4333, %v5004
      %v5198 = vadd.f32 %v4334, %v5009
      %v5199 = vadd.f32 %v4335, %v5014
      %v5200 = vadd.f32 %v4336, %v5019
      %v5201 = vadd.f32 %v4337, %v5024
      %v5202 = vadd.f32 %v4338, %v5029
      %v5203 = vadd.f32 %v4339, %v5034
      %v5204 = vadd.f32 %v4340, %v5039
      %v5205 = vadd.f32 %v4341, %v5044
      %v5206 = vadd.f32 %v4342, %v5049
      %v5207 = vadd.f32 %v4343, %v5054
      %v5208 = vadd.f32 %v4344, %v5059
      %v5209 = vadd.f32 %v4345, %v5064
      %5210 = vst.msk [vmem:[%s167] sm:$0xff] %vm313, %v5066
      %5211 = vst.msk [vmem:[%s167 + $0x8] sm:$0xff] %vm313, %v5067
      %5212 = vst.msk [vmem:[%s167 + $0x10] sm:$0xff] %vm313, %v5068
      %5213 = vst.msk [vmem:[%s167 + $0x18] sm:$0xff] %vm313, %v5069
      %5214 = vst.msk [vmem:[%s167 + $0x20] sm:$0xff] %vm313, %v5070
      %5215 = vst.msk [vmem:[%s167 + $0x28] sm:$0xff] %vm313, %v5071
      %5216 = vst.msk [vmem:[%s167 + $0x30] sm:$0xff] %vm313, %v5072
      %5217 = vst.msk [vmem:[%s167 + $0x38] sm:$0xff] %vm313, %v5073
      %5218 = vst.msk [vmem:[%s167 + $0x40] sm:$0xff] %vm313, %v5074
      %5219 = vst.msk [vmem:[%s167 + $0x48] sm:$0xff] %vm313, %v5075
      %5220 = vst.msk [vmem:[%s167 + $0x50] sm:$0xff] %vm313, %v5076
      %5221 = vst.msk [vmem:[%s167 + $0x58] sm:$0xff] %vm313, %v5077
      %5222 = vst.msk [vmem:[%s167 + $0x60] sm:$0xff] %vm313, %v5078
      %5223 = vst.msk [vmem:[%s167 + $0x68] sm:$0xff] %vm313, %v5079
      %5224 = vst.msk [vmem:[%s167 + $0x70] sm:$0xff] %vm313, %v5080
      %5225 = vst.msk [vmem:[%s167 + $0x78] sm:$0xff] %vm313, %v5081
      %5226 = vst.msk [vmem:[%s167 + $0x80] sm:$0xff] %vm313, %v5082
      %5227 = vst.msk [vmem:[%s167 + $0x88] sm:$0xff] %vm313, %v5083
      %5228 = vst.msk [vmem:[%s167 + $0x90] sm:$0xff] %vm313, %v5084
      %5229 = vst.msk [vmem:[%s167 + $0x98] sm:$0xff] %vm313, %v5085
      %5230 = vst.msk [vmem:[%s167 + $0xa0] sm:$0xff] %vm313, %v5086
      %5231 = vst.msk [vmem:[%s167 + $0xa8] sm:$0xff] %vm313, %v5087
      %5232 = vst.msk [vmem:[%s167 + $0xb0] sm:$0xff] %vm313, %v5088
      %5233 = vst.msk [vmem:[%s167 + $0xb8] sm:$0xff] %vm313, %v5089
      %5234 = vst.msk [vmem:[%s167 + $0xc0] sm:$0xff] %vm313, %v5090
      %5235 = vst.msk [vmem:[%s167 + $0xc8] sm:$0xff] %vm313, %v5091
      %5236 = vst.msk [vmem:[%s167 + $0xd0] sm:$0xff] %vm313, %v5092
      %5237 = vst.msk [vmem:[%s167 + $0xd8] sm:$0xff] %vm313, %v5093
      %5238 = vst.msk [vmem:[%s167 + $0xe0] sm:$0xff] %vm313, %v5094
      %5239 = vst.msk [vmem:[%s167 + $0xe8] sm:$0xff] %vm313, %v5095
      %5240 = vst.msk [vmem:[%s167 + $0xf0] sm:$0xff] %vm313, %v5096
      %5241 = vst.msk [vmem:[%s167 + $0xf8] sm:$0xff] %vm313, %v5097
      %5242 = vst.msk [vmem:[%s167 + $0x100] sm:$0xff] %vm313, %v5098
      %5243 = vst.msk [vmem:[%s167 + $0x108] sm:$0xff] %vm313, %v5099
      %5244 = vst.msk [vmem:[%s167 + $0x110] sm:$0xff] %vm313, %v5100
      %5245 = vst.msk [vmem:[%s167 + $0x118] sm:$0xff] %vm313, %v5101
      %5246 = vst.msk [vmem:[%s167 + $0x120] sm:$0xff] %vm313, %v5102
      %5247 = vst.msk [vmem:[%s167 + $0x128] sm:$0xff] %vm313, %v5103
      %5248 = vst.msk [vmem:[%s167 + $0x130] sm:$0xff] %vm313, %v5104
      %5249 = vst.msk [vmem:[%s167 + $0x138] sm:$0xff] %vm313, %v5105
      %5250 = vst.msk [vmem:[%s167 + $0x140] sm:$0xff] %vm313, %v5106
      %5251 = vst.msk [vmem:[%s167 + $0x148] sm:$0xff] %vm313, %v5107
      %5252 = vst.msk [vmem:[%s167 + $0x150] sm:$0xff] %vm313, %v5108
      %5253 = vst.msk [vmem:[%s167 + $0x158] sm:$0xff] %vm313, %v5109
      %5254 = vst.msk [vmem:[%s167 + $0x160] sm:$0xff] %vm313, %v5110
      %5255 = vst.msk [vmem:[%s167 + $0x168] sm:$0xff] %vm313, %v5111
      %5256 = vst.msk [vmem:[%s167 + $0x170] sm:$0xff] %vm313, %v5112
      %5257 = vst.msk [vmem:[%s167 + $0x178] sm:$0xff] %vm313, %v5113
      %5258 = vst.msk [vmem:[%s167 + $0x180] sm:$0xff] %vm313, %v5114
      %5259 = vst.msk [vmem:[%s167 + $0x188] sm:$0xff] %vm313, %v5115
      %5260 = vst.msk [vmem:[%s167 + $0x190] sm:$0xff] %vm313, %v5116
      %5261 = vst.msk [vmem:[%s167 + $0x198] sm:$0xff] %vm313, %v5117
      %5262 = vst.msk [vmem:[%s167 + $0x1a0] sm:$0xff] %vm313, %v5118
      %5263 = vst.msk [vmem:[%s167 + $0x1a8] sm:$0xff] %vm313, %v5119
      %5264 = vst.msk [vmem:[%s167 + $0x1b0] sm:$0xff] %vm313, %v5120
      %5265 = vst.msk [vmem:[%s167 + $0x1b8] sm:$0xff] %vm313, %v5121
      %5266 = vst.msk [vmem:[%s167 + $0x1c0] sm:$0xff] %vm313, %v5122
      %5267 = vst.msk [vmem:[%s167 + $0x1c8] sm:$0xff] %vm313, %v5123
      %5268 = vst.msk [vmem:[%s167 + $0x1d0] sm:$0xff] %vm313, %v5124
      %5269 = vst.msk [vmem:[%s167 + $0x1d8] sm:$0xff] %vm313, %v5125
      %5270 = vst.msk [vmem:[%s167 + $0x1e0] sm:$0xff] %vm313, %v5126
      %5271 = vst.msk [vmem:[%s167 + $0x1e8] sm:$0xff] %vm313, %v5127
      %5272 = vst.msk [vmem:[%s167 + $0x1f0] sm:$0xff] %vm313, %v5128
      %5273 = vst.msk [vmem:[%s167 + $0x1f8] sm:$0xff] %vm313, %v5129
      %5274 = vst.msk [vmem:[%s167 + $0x200] sm:$0xff] %vm313, %v5130
      %5275 = vst.msk [vmem:[%s167 + $0x208] sm:$0xff] %vm313, %v5131
      %5276 = vst.msk [vmem:[%s167 + $0x210] sm:$0xff] %vm313, %v5132
      %5277 = vst.msk [vmem:[%s167 + $0x218] sm:$0xff] %vm313, %v5133
      %5278 = vst.msk [vmem:[%s167 + $0x220] sm:$0xff] %vm313, %v5134
      %5279 = vst.msk [vmem:[%s167 + $0x228] sm:$0xff] %vm313, %v5135
      %5280 = vst.msk [vmem:[%s167 + $0x230] sm:$0xff] %vm313, %v5136
      %5281 = vst.msk [vmem:[%s167 + $0x238] sm:$0xff] %vm313, %v5137
      %5282 = vst.msk [vmem:[%s167 + $0x240] sm:$0xff] %vm313, %v5138
      %5283 = vst.msk [vmem:[%s167 + $0x248] sm:$0xff] %vm313, %v5139
      %5284 = vst.msk [vmem:[%s167 + $0x250] sm:$0xff] %vm313, %v5140
      %5285 = vst.msk [vmem:[%s167 + $0x258] sm:$0xff] %vm313, %v5141
      %5286 = vst.msk [vmem:[%s167 + $0x260] sm:$0xff] %vm313, %v5142
      %5287 = vst.msk [vmem:[%s167 + $0x268] sm:$0xff] %vm313, %v5143
      %5288 = vst.msk [vmem:[%s167 + $0x270] sm:$0xff] %vm313, %v5144
      %5289 = vst.msk [vmem:[%s167 + $0x278] sm:$0xff] %vm313, %v5145
      %5290 = vst.msk [vmem:[%s167 + $0x280] sm:$0xff] %vm313, %v5146
      %5291 = vst.msk [vmem:[%s167 + $0x288] sm:$0xff] %vm313, %v5147
      %5292 = vst.msk [vmem:[%s167 + $0x290] sm:$0xff] %vm313, %v5148
      %5293 = vst.msk [vmem:[%s167 + $0x298] sm:$0xff] %vm313, %v5149
      %5294 = vst.msk [vmem:[%s167 + $0x2a0] sm:$0xff] %vm313, %v5150
      %5295 = vst.msk [vmem:[%s167 + $0x2a8] sm:$0xff] %vm313, %v5151
      %5296 = vst.msk [vmem:[%s167 + $0x2b0] sm:$0xff] %vm313, %v5152
      %5297 = vst.msk [vmem:[%s167 + $0x2b8] sm:$0xff] %vm313, %v5153
      %5298 = vst.msk [vmem:[%s167 + $0x2c0] sm:$0xff] %vm313, %v5154
      %5299 = vst.msk [vmem:[%s167 + $0x2c8] sm:$0xff] %vm313, %v5155
      %5300 = vst.msk [vmem:[%s167 + $0x2d0] sm:$0xff] %vm313, %v5156
      %5301 = vst.msk [vmem:[%s167 + $0x2d8] sm:$0xff] %vm313, %v5157
      %5302 = vst.msk [vmem:[%s167 + $0x2e0] sm:$0xff] %vm313, %v5158
      %5303 = vst.msk [vmem:[%s167 + $0x2e8] sm:$0xff] %vm313, %v5159
      %5304 = vst.msk [vmem:[%s167 + $0x2f0] sm:$0xff] %vm313, %v5160
      %5305 = vst.msk [vmem:[%s167 + $0x2f8] sm:$0xff] %vm313, %v5161
      %5306 = vst.msk [vmem:[%s167 + $0x300] sm:$0xff] %vm313, %v5162
      %5307 = vst.msk [vmem:[%s167 + $0x308] sm:$0xff] %vm313, %v5163
      %5308 = vst.msk [vmem:[%s167 + $0x310] sm:$0xff] %vm313, %v5164
      %5309 = vst.msk [vmem:[%s167 + $0x318] sm:$0xff] %vm313, %v5165
      %5310 = vst.msk [vmem:[%s167 + $0x320] sm:$0xff] %vm313, %v5166
      %5311 = vst.msk [vmem:[%s167 + $0x328] sm:$0xff] %vm313, %v5167
      %5312 = vst.msk [vmem:[%s167 + $0x330] sm:$0xff] %vm313, %v5168
      %5313 = vst.msk [vmem:[%s167 + $0x338] sm:$0xff] %vm313, %v5169
      %5314 = vst.msk [vmem:[%s167 + $0x340] sm:$0xff] %vm313, %v5170
      %5315 = vst.msk [vmem:[%s167 + $0x348] sm:$0xff] %vm313, %v5171
      %5316 = vst.msk [vmem:[%s167 + $0x350] sm:$0xff] %vm313, %v5172
      %5317 = vst.msk [vmem:[%s167 + $0x358] sm:$0xff] %vm313, %v5173
      %5318 = vst.msk [vmem:[%s167 + $0x360] sm:$0xff] %vm313, %v5174
      %5319 = vst.msk [vmem:[%s167 + $0x368] sm:$0xff] %vm313, %v5175
      %5320 = vst.msk [vmem:[%s167 + $0x370] sm:$0xff] %vm313, %v5176
      %5321 = vst.msk [vmem:[%s167 + $0x378] sm:$0xff] %vm313, %v5177
      %5322 = vst.msk [vmem:[%s167 + $0x380] sm:$0xff] %vm313, %v5178
      %5323 = vst.msk [vmem:[%s167 + $0x388] sm:$0xff] %vm313, %v5179
      %5324 = vst.msk [vmem:[%s167 + $0x390] sm:$0xff] %vm313, %v5180
      %5325 = vst.msk [vmem:[%s167 + $0x398] sm:$0xff] %vm313, %v5181
      %5326 = vst.msk [vmem:[%s167 + $0x3a0] sm:$0xff] %vm313, %v5182
      %5327 = vst.msk [vmem:[%s167 + $0x3a8] sm:$0xff] %vm313, %v5183
      %5328 = vst.msk [vmem:[%s167 + $0x3b0] sm:$0xff] %vm313, %v5184
      %5329 = vst.msk [vmem:[%s167 + $0x3b8] sm:$0xff] %vm313, %v5185
      %5330 = vst.msk [vmem:[%s167 + $0x3c0] sm:$0xff] %vm313, %v5186
      %5331 = vst.msk [vmem:[%s167 + $0x3c8] sm:$0xff] %vm313, %v5187
      %5332 = vst.msk [vmem:[%s167 + $0x3d0] sm:$0xff] %vm313, %v5188
      %5333 = vst.msk [vmem:[%s167 + $0x3d8] sm:$0xff] %vm313, %v5189
      %5334 = vst.msk [vmem:[%s167 + $0x3e0] sm:$0xff] %vm313, %v5190
      %5335 = vst.msk [vmem:[%s167 + $0x3e8] sm:$0xff] %vm313, %v5191
      %5336 = vst.msk [vmem:[%s167 + $0x3f0] sm:$0xff] %vm313, %v5192
      %5337 = vst.msk [vmem:[%s167 + $0x3f8] sm:$0xff] %vm313, %v5193
      %5338 = vst.msk [vmem:[%s167 + $0x400] sm:$0xff] %vm313, %v5194
      %5339 = vst.msk [vmem:[%s167 + $0x408] sm:$0xff] %vm313, %v5195
      %5340 = vst.msk [vmem:[%s167 + $0x410] sm:$0xff] %vm313, %v5196
      %5341 = vst.msk [vmem:[%s167 + $0x418] sm:$0xff] %vm313, %v5197
      %5342 = vst.msk [vmem:[%s167 + $0x420] sm:$0xff] %vm313, %v5198
      %5343 = vst.msk [vmem:[%s167 + $0x428] sm:$0xff] %vm313, %v5199
      %5344 = vst.msk [vmem:[%s167 + $0x430] sm:$0xff] %vm313, %v5200
      %5345 = vst.msk [vmem:[%s167 + $0x438] sm:$0xff] %vm313, %v5201
      %5346 = vst.msk [vmem:[%s167 + $0x440] sm:$0xff] %vm313, %v5202
      %5347 = vst.msk [vmem:[%s167 + $0x448] sm:$0xff] %vm313, %v5203
      %5348 = vst.msk [vmem:[%s167 + $0x450] sm:$0xff] %vm313, %v5204
      %5349 = vst.msk [vmem:[%s167 + $0x458] sm:$0xff] %vm313, %v5205
      %5350 = vst.msk [vmem:[%s167 + $0x460] sm:$0xff] %vm313, %v5206
      %5351 = vst.msk [vmem:[%s167 + $0x468] sm:$0xff] %vm313, %v5207
      %5352 = vst.msk [vmem:[%s167 + $0x470] sm:$0xff] %vm313, %v5208
      %5353 = vst.msk [vmem:[%s167 + $0x478] sm:$0xff] %vm313, %v5209
      %s5354 = smul.u32 144, %s13
      %p5355 = scmp.lt.s32.totalorder %s5354, 287
      %s5356 = scalar_select %p5355, %s5354, 287
      %s5357 = smul.addr %s5356, 8
      %s5358 = scalar_lea.vmem %s2, %s5357
      // Predicated region
      $region29: #{tpu_custom_call.1} parent=27 // pred_check
        %p5359 = pneg %p83
      $region30: #{tpu_custom_call.1} parent=27 // pred_check_branch
        %5361 = sbr.rel (%p5359) target = $region32
      $region31: #{tpu_custom_call.1} parent=27 // pred_region
        %s5362 = smul.u32 144, %s13
      $region32: #{tpu_custom_call.1} parent=27 // pred_fallthru
        _
    $region28: #{tpu_custom_call.1} parent=5 // pred_fallthru
      _
    %p5363 = scmp.le.s32.totalorder 2, %s8
    // Predicated region
    $region33: #{tpu_custom_call.1} parent=5 // pred_check
      %p5364 = pneg %p5363
    $region34: #{tpu_custom_call.1} parent=5 // pred_check_branch
      %5366 = sbr.rel (%p5364) target = $region36
    $region35: #{tpu_custom_call.1} parent=5 // pred_region
      %s5367 = ssub.s32 %s8, 2
      // Predicated region
      $region37: #{tpu_custom_call.1} parent=35 // pred_check
        %p5368 = pneg %p89
      $region38: #{tpu_custom_call.1} parent=35 // pred_check_branch
        %5370 = sbr.rel (%p5368) target = $region40
      $region39: #{tpu_custom_call.1} parent=35 // pred_region
        %s5371 = smul.u32 144, %s14
        %p5372 = scmp.lt.s32.totalorder %s5371, 287
        %s5373 = scalar_select %p5372, %s5371, 287
        %s5374 = smul.addr %s5373, 8
        %s5375 = scalar_lea.vmem %s2, %s5374
      $region40: #{tpu_custom_call.1} parent=35 // pred_fallthru
        _
    $region36: #{tpu_custom_call.1} parent=5 // pred_fallthru
      _
  $region6: #{tpu_custom_call.1} parent=0 // loop_footer
    %s12 = sadd.s32 1, %s8
  $region7: #{tpu_custom_call.1} parent=0 // loop_footer_branch
    %7 = sbr.rel target = $region3
  $region8: #{tpu_custom_call.1} parent=0 // loop_exit
    _

</llo_original>
